<compile_context>
chip_gen: v7x
topology: tpu7x:2x2x1
jax: 0.10.0
libtpu: 0.0.40
codegen_flags: <defaults>
</compile_context>

<pallas_src>
import functools

import jax
import jax.numpy as jnp
from jax.experimental import pallas as pl
from jax.experimental.pallas import tpu as pltpu

NEGATIVE_SLOPE = 0.3315146


def _conv_lrelu_kernel(x_ref, w_ref, b_ref, o_ref, *, C, KH, KW, OH, OW, slope):
    # x_ref: (N, C, H, W) f32 VMEM  -- raw input (~4 KiB)
    # w_ref: (C*KH*KW,)   f32 SMEM  -- flattened filter, (c, kh, kw) order
    # b_ref: (1,)         f32 SMEM  -- bias
    # o_ref: (N, OH, OW)  f32 VMEM  -- conv + bias + leaky-relu result
    x = x_ref[...]                                   # single VMEM load
    N = x.shape[0]
    acc = jnp.zeros((N, OH, OW), jnp.float32)

    # Direct convolution: statically unrolled shift-and-MAC over the receptive
    # field.  All slice offsets are Python ints (static), weights are SMEM
    # scalar loads; no im2col scratch, no mostly-empty MXU pass.
    for c in range(C):
        plane = x[:, c]                              # (N, H, W)
        for kh in range(KH):
            rows = plane[:, kh:kh + OH, :]           # (N, OH, W) sublane shift
            for kw in range(KW):
                w_s = w_ref[c * KH * KW + kh * KW + kw]
                acc = acc + w_s * rows[:, :, kw:kw + OW]

    acc = acc + b_ref[0]
    o_ref[...] = jnp.where(acc > 0, acc, acc * slope).astype(o_ref.dtype)


@jax.jit
def conv2d_leaky_relu(x, w, b):
    """x: (N, C, H, W), w: (1, C, KH, KW), b: (1,) -> (N, 1, OH, OW)."""
    N, C, H, W = x.shape
    O, Cw, KH, KW = w.shape
    assert O == 1 and Cw == C
    OH, OW = H - KH + 1, W - KW + 1
    # TODO(synk): if N*OH*OW or C*KH*KW ever grows large, tile rows / the
    # contraction dim with a BlockSpec grid (and set vmem_limit_bytes) instead
    # of keeping the whole problem resident in one grid step.

    kernel = functools.partial(
        _conv_lrelu_kernel,
        C=C, KH=KH, KW=KW, OH=OH, OW=OW, slope=NEGATIVE_SLOPE)

    out = pl.pallas_call(
        kernel,
        out_shape=jax.ShapeDtypeStruct((N, OH, OW), jnp.float32),
        in_specs=[
            pl.BlockSpec(memory_space=pltpu.MemorySpace.VMEM),   # x (raw)
            pl.BlockSpec(memory_space=pltpu.MemorySpace.SMEM),   # flat weights
            pl.BlockSpec(memory_space=pltpu.MemorySpace.SMEM),   # bias
        ],
        out_specs=pl.BlockSpec(memory_space=pltpu.MemorySpace.VMEM),
    )(x.astype(jnp.float32),
      w.reshape(-1).astype(jnp.float32),
      b.astype(jnp.float32))

    return out.reshape(N, 1, OH, OW).astype(x.dtype)


def _reference(x, w, b, negative_slope=NEGATIVE_SLOPE):
    v1 = jax.lax.conv_general_dilated(
        x, w, window_strides=(1, 1), padding="VALID",
        dimension_numbers=("NCHW", "OIHW", "NCHW"),
    ) + b.reshape(1, -1, 1, 1)
    return jnp.where(v1 > 0, v1, v1 * negative_slope)


if __name__ == "__main__":
    key = jax.random.PRNGKey(0)
    kx, kw, kb = jax.random.split(key, 3)

    # Shapes consistent with Conv2d(2, 1, 8): N=2, C=2, H=W=16 -> OH=OW=9
    N, C, H, W = 2, 2, 16, 16
    KH = KW = 8

    x = jax.random.normal(kx, (N, C, H, W), dtype=jnp.float32)
    # deterministic "PyTorch-like" init: uniform in [-1/sqrt(fan_in), 1/sqrt(fan_in)]
    fan_in = C * KH * KW
    bound = 1.0 / (fan_in ** 0.5)
    w = jax.random.uniform(kw, (1, C, KH, KW), jnp.float32, -bound, bound)
    b = jax.random.uniform(kb, (1,), jnp.float32, -bound, bound)

    out = jax.block_until_ready(conv2d_leaky_relu(x, w, b))
    ref = _reference(x, w, b)

    assert out.shape == (N, 1, H - KH + 1, W - KW + 1), out.shape
    # f32 everywhere; tolerance covers summation-order differences vs XLA conv.
    assert jnp.allclose(out, ref, atol=1e-4, rtol=1e-4), "mismatch vs reference"

    print("KERNEL_OK")
</pallas_src>

<mosaic_0001>
module attributes {stable_mosaic.version = 11 : i64} {
  func.func @_conv_lrelu_kernel(%arg0: memref<2x2x16x16xf32, #tpu.memory_space<vmem>>, %arg1: memref<128xf32, #tpu.memory_space<smem>>, %arg2: memref<1xf32, #tpu.memory_space<smem>>, %arg3: memref<2x9x9xf32, #tpu.memory_space<vmem>>) attributes {dimension_semantics = [], scalar_prefetch = 0 : i64, scratch_operands = 0 : i64, tpu.core_type = #tpu.core_type<tc>} {
    %c0 = arith.constant 0 : index
    %c0_0 = arith.constant 0 : index
    %c0_1 = arith.constant 0 : index
    %c0_2 = arith.constant 0 : index
    %0 = vector.load %arg0[%c0, %c0_0, %c0_1, %c0_2] : memref<2x2x16x16xf32, #tpu.memory_space<vmem>>, vector<2x2x16x16xf32>
    %cst = arith.constant 0.000000e+00 : f32
    %1 = vector.broadcast %cst : f32 to vector<2x9x9xf32>
    %2 = vector.extract_strided_slice %0 {offsets = [0, 0, 0, 0], sizes = [2, 1, 16, 16], strides = [1, 1, 1, 1]} : vector<2x2x16x16xf32> to vector<2x1x16x16xf32>
    %3 = vector.shape_cast %2 : vector<2x1x16x16xf32> to vector<2x16x16xf32>
    %4 = vector.extract_strided_slice %3 {offsets = [0, 0, 0], sizes = [2, 9, 16], strides = [1, 1, 1]} : vector<2x16x16xf32> to vector<2x9x16xf32>
    %c0_3 = arith.constant 0 : index
    %5 = memref.load %arg1[%c0_3] : memref<128xf32, #tpu.memory_space<smem>>
    %6 = vector.extract_strided_slice %4 {offsets = [0, 0, 0], sizes = [2, 9, 9], strides = [1, 1, 1]} : vector<2x9x16xf32> to vector<2x9x9xf32>
    %7 = vector.broadcast %5 : f32 to vector<2x9x9xf32>
    %8 = arith.mulf %7, %6 : vector<2x9x9xf32>
    %9 = arith.addf %1, %8 : vector<2x9x9xf32>
    %c1 = arith.constant 1 : index
    %10 = memref.load %arg1[%c1] : memref<128xf32, #tpu.memory_space<smem>>
    %11 = vector.extract_strided_slice %4 {offsets = [0, 0, 1], sizes = [2, 9, 9], strides = [1, 1, 1]} : vector<2x9x16xf32> to vector<2x9x9xf32>
    %12 = vector.broadcast %10 : f32 to vector<2x9x9xf32>
    %13 = arith.mulf %12, %11 : vector<2x9x9xf32>
    %14 = arith.addf %9, %13 : vector<2x9x9xf32>
    %c2 = arith.constant 2 : index
    %15 = memref.load %arg1[%c2] : memref<128xf32, #tpu.memory_space<smem>>
    %16 = vector.extract_strided_slice %4 {offsets = [0, 0, 2], sizes = [2, 9, 9], strides = [1, 1, 1]} : vector<2x9x16xf32> to vector<2x9x9xf32>
    %17 = vector.broadcast %15 : f32 to vector<2x9x9xf32>
    %18 = arith.mulf %17, %16 : vector<2x9x9xf32>
    %19 = arith.addf %14, %18 : vector<2x9x9xf32>
    %c3 = arith.constant 3 : index
    %20 = memref.load %arg1[%c3] : memref<128xf32, #tpu.memory_space<smem>>
    %21 = vector.extract_strided_slice %4 {offsets = [0, 0, 3], sizes = [2, 9, 9], strides = [1, 1, 1]} : vector<2x9x16xf32> to vector<2x9x9xf32>
    %22 = vector.broadcast %20 : f32 to vector<2x9x9xf32>
    %23 = arith.mulf %22, %21 : vector<2x9x9xf32>
    %24 = arith.addf %19, %23 : vector<2x9x9xf32>
    %c4 = arith.constant 4 : index
    %25 = memref.load %arg1[%c4] : memref<128xf32, #tpu.memory_space<smem>>
    %26 = vector.extract_strided_slice %4 {offsets = [0, 0, 4], sizes = [2, 9, 9], strides = [1, 1, 1]} : vector<2x9x16xf32> to vector<2x9x9xf32>
    %27 = vector.broadcast %25 : f32 to vector<2x9x9xf32>
    %28 = arith.mulf %27, %26 : vector<2x9x9xf32>
    %29 = arith.addf %24, %28 : vector<2x9x9xf32>
    %c5 = arith.constant 5 : index
    %30 = memref.load %arg1[%c5] : memref<128xf32, #tpu.memory_space<smem>>
    %31 = vector.extract_strided_slice %4 {offsets = [0, 0, 5], sizes = [2, 9, 9], strides = [1, 1, 1]} : vector<2x9x16xf32> to vector<2x9x9xf32>
    %32 = vector.broadcast %30 : f32 to vector<2x9x9xf32>
    %33 = arith.mulf %32, %31 : vector<2x9x9xf32>
    %34 = arith.addf %29, %33 : vector<2x9x9xf32>
    %c6 = arith.constant 6 : index
    %35 = memref.load %arg1[%c6] : memref<128xf32, #tpu.memory_space<smem>>
    %36 = vector.extract_strided_slice %4 {offsets = [0, 0, 6], sizes = [2, 9, 9], strides = [1, 1, 1]} : vector<2x9x16xf32> to vector<2x9x9xf32>
    %37 = vector.broadcast %35 : f32 to vector<2x9x9xf32>
    %38 = arith.mulf %37, %36 : vector<2x9x9xf32>
    %39 = arith.addf %34, %38 : vector<2x9x9xf32>
    %c7 = arith.constant 7 : index
    %40 = memref.load %arg1[%c7] : memref<128xf32, #tpu.memory_space<smem>>
    %41 = vector.extract_strided_slice %4 {offsets = [0, 0, 7], sizes = [2, 9, 9], strides = [1, 1, 1]} : vector<2x9x16xf32> to vector<2x9x9xf32>
    %42 = vector.broadcast %40 : f32 to vector<2x9x9xf32>
    %43 = arith.mulf %42, %41 : vector<2x9x9xf32>
    %44 = arith.addf %39, %43 : vector<2x9x9xf32>
    %45 = vector.extract_strided_slice %3 {offsets = [0, 1, 0], sizes = [2, 9, 16], strides = [1, 1, 1]} : vector<2x16x16xf32> to vector<2x9x16xf32>
    %c8 = arith.constant 8 : index
    %46 = memref.load %arg1[%c8] : memref<128xf32, #tpu.memory_space<smem>>
    %47 = vector.extract_strided_slice %45 {offsets = [0, 0, 0], sizes = [2, 9, 9], strides = [1, 1, 1]} : vector<2x9x16xf32> to vector<2x9x9xf32>
    %48 = vector.broadcast %46 : f32 to vector<2x9x9xf32>
    %49 = arith.mulf %48, %47 : vector<2x9x9xf32>
    %50 = arith.addf %44, %49 : vector<2x9x9xf32>
    %c9 = arith.constant 9 : index
    %51 = memref.load %arg1[%c9] : memref<128xf32, #tpu.memory_space<smem>>
    %52 = vector.extract_strided_slice %45 {offsets = [0, 0, 1], sizes = [2, 9, 9], strides = [1, 1, 1]} : vector<2x9x16xf32> to vector<2x9x9xf32>
    %53 = vector.broadcast %51 : f32 to vector<2x9x9xf32>
    %54 = arith.mulf %53, %52 : vector<2x9x9xf32>
    %55 = arith.addf %50, %54 : vector<2x9x9xf32>
    %c10 = arith.constant 10 : index
    %56 = memref.load %arg1[%c10] : memref<128xf32, #tpu.memory_space<smem>>
    %57 = vector.extract_strided_slice %45 {offsets = [0, 0, 2], sizes = [2, 9, 9], strides = [1, 1, 1]} : vector<2x9x16xf32> to vector<2x9x9xf32>
    %58 = vector.broadcast %56 : f32 to vector<2x9x9xf32>
    %59 = arith.mulf %58, %57 : vector<2x9x9xf32>
    %60 = arith.addf %55, %59 : vector<2x9x9xf32>
    %c11 = arith.constant 11 : index
    %61 = memref.load %arg1[%c11] : memref<128xf32, #tpu.memory_space<smem>>
    %62 = vector.extract_strided_slice %45 {offsets = [0, 0, 3], sizes = [2, 9, 9], strides = [1, 1, 1]} : vector<2x9x16xf32> to vector<2x9x9xf32>
    %63 = vector.broadcast %61 : f32 to vector<2x9x9xf32>
    %64 = arith.mulf %63, %62 : vector<2x9x9xf32>
    %65 = arith.addf %60, %64 : vector<2x9x9xf32>
    %c12 = arith.constant 12 : index
    %66 = memref.load %arg1[%c12] : memref<128xf32, #tpu.memory_space<smem>>
    %67 = vector.extract_strided_slice %45 {offsets = [0, 0, 4], sizes = [2, 9, 9], strides = [1, 1, 1]} : vector<2x9x16xf32> to vector<2x9x9xf32>
    %68 = vector.broadcast %66 : f32 to vector<2x9x9xf32>
    %69 = arith.mulf %68, %67 : vector<2x9x9xf32>
    %70 = arith.addf %65, %69 : vector<2x9x9xf32>
    %c13 = arith.constant 13 : index
    %71 = memref.load %arg1[%c13] : memref<128xf32, #tpu.memory_space<smem>>
    %72 = vector.extract_strided_slice %45 {offsets = [0, 0, 5], sizes = [2, 9, 9], strides = [1, 1, 1]} : vector<2x9x16xf32> to vector<2x9x9xf32>
    %73 = vector.broadcast %71 : f32 to vector<2x9x9xf32>
    %74 = arith.mulf %73, %72 : vector<2x9x9xf32>
    %75 = arith.addf %70, %74 : vector<2x9x9xf32>
    %c14 = arith.constant 14 : index
    %76 = memref.load %arg1[%c14] : memref<128xf32, #tpu.memory_space<smem>>
    %77 = vector.extract_strided_slice %45 {offsets = [0, 0, 6], sizes = [2, 9, 9], strides = [1, 1, 1]} : vector<2x9x16xf32> to vector<2x9x9xf32>
    %78 = vector.broadcast %76 : f32 to vector<2x9x9xf32>
    %79 = arith.mulf %78, %77 : vector<2x9x9xf32>
    %80 = arith.addf %75, %79 : vector<2x9x9xf32>
    %c15 = arith.constant 15 : index
    %81 = memref.load %arg1[%c15] : memref<128xf32, #tpu.memory_space<smem>>
    %82 = vector.extract_strided_slice %45 {offsets = [0, 0, 7], sizes = [2, 9, 9], strides = [1, 1, 1]} : vector<2x9x16xf32> to vector<2x9x9xf32>
    %83 = vector.broadcast %81 : f32 to vector<2x9x9xf32>
    %84 = arith.mulf %83, %82 : vector<2x9x9xf32>
    %85 = arith.addf %80, %84 : vector<2x9x9xf32>
    %86 = vector.extract_strided_slice %3 {offsets = [0, 2, 0], sizes = [2, 9, 16], strides = [1, 1, 1]} : vector<2x16x16xf32> to vector<2x9x16xf32>
    %c16 = arith.constant 16 : index
    %87 = memref.load %arg1[%c16] : memref<128xf32, #tpu.memory_space<smem>>
    %88 = vector.extract_strided_slice %86 {offsets = [0, 0, 0], sizes = [2, 9, 9], strides = [1, 1, 1]} : vector<2x9x16xf32> to vector<2x9x9xf32>
    %89 = vector.broadcast %87 : f32 to vector<2x9x9xf32>
    %90 = arith.mulf %89, %88 : vector<2x9x9xf32>
    %91 = arith.addf %85, %90 : vector<2x9x9xf32>
    %c17 = arith.constant 17 : index
    %92 = memref.load %arg1[%c17] : memref<128xf32, #tpu.memory_space<smem>>
    %93 = vector.extract_strided_slice %86 {offsets = [0, 0, 1], sizes = [2, 9, 9], strides = [1, 1, 1]} : vector<2x9x16xf32> to vector<2x9x9xf32>
    %94 = vector.broadcast %92 : f32 to vector<2x9x9xf32>
    %95 = arith.mulf %94, %93 : vector<2x9x9xf32>
    %96 = arith.addf %91, %95 : vector<2x9x9xf32>
    %c18 = arith.constant 18 : index
    %97 = memref.load %arg1[%c18] : memref<128xf32, #tpu.memory_space<smem>>
    %98 = vector.extract_strided_slice %86 {offsets = [0, 0, 2], sizes = [2, 9, 9], strides = [1, 1, 1]} : vector<2x9x16xf32> to vector<2x9x9xf32>
    %99 = vector.broadcast %97 : f32 to vector<2x9x9xf32>
    %100 = arith.mulf %99, %98 : vector<2x9x9xf32>
    %101 = arith.addf %96, %100 : vector<2x9x9xf32>
    %c19 = arith.constant 19 : index
    %102 = memref.load %arg1[%c19] : memref<128xf32, #tpu.memory_space<smem>>
    %103 = vector.extract_strided_slice %86 {offsets = [0, 0, 3], sizes = [2, 9, 9], strides = [1, 1, 1]} : vector<2x9x16xf32> to vector<2x9x9xf32>
    %104 = vector.broadcast %102 : f32 to vector<2x9x9xf32>
    %105 = arith.mulf %104, %103 : vector<2x9x9xf32>
    %106 = arith.addf %101, %105 : vector<2x9x9xf32>
    %c20 = arith.constant 20 : index
    %107 = memref.load %arg1[%c20] : memref<128xf32, #tpu.memory_space<smem>>
    %108 = vector.extract_strided_slice %86 {offsets = [0, 0, 4], sizes = [2, 9, 9], strides = [1, 1, 1]} : vector<2x9x16xf32> to vector<2x9x9xf32>
    %109 = vector.broadcast %107 : f32 to vector<2x9x9xf32>
    %110 = arith.mulf %109, %108 : vector<2x9x9xf32>
    %111 = arith.addf %106, %110 : vector<2x9x9xf32>
    %c21 = arith.constant 21 : index
    %112 = memref.load %arg1[%c21] : memref<128xf32, #tpu.memory_space<smem>>
    %113 = vector.extract_strided_slice %86 {offsets = [0, 0, 5], sizes = [2, 9, 9], strides = [1, 1, 1]} : vector<2x9x16xf32> to vector<2x9x9xf32>
    %114 = vector.broadcast %112 : f32 to vector<2x9x9xf32>
    %115 = arith.mulf %114, %113 : vector<2x9x9xf32>
    %116 = arith.addf %111, %115 : vector<2x9x9xf32>
    %c22 = arith.constant 22 : index
    %117 = memref.load %arg1[%c22] : memref<128xf32, #tpu.memory_space<smem>>
    %118 = vector.extract_strided_slice %86 {offsets = [0, 0, 6], sizes = [2, 9, 9], strides = [1, 1, 1]} : vector<2x9x16xf32> to vector<2x9x9xf32>
    %119 = vector.broadcast %117 : f32 to vector<2x9x9xf32>
    %120 = arith.mulf %119, %118 : vector<2x9x9xf32>
    %121 = arith.addf %116, %120 : vector<2x9x9xf32>
    %c23 = arith.constant 23 : index
    %122 = memref.load %arg1[%c23] : memref<128xf32, #tpu.memory_space<smem>>
    %123 = vector.extract_strided_slice %86 {offsets = [0, 0, 7], sizes = [2, 9, 9], strides = [1, 1, 1]} : vector<2x9x16xf32> to vector<2x9x9xf32>
    %124 = vector.broadcast %122 : f32 to vector<2x9x9xf32>
    %125 = arith.mulf %124, %123 : vector<2x9x9xf32>
    %126 = arith.addf %121, %125 : vector<2x9x9xf32>
    %127 = vector.extract_strided_slice %3 {offsets = [0, 3, 0], sizes = [2, 9, 16], strides = [1, 1, 1]} : vector<2x16x16xf32> to vector<2x9x16xf32>
    %c24 = arith.constant 24 : index
    %128 = memref.load %arg1[%c24] : memref<128xf32, #tpu.memory_space<smem>>
    %129 = vector.extract_strided_slice %127 {offsets = [0, 0, 0], sizes = [2, 9, 9], strides = [1, 1, 1]} : vector<2x9x16xf32> to vector<2x9x9xf32>
    %130 = vector.broadcast %128 : f32 to vector<2x9x9xf32>
    %131 = arith.mulf %130, %129 : vector<2x9x9xf32>
    %132 = arith.addf %126, %131 : vector<2x9x9xf32>
    %c25 = arith.constant 25 : index
    %133 = memref.load %arg1[%c25] : memref<128xf32, #tpu.memory_space<smem>>
    %134 = vector.extract_strided_slice %127 {offsets = [0, 0, 1], sizes = [2, 9, 9], strides = [1, 1, 1]} : vector<2x9x16xf32> to vector<2x9x9xf32>
    %135 = vector.broadcast %133 : f32 to vector<2x9x9xf32>
    %136 = arith.mulf %135, %134 : vector<2x9x9xf32>
    %137 = arith.addf %132, %136 : vector<2x9x9xf32>
    %c26 = arith.constant 26 : index
    %138 = memref.load %arg1[%c26] : memref<128xf32, #tpu.memory_space<smem>>
    %139 = vector.extract_strided_slice %127 {offsets = [0, 0, 2], sizes = [2, 9, 9], strides = [1, 1, 1]} : vector<2x9x16xf32> to vector<2x9x9xf32>
    %140 = vector.broadcast %138 : f32 to vector<2x9x9xf32>
    %141 = arith.mulf %140, %139 : vector<2x9x9xf32>
    %142 = arith.addf %137, %141 : vector<2x9x9xf32>
    %c27 = arith.constant 27 : index
    %143 = memref.load %arg1[%c27] : memref<128xf32, #tpu.memory_space<smem>>
    %144 = vector.extract_strided_slice %127 {offsets = [0, 0, 3], sizes = [2, 9, 9], strides = [1, 1, 1]} : vector<2x9x16xf32> to vector<2x9x9xf32>
    %145 = vector.broadcast %143 : f32 to vector<2x9x9xf32>
    %146 = arith.mulf %145, %144 : vector<2x9x9xf32>
    %147 = arith.addf %142, %146 : vector<2x9x9xf32>
    %c28 = arith.constant 28 : index
    %148 = memref.load %arg1[%c28] : memref<128xf32, #tpu.memory_space<smem>>
    %149 = vector.extract_strided_slice %127 {offsets = [0, 0, 4], sizes = [2, 9, 9], strides = [1, 1, 1]} : vector<2x9x16xf32> to vector<2x9x9xf32>
    %150 = vector.broadcast %148 : f32 to vector<2x9x9xf32>
    %151 = arith.mulf %150, %149 : vector<2x9x9xf32>
    %152 = arith.addf %147, %151 : vector<2x9x9xf32>
    %c29 = arith.constant 29 : index
    %153 = memref.load %arg1[%c29] : memref<128xf32, #tpu.memory_space<smem>>
    %154 = vector.extract_strided_slice %127 {offsets = [0, 0, 5], sizes = [2, 9, 9], strides = [1, 1, 1]} : vector<2x9x16xf32> to vector<2x9x9xf32>
    %155 = vector.broadcast %153 : f32 to vector<2x9x9xf32>
    %156 = arith.mulf %155, %154 : vector<2x9x9xf32>
    %157 = arith.addf %152, %156 : vector<2x9x9xf32>
    %c30 = arith.constant 30 : index
    %158 = memref.load %arg1[%c30] : memref<128xf32, #tpu.memory_space<smem>>
    %159 = vector.extract_strided_slice %127 {offsets = [0, 0, 6], sizes = [2, 9, 9], strides = [1, 1, 1]} : vector<2x9x16xf32> to vector<2x9x9xf32>
    %160 = vector.broadcast %158 : f32 to vector<2x9x9xf32>
    %161 = arith.mulf %160, %159 : vector<2x9x9xf32>
    %162 = arith.addf %157, %161 : vector<2x9x9xf32>
    %c31 = arith.constant 31 : index
    %163 = memref.load %arg1[%c31] : memref<128xf32, #tpu.memory_space<smem>>
    %164 = vector.extract_strided_slice %127 {offsets = [0, 0, 7], sizes = [2, 9, 9], strides = [1, 1, 1]} : vector<2x9x16xf32> to vector<2x9x9xf32>
    %165 = vector.broadcast %163 : f32 to vector<2x9x9xf32>
    %166 = arith.mulf %165, %164 : vector<2x9x9xf32>
    %167 = arith.addf %162, %166 : vector<2x9x9xf32>
    %168 = vector.extract_strided_slice %3 {offsets = [0, 4, 0], sizes = [2, 9, 16], strides = [1, 1, 1]} : vector<2x16x16xf32> to vector<2x9x16xf32>
    %c32 = arith.constant 32 : index
    %169 = memref.load %arg1[%c32] : memref<128xf32, #tpu.memory_space<smem>>
    %170 = vector.extract_strided_slice %168 {offsets = [0, 0, 0], sizes = [2, 9, 9], strides = [1, 1, 1]} : vector<2x9x16xf32> to vector<2x9x9xf32>
    %171 = vector.broadcast %169 : f32 to vector<2x9x9xf32>
    %172 = arith.mulf %171, %170 : vector<2x9x9xf32>
    %173 = arith.addf %167, %172 : vector<2x9x9xf32>
    %c33 = arith.constant 33 : index
    %174 = memref.load %arg1[%c33] : memref<128xf32, #tpu.memory_space<smem>>
    %175 = vector.extract_strided_slice %168 {offsets = [0, 0, 1], sizes = [2, 9, 9], strides = [1, 1, 1]} : vector<2x9x16xf32> to vector<2x9x9xf32>
    %176 = vector.broadcast %174 : f32 to vector<2x9x9xf32>
    %177 = arith.mulf %176, %175 : vector<2x9x9xf32>
    %178 = arith.addf %173, %177 : vector<2x9x9xf32>
    %c34 = arith.constant 34 : index
    %179 = memref.load %arg1[%c34] : memref<128xf32, #tpu.memory_space<smem>>
    %180 = vector.extract_strided_slice %168 {offsets = [0, 0, 2], sizes = [2, 9, 9], strides = [1, 1, 1]} : vector<2x9x16xf32> to vector<2x9x9xf32>
    %181 = vector.broadcast %179 : f32 to vector<2x9x9xf32>
    %182 = arith.mulf %181, %180 : vector<2x9x9xf32>
    %183 = arith.addf %178, %182 : vector<2x9x9xf32>
    %c35 = arith.constant 35 : index
    %184 = memref.load %arg1[%c35] : memref<128xf32, #tpu.memory_space<smem>>
    %185 = vector.extract_strided_slice %168 {offsets = [0, 0, 3], sizes = [2, 9, 9], strides = [1, 1, 1]} : vector<2x9x16xf32> to vector<2x9x9xf32>
    %186 = vector.broadcast %184 : f32 to vector<2x9x9xf32>
    %187 = arith.mulf %186, %185 : vector<2x9x9xf32>
    %188 = arith.addf %183, %187 : vector<2x9x9xf32>
    %c36 = arith.constant 36 : index
    %189 = memref.load %arg1[%c36] : memref<128xf32, #tpu.memory_space<smem>>
    %190 = vector.extract_strided_slice %168 {offsets = [0, 0, 4], sizes = [2, 9, 9], strides = [1, 1, 1]} : vector<2x9x16xf32> to vector<2x9x9xf32>
    %191 = vector.broadcast %189 : f32 to vector<2x9x9xf32>
    %192 = arith.mulf %191, %190 : vector<2x9x9xf32>
    %193 = arith.addf %188, %192 : vector<2x9x9xf32>
    %c37 = arith.constant 37 : index
    %194 = memref.load %arg1[%c37] : memref<128xf32, #tpu.memory_space<smem>>
    %195 = vector.extract_strided_slice %168 {offsets = [0, 0, 5], sizes = [2, 9, 9], strides = [1, 1, 1]} : vector<2x9x16xf32> to vector<2x9x9xf32>
    %196 = vector.broadcast %194 : f32 to vector<2x9x9xf32>
    %197 = arith.mulf %196, %195 : vector<2x9x9xf32>
    %198 = arith.addf %193, %197 : vector<2x9x9xf32>
    %c38 = arith.constant 38 : index
    %199 = memref.load %arg1[%c38] : memref<128xf32, #tpu.memory_space<smem>>
    %200 = vector.extract_strided_slice %168 {offsets = [0, 0, 6], sizes = [2, 9, 9], strides = [1, 1, 1]} : vector<2x9x16xf32> to vector<2x9x9xf32>
    %201 = vector.broadcast %199 : f32 to vector<2x9x9xf32>
    %202 = arith.mulf %201, %200 : vector<2x9x9xf32>
    %203 = arith.addf %198, %202 : vector<2x9x9xf32>
    %c39 = arith.constant 39 : index
    %204 = memref.load %arg1[%c39] : memref<128xf32, #tpu.memory_space<smem>>
    %205 = vector.extract_strided_slice %168 {offsets = [0, 0, 7], sizes = [2, 9, 9], strides = [1, 1, 1]} : vector<2x9x16xf32> to vector<2x9x9xf32>
    %206 = vector.broadcast %204 : f32 to vector<2x9x9xf32>
    %207 = arith.mulf %206, %205 : vector<2x9x9xf32>
    %208 = arith.addf %203, %207 : vector<2x9x9xf32>
    %209 = vector.extract_strided_slice %3 {offsets = [0, 5, 0], sizes = [2, 9, 16], strides = [1, 1, 1]} : vector<2x16x16xf32> to vector<2x9x16xf32>
    %c40 = arith.constant 40 : index
    %210 = memref.load %arg1[%c40] : memref<128xf32, #tpu.memory_space<smem>>
    %211 = vector.extract_strided_slice %209 {offsets = [0, 0, 0], sizes = [2, 9, 9], strides = [1, 1, 1]} : vector<2x9x16xf32> to vector<2x9x9xf32>
    %212 = vector.broadcast %210 : f32 to vector<2x9x9xf32>
    %213 = arith.mulf %212, %211 : vector<2x9x9xf32>
    %214 = arith.addf %208, %213 : vector<2x9x9xf32>
    %c41 = arith.constant 41 : index
    %215 = memref.load %arg1[%c41] : memref<128xf32, #tpu.memory_space<smem>>
    %216 = vector.extract_strided_slice %209 {offsets = [0, 0, 1], sizes = [2, 9, 9], strides = [1, 1, 1]} : vector<2x9x16xf32> to vector<2x9x9xf32>
    %217 = vector.broadcast %215 : f32 to vector<2x9x9xf32>
    %218 = arith.mulf %217, %216 : vector<2x9x9xf32>
    %219 = arith.addf %214, %218 : vector<2x9x9xf32>
    %c42 = arith.constant 42 : index
    %220 = memref.load %arg1[%c42] : memref<128xf32, #tpu.memory_space<smem>>
    %221 = vector.extract_strided_slice %209 {offsets = [0, 0, 2], sizes = [2, 9, 9], strides = [1, 1, 1]} : vector<2x9x16xf32> to vector<2x9x9xf32>
    %222 = vector.broadcast %220 : f32 to vector<2x9x9xf32>
    %223 = arith.mulf %222, %221 : vector<2x9x9xf32>
    %224 = arith.addf %219, %223 : vector<2x9x9xf32>
    %c43 = arith.constant 43 : index
    %225 = memref.load %arg1[%c43] : memref<128xf32, #tpu.memory_space<smem>>
    %226 = vector.extract_strided_slice %209 {offsets = [0, 0, 3], sizes = [2, 9, 9], strides = [1, 1, 1]} : vector<2x9x16xf32> to vector<2x9x9xf32>
    %227 = vector.broadcast %225 : f32 to vector<2x9x9xf32>
    %228 = arith.mulf %227, %226 : vector<2x9x9xf32>
    %229 = arith.addf %224, %228 : vector<2x9x9xf32>
    %c44 = arith.constant 44 : index
    %230 = memref.load %arg1[%c44] : memref<128xf32, #tpu.memory_space<smem>>
    %231 = vector.extract_strided_slice %209 {offsets = [0, 0, 4], sizes = [2, 9, 9], strides = [1, 1, 1]} : vector<2x9x16xf32> to vector<2x9x9xf32>
    %232 = vector.broadcast %230 : f32 to vector<2x9x9xf32>
    %233 = arith.mulf %232, %231 : vector<2x9x9xf32>
    %234 = arith.addf %229, %233 : vector<2x9x9xf32>
    %c45 = arith.constant 45 : index
    %235 = memref.load %arg1[%c45] : memref<128xf32, #tpu.memory_space<smem>>
    %236 = vector.extract_strided_slice %209 {offsets = [0, 0, 5], sizes = [2, 9, 9], strides = [1, 1, 1]} : vector<2x9x16xf32> to vector<2x9x9xf32>
    %237 = vector.broadcast %235 : f32 to vector<2x9x9xf32>
    %238 = arith.mulf %237, %236 : vector<2x9x9xf32>
    %239 = arith.addf %234, %238 : vector<2x9x9xf32>
    %c46 = arith.constant 46 : index
    %240 = memref.load %arg1[%c46] : memref<128xf32, #tpu.memory_space<smem>>
    %241 = vector.extract_strided_slice %209 {offsets = [0, 0, 6], sizes = [2, 9, 9], strides = [1, 1, 1]} : vector<2x9x16xf32> to vector<2x9x9xf32>
    %242 = vector.broadcast %240 : f32 to vector<2x9x9xf32>
    %243 = arith.mulf %242, %241 : vector<2x9x9xf32>
    %244 = arith.addf %239, %243 : vector<2x9x9xf32>
    %c47 = arith.constant 47 : index
    %245 = memref.load %arg1[%c47] : memref<128xf32, #tpu.memory_space<smem>>
    %246 = vector.extract_strided_slice %209 {offsets = [0, 0, 7], sizes = [2, 9, 9], strides = [1, 1, 1]} : vector<2x9x16xf32> to vector<2x9x9xf32>
    %247 = vector.broadcast %245 : f32 to vector<2x9x9xf32>
    %248 = arith.mulf %247, %246 : vector<2x9x9xf32>
    %249 = arith.addf %244, %248 : vector<2x9x9xf32>
    %250 = vector.extract_strided_slice %3 {offsets = [0, 6, 0], sizes = [2, 9, 16], strides = [1, 1, 1]} : vector<2x16x16xf32> to vector<2x9x16xf32>
    %c48 = arith.constant 48 : index
    %251 = memref.load %arg1[%c48] : memref<128xf32, #tpu.memory_space<smem>>
    %252 = vector.extract_strided_slice %250 {offsets = [0, 0, 0], sizes = [2, 9, 9], strides = [1, 1, 1]} : vector<2x9x16xf32> to vector<2x9x9xf32>
    %253 = vector.broadcast %251 : f32 to vector<2x9x9xf32>
    %254 = arith.mulf %253, %252 : vector<2x9x9xf32>
    %255 = arith.addf %249, %254 : vector<2x9x9xf32>
    %c49 = arith.constant 49 : index
    %256 = memref.load %arg1[%c49] : memref<128xf32, #tpu.memory_space<smem>>
    %257 = vector.extract_strided_slice %250 {offsets = [0, 0, 1], sizes = [2, 9, 9], strides = [1, 1, 1]} : vector<2x9x16xf32> to vector<2x9x9xf32>
    %258 = vector.broadcast %256 : f32 to vector<2x9x9xf32>
    %259 = arith.mulf %258, %257 : vector<2x9x9xf32>
    %260 = arith.addf %255, %259 : vector<2x9x9xf32>
    %c50 = arith.constant 50 : index
    %261 = memref.load %arg1[%c50] : memref<128xf32, #tpu.memory_space<smem>>
    %262 = vector.extract_strided_slice %250 {offsets = [0, 0, 2], sizes = [2, 9, 9], strides = [1, 1, 1]} : vector<2x9x16xf32> to vector<2x9x9xf32>
    %263 = vector.broadcast %261 : f32 to vector<2x9x9xf32>
    %264 = arith.mulf %263, %262 : vector<2x9x9xf32>
    %265 = arith.addf %260, %264 : vector<2x9x9xf32>
    %c51 = arith.constant 51 : index
    %266 = memref.load %arg1[%c51] : memref<128xf32, #tpu.memory_space<smem>>
    %267 = vector.extract_strided_slice %250 {offsets = [0, 0, 3], sizes = [2, 9, 9], strides = [1, 1, 1]} : vector<2x9x16xf32> to vector<2x9x9xf32>
    %268 = vector.broadcast %266 : f32 to vector<2x9x9xf32>
    %269 = arith.mulf %268, %267 : vector<2x9x9xf32>
    %270 = arith.addf %265, %269 : vector<2x9x9xf32>
    %c52 = arith.constant 52 : index
    %271 = memref.load %arg1[%c52] : memref<128xf32, #tpu.memory_space<smem>>
    %272 = vector.extract_strided_slice %250 {offsets = [0, 0, 4], sizes = [2, 9, 9], strides = [1, 1, 1]} : vector<2x9x16xf32> to vector<2x9x9xf32>
    %273 = vector.broadcast %271 : f32 to vector<2x9x9xf32>
    %274 = arith.mulf %273, %272 : vector<2x9x9xf32>
    %275 = arith.addf %270, %274 : vector<2x9x9xf32>
    %c53 = arith.constant 53 : index
    %276 = memref.load %arg1[%c53] : memref<128xf32, #tpu.memory_space<smem>>
    %277 = vector.extract_strided_slice %250 {offsets = [0, 0, 5], sizes = [2, 9, 9], strides = [1, 1, 1]} : vector<2x9x16xf32> to vector<2x9x9xf32>
    %278 = vector.broadcast %276 : f32 to vector<2x9x9xf32>
    %279 = arith.mulf %278, %277 : vector<2x9x9xf32>
    %280 = arith.addf %275, %279 : vector<2x9x9xf32>
    %c54 = arith.constant 54 : index
    %281 = memref.load %arg1[%c54] : memref<128xf32, #tpu.memory_space<smem>>
    %282 = vector.extract_strided_slice %250 {offsets = [0, 0, 6], sizes = [2, 9, 9], strides = [1, 1, 1]} : vector<2x9x16xf32> to vector<2x9x9xf32>
    %283 = vector.broadcast %281 : f32 to vector<2x9x9xf32>
    %284 = arith.mulf %283, %282 : vector<2x9x9xf32>
    %285 = arith.addf %280, %284 : vector<2x9x9xf32>
    %c55 = arith.constant 55 : index
    %286 = memref.load %arg1[%c55] : memref<128xf32, #tpu.memory_space<smem>>
    %287 = vector.extract_strided_slice %250 {offsets = [0, 0, 7], sizes = [2, 9, 9], strides = [1, 1, 1]} : vector<2x9x16xf32> to vector<2x9x9xf32>
    %288 = vector.broadcast %286 : f32 to vector<2x9x9xf32>
    %289 = arith.mulf %288, %287 : vector<2x9x9xf32>
    %290 = arith.addf %285, %289 : vector<2x9x9xf32>
    %291 = vector.extract_strided_slice %3 {offsets = [0, 7, 0], sizes = [2, 9, 16], strides = [1, 1, 1]} : vector<2x16x16xf32> to vector<2x9x16xf32>
    %c56 = arith.constant 56 : index
    %292 = memref.load %arg1[%c56] : memref<128xf32, #tpu.memory_space<smem>>
    %293 = vector.extract_strided_slice %291 {offsets = [0, 0, 0], sizes = [2, 9, 9], strides = [1, 1, 1]} : vector<2x9x16xf32> to vector<2x9x9xf32>
    %294 = vector.broadcast %292 : f32 to vector<2x9x9xf32>
    %295 = arith.mulf %294, %293 : vector<2x9x9xf32>
    %296 = arith.addf %290, %295 : vector<2x9x9xf32>
    %c57 = arith.constant 57 : index
    %297 = memref.load %arg1[%c57] : memref<128xf32, #tpu.memory_space<smem>>
    %298 = vector.extract_strided_slice %291 {offsets = [0, 0, 1], sizes = [2, 9, 9], strides = [1, 1, 1]} : vector<2x9x16xf32> to vector<2x9x9xf32>
    %299 = vector.broadcast %297 : f32 to vector<2x9x9xf32>
    %300 = arith.mulf %299, %298 : vector<2x9x9xf32>
    %301 = arith.addf %296, %300 : vector<2x9x9xf32>
    %c58 = arith.constant 58 : index
    %302 = memref.load %arg1[%c58] : memref<128xf32, #tpu.memory_space<smem>>
    %303 = vector.extract_strided_slice %291 {offsets = [0, 0, 2], sizes = [2, 9, 9], strides = [1, 1, 1]} : vector<2x9x16xf32> to vector<2x9x9xf32>
    %304 = vector.broadcast %302 : f32 to vector<2x9x9xf32>
    %305 = arith.mulf %304, %303 : vector<2x9x9xf32>
    %306 = arith.addf %301, %305 : vector<2x9x9xf32>
    %c59 = arith.constant 59 : index
    %307 = memref.load %arg1[%c59] : memref<128xf32, #tpu.memory_space<smem>>
    %308 = vector.extract_strided_slice %291 {offsets = [0, 0, 3], sizes = [2, 9, 9], strides = [1, 1, 1]} : vector<2x9x16xf32> to vector<2x9x9xf32>
    %309 = vector.broadcast %307 : f32 to vector<2x9x9xf32>
    %310 = arith.mulf %309, %308 : vector<2x9x9xf32>
    %311 = arith.addf %306, %310 : vector<2x9x9xf32>
    %c60 = arith.constant 60 : index
    %312 = memref.load %arg1[%c60] : memref<128xf32, #tpu.memory_space<smem>>
    %313 = vector.extract_strided_slice %291 {offsets = [0, 0, 4], sizes = [2, 9, 9], strides = [1, 1, 1]} : vector<2x9x16xf32> to vector<2x9x9xf32>
    %314 = vector.broadcast %312 : f32 to vector<2x9x9xf32>
    %315 = arith.mulf %314, %313 : vector<2x9x9xf32>
    %316 = arith.addf %311, %315 : vector<2x9x9xf32>
    %c61 = arith.constant 61 : index
    %317 = memref.load %arg1[%c61] : memref<128xf32, #tpu.memory_space<smem>>
    %318 = vector.extract_strided_slice %291 {offsets = [0, 0, 5], sizes = [2, 9, 9], strides = [1, 1, 1]} : vector<2x9x16xf32> to vector<2x9x9xf32>
    %319 = vector.broadcast %317 : f32 to vector<2x9x9xf32>
    %320 = arith.mulf %319, %318 : vector<2x9x9xf32>
    %321 = arith.addf %316, %320 : vector<2x9x9xf32>
    %c62 = arith.constant 62 : index
    %322 = memref.load %arg1[%c62] : memref<128xf32, #tpu.memory_space<smem>>
    %323 = vector.extract_strided_slice %291 {offsets = [0, 0, 6], sizes = [2, 9, 9], strides = [1, 1, 1]} : vector<2x9x16xf32> to vector<2x9x9xf32>
    %324 = vector.broadcast %322 : f32 to vector<2x9x9xf32>
    %325 = arith.mulf %324, %323 : vector<2x9x9xf32>
    %326 = arith.addf %321, %325 : vector<2x9x9xf32>
    %c63 = arith.constant 63 : index
    %327 = memref.load %arg1[%c63] : memref<128xf32, #tpu.memory_space<smem>>
    %328 = vector.extract_strided_slice %291 {offsets = [0, 0, 7], sizes = [2, 9, 9], strides = [1, 1, 1]} : vector<2x9x16xf32> to vector<2x9x9xf32>
    %329 = vector.broadcast %327 : f32 to vector<2x9x9xf32>
    %330 = arith.mulf %329, %328 : vector<2x9x9xf32>
    %331 = arith.addf %326, %330 : vector<2x9x9xf32>
    %332 = vector.extract_strided_slice %0 {offsets = [0, 1, 0, 0], sizes = [2, 1, 16, 16], strides = [1, 1, 1, 1]} : vector<2x2x16x16xf32> to vector<2x1x16x16xf32>
    %333 = vector.shape_cast %332 : vector<2x1x16x16xf32> to vector<2x16x16xf32>
    %334 = vector.extract_strided_slice %333 {offsets = [0, 0, 0], sizes = [2, 9, 16], strides = [1, 1, 1]} : vector<2x16x16xf32> to vector<2x9x16xf32>
    %c64 = arith.constant 64 : index
    %335 = memref.load %arg1[%c64] : memref<128xf32, #tpu.memory_space<smem>>
    %336 = vector.extract_strided_slice %334 {offsets = [0, 0, 0], sizes = [2, 9, 9], strides = [1, 1, 1]} : vector<2x9x16xf32> to vector<2x9x9xf32>
    %337 = vector.broadcast %335 : f32 to vector<2x9x9xf32>
    %338 = arith.mulf %337, %336 : vector<2x9x9xf32>
    %339 = arith.addf %331, %338 : vector<2x9x9xf32>
    %c65 = arith.constant 65 : index
    %340 = memref.load %arg1[%c65] : memref<128xf32, #tpu.memory_space<smem>>
    %341 = vector.extract_strided_slice %334 {offsets = [0, 0, 1], sizes = [2, 9, 9], strides = [1, 1, 1]} : vector<2x9x16xf32> to vector<2x9x9xf32>
    %342 = vector.broadcast %340 : f32 to vector<2x9x9xf32>
    %343 = arith.mulf %342, %341 : vector<2x9x9xf32>
    %344 = arith.addf %339, %343 : vector<2x9x9xf32>
    %c66 = arith.constant 66 : index
    %345 = memref.load %arg1[%c66] : memref<128xf32, #tpu.memory_space<smem>>
    %346 = vector.extract_strided_slice %334 {offsets = [0, 0, 2], sizes = [2, 9, 9], strides = [1, 1, 1]} : vector<2x9x16xf32> to vector<2x9x9xf32>
    %347 = vector.broadcast %345 : f32 to vector<2x9x9xf32>
    %348 = arith.mulf %347, %346 : vector<2x9x9xf32>
    %349 = arith.addf %344, %348 : vector<2x9x9xf32>
    %c67 = arith.constant 67 : index
    %350 = memref.load %arg1[%c67] : memref<128xf32, #tpu.memory_space<smem>>
    %351 = vector.extract_strided_slice %334 {offsets = [0, 0, 3], sizes = [2, 9, 9], strides = [1, 1, 1]} : vector<2x9x16xf32> to vector<2x9x9xf32>
    %352 = vector.broadcast %350 : f32 to vector<2x9x9xf32>
    %353 = arith.mulf %352, %351 : vector<2x9x9xf32>
    %354 = arith.addf %349, %353 : vector<2x9x9xf32>
    %c68 = arith.constant 68 : index
    %355 = memref.load %arg1[%c68] : memref<128xf32, #tpu.memory_space<smem>>
    %356 = vector.extract_strided_slice %334 {offsets = [0, 0, 4], sizes = [2, 9, 9], strides = [1, 1, 1]} : vector<2x9x16xf32> to vector<2x9x9xf32>
    %357 = vector.broadcast %355 : f32 to vector<2x9x9xf32>
    %358 = arith.mulf %357, %356 : vector<2x9x9xf32>
    %359 = arith.addf %354, %358 : vector<2x9x9xf32>
    %c69 = arith.constant 69 : index
    %360 = memref.load %arg1[%c69] : memref<128xf32, #tpu.memory_space<smem>>
    %361 = vector.extract_strided_slice %334 {offsets = [0, 0, 5], sizes = [2, 9, 9], strides = [1, 1, 1]} : vector<2x9x16xf32> to vector<2x9x9xf32>
    %362 = vector.broadcast %360 : f32 to vector<2x9x9xf32>
    %363 = arith.mulf %362, %361 : vector<2x9x9xf32>
    %364 = arith.addf %359, %363 : vector<2x9x9xf32>
    %c70 = arith.constant 70 : index
    %365 = memref.load %arg1[%c70] : memref<128xf32, #tpu.memory_space<smem>>
    %366 = vector.extract_strided_slice %334 {offsets = [0, 0, 6], sizes = [2, 9, 9], strides = [1, 1, 1]} : vector<2x9x16xf32> to vector<2x9x9xf32>
    %367 = vector.broadcast %365 : f32 to vector<2x9x9xf32>
    %368 = arith.mulf %367, %366 : vector<2x9x9xf32>
    %369 = arith.addf %364, %368 : vector<2x9x9xf32>
    %c71 = arith.constant 71 : index
    %370 = memref.load %arg1[%c71] : memref<128xf32, #tpu.memory_space<smem>>
    %371 = vector.extract_strided_slice %334 {offsets = [0, 0, 7], sizes = [2, 9, 9], strides = [1, 1, 1]} : vector<2x9x16xf32> to vector<2x9x9xf32>
    %372 = vector.broadcast %370 : f32 to vector<2x9x9xf32>
    %373 = arith.mulf %372, %371 : vector<2x9x9xf32>
    %374 = arith.addf %369, %373 : vector<2x9x9xf32>
    %375 = vector.extract_strided_slice %333 {offsets = [0, 1, 0], sizes = [2, 9, 16], strides = [1, 1, 1]} : vector<2x16x16xf32> to vector<2x9x16xf32>
    %c72 = arith.constant 72 : index
    %376 = memref.load %arg1[%c72] : memref<128xf32, #tpu.memory_space<smem>>
    %377 = vector.extract_strided_slice %375 {offsets = [0, 0, 0], sizes = [2, 9, 9], strides = [1, 1, 1]} : vector<2x9x16xf32> to vector<2x9x9xf32>
    %378 = vector.broadcast %376 : f32 to vector<2x9x9xf32>
    %379 = arith.mulf %378, %377 : vector<2x9x9xf32>
    %380 = arith.addf %374, %379 : vector<2x9x9xf32>
    %c73 = arith.constant 73 : index
    %381 = memref.load %arg1[%c73] : memref<128xf32, #tpu.memory_space<smem>>
    %382 = vector.extract_strided_slice %375 {offsets = [0, 0, 1], sizes = [2, 9, 9], strides = [1, 1, 1]} : vector<2x9x16xf32> to vector<2x9x9xf32>
    %383 = vector.broadcast %381 : f32 to vector<2x9x9xf32>
    %384 = arith.mulf %383, %382 : vector<2x9x9xf32>
    %385 = arith.addf %380, %384 : vector<2x9x9xf32>
    %c74 = arith.constant 74 : index
    %386 = memref.load %arg1[%c74] : memref<128xf32, #tpu.memory_space<smem>>
    %387 = vector.extract_strided_slice %375 {offsets = [0, 0, 2], sizes = [2, 9, 9], strides = [1, 1, 1]} : vector<2x9x16xf32> to vector<2x9x9xf32>
    %388 = vector.broadcast %386 : f32 to vector<2x9x9xf32>
    %389 = arith.mulf %388, %387 : vector<2x9x9xf32>
    %390 = arith.addf %385, %389 : vector<2x9x9xf32>
    %c75 = arith.constant 75 : index
    %391 = memref.load %arg1[%c75] : memref<128xf32, #tpu.memory_space<smem>>
    %392 = vector.extract_strided_slice %375 {offsets = [0, 0, 3], sizes = [2, 9, 9], strides = [1, 1, 1]} : vector<2x9x16xf32> to vector<2x9x9xf32>
    %393 = vector.broadcast %391 : f32 to vector<2x9x9xf32>
    %394 = arith.mulf %393, %392 : vector<2x9x9xf32>
    %395 = arith.addf %390, %394 : vector<2x9x9xf32>
    %c76 = arith.constant 76 : index
    %396 = memref.load %arg1[%c76] : memref<128xf32, #tpu.memory_space<smem>>
    %397 = vector.extract_strided_slice %375 {offsets = [0, 0, 4], sizes = [2, 9, 9], strides = [1, 1, 1]} : vector<2x9x16xf32> to vector<2x9x9xf32>
    %398 = vector.broadcast %396 : f32 to vector<2x9x9xf32>
    %399 = arith.mulf %398, %397 : vector<2x9x9xf32>
    %400 = arith.addf %395, %399 : vector<2x9x9xf32>
    %c77 = arith.constant 77 : index
    %401 = memref.load %arg1[%c77] : memref<128xf32, #tpu.memory_space<smem>>
    %402 = vector.extract_strided_slice %375 {offsets = [0, 0, 5], sizes = [2, 9, 9], strides = [1, 1, 1]} : vector<2x9x16xf32> to vector<2x9x9xf32>
    %403 = vector.broadcast %401 : f32 to vector<2x9x9xf32>
    %404 = arith.mulf %403, %402 : vector<2x9x9xf32>
    %405 = arith.addf %400, %404 : vector<2x9x9xf32>
    %c78 = arith.constant 78 : index
    %406 = memref.load %arg1[%c78] : memref<128xf32, #tpu.memory_space<smem>>
    %407 = vector.extract_strided_slice %375 {offsets = [0, 0, 6], sizes = [2, 9, 9], strides = [1, 1, 1]} : vector<2x9x16xf32> to vector<2x9x9xf32>
    %408 = vector.broadcast %406 : f32 to vector<2x9x9xf32>
    %409 = arith.mulf %408, %407 : vector<2x9x9xf32>
    %410 = arith.addf %405, %409 : vector<2x9x9xf32>
    %c79 = arith.constant 79 : index
    %411 = memref.load %arg1[%c79] : memref<128xf32, #tpu.memory_space<smem>>
    %412 = vector.extract_strided_slice %375 {offsets = [0, 0, 7], sizes = [2, 9, 9], strides = [1, 1, 1]} : vector<2x9x16xf32> to vector<2x9x9xf32>
    %413 = vector.broadcast %411 : f32 to vector<2x9x9xf32>
    %414 = arith.mulf %413, %412 : vector<2x9x9xf32>
    %415 = arith.addf %410, %414 : vector<2x9x9xf32>
    %416 = vector.extract_strided_slice %333 {offsets = [0, 2, 0], sizes = [2, 9, 16], strides = [1, 1, 1]} : vector<2x16x16xf32> to vector<2x9x16xf32>
    %c80 = arith.constant 80 : index
    %417 = memref.load %arg1[%c80] : memref<128xf32, #tpu.memory_space<smem>>
    %418 = vector.extract_strided_slice %416 {offsets = [0, 0, 0], sizes = [2, 9, 9], strides = [1, 1, 1]} : vector<2x9x16xf32> to vector<2x9x9xf32>
    %419 = vector.broadcast %417 : f32 to vector<2x9x9xf32>
    %420 = arith.mulf %419, %418 : vector<2x9x9xf32>
    %421 = arith.addf %415, %420 : vector<2x9x9xf32>
    %c81 = arith.constant 81 : index
    %422 = memref.load %arg1[%c81] : memref<128xf32, #tpu.memory_space<smem>>
    %423 = vector.extract_strided_slice %416 {offsets = [0, 0, 1], sizes = [2, 9, 9], strides = [1, 1, 1]} : vector<2x9x16xf32> to vector<2x9x9xf32>
    %424 = vector.broadcast %422 : f32 to vector<2x9x9xf32>
    %425 = arith.mulf %424, %423 : vector<2x9x9xf32>
    %426 = arith.addf %421, %425 : vector<2x9x9xf32>
    %c82 = arith.constant 82 : index
    %427 = memref.load %arg1[%c82] : memref<128xf32, #tpu.memory_space<smem>>
    %428 = vector.extract_strided_slice %416 {offsets = [0, 0, 2], sizes = [2, 9, 9], strides = [1, 1, 1]} : vector<2x9x16xf32> to vector<2x9x9xf32>
    %429 = vector.broadcast %427 : f32 to vector<2x9x9xf32>
    %430 = arith.mulf %429, %428 : vector<2x9x9xf32>
    %431 = arith.addf %426, %430 : vector<2x9x9xf32>
    %c83 = arith.constant 83 : index
    %432 = memref.load %arg1[%c83] : memref<128xf32, #tpu.memory_space<smem>>
    %433 = vector.extract_strided_slice %416 {offsets = [0, 0, 3], sizes = [2, 9, 9], strides = [1, 1, 1]} : vector<2x9x16xf32> to vector<2x9x9xf32>
    %434 = vector.broadcast %432 : f32 to vector<2x9x9xf32>
    %435 = arith.mulf %434, %433 : vector<2x9x9xf32>
    %436 = arith.addf %431, %435 : vector<2x9x9xf32>
    %c84 = arith.constant 84 : index
    %437 = memref.load %arg1[%c84] : memref<128xf32, #tpu.memory_space<smem>>
    %438 = vector.extract_strided_slice %416 {offsets = [0, 0, 4], sizes = [2, 9, 9], strides = [1, 1, 1]} : vector<2x9x16xf32> to vector<2x9x9xf32>
    %439 = vector.broadcast %437 : f32 to vector<2x9x9xf32>
    %440 = arith.mulf %439, %438 : vector<2x9x9xf32>
    %441 = arith.addf %436, %440 : vector<2x9x9xf32>
    %c85 = arith.constant 85 : index
    %442 = memref.load %arg1[%c85] : memref<128xf32, #tpu.memory_space<smem>>
    %443 = vector.extract_strided_slice %416 {offsets = [0, 0, 5], sizes = [2, 9, 9], strides = [1, 1, 1]} : vector<2x9x16xf32> to vector<2x9x9xf32>
    %444 = vector.broadcast %442 : f32 to vector<2x9x9xf32>
    %445 = arith.mulf %444, %443 : vector<2x9x9xf32>
    %446 = arith.addf %441, %445 : vector<2x9x9xf32>
    %c86 = arith.constant 86 : index
    %447 = memref.load %arg1[%c86] : memref<128xf32, #tpu.memory_space<smem>>
    %448 = vector.extract_strided_slice %416 {offsets = [0, 0, 6], sizes = [2, 9, 9], strides = [1, 1, 1]} : vector<2x9x16xf32> to vector<2x9x9xf32>
    %449 = vector.broadcast %447 : f32 to vector<2x9x9xf32>
    %450 = arith.mulf %449, %448 : vector<2x9x9xf32>
    %451 = arith.addf %446, %450 : vector<2x9x9xf32>
    %c87 = arith.constant 87 : index
    %452 = memref.load %arg1[%c87] : memref<128xf32, #tpu.memory_space<smem>>
    %453 = vector.extract_strided_slice %416 {offsets = [0, 0, 7], sizes = [2, 9, 9], strides = [1, 1, 1]} : vector<2x9x16xf32> to vector<2x9x9xf32>
    %454 = vector.broadcast %452 : f32 to vector<2x9x9xf32>
    %455 = arith.mulf %454, %453 : vector<2x9x9xf32>
    %456 = arith.addf %451, %455 : vector<2x9x9xf32>
    %457 = vector.extract_strided_slice %333 {offsets = [0, 3, 0], sizes = [2, 9, 16], strides = [1, 1, 1]} : vector<2x16x16xf32> to vector<2x9x16xf32>
    %c88 = arith.constant 88 : index
    %458 = memref.load %arg1[%c88] : memref<128xf32, #tpu.memory_space<smem>>
    %459 = vector.extract_strided_slice %457 {offsets = [0, 0, 0], sizes = [2, 9, 9], strides = [1, 1, 1]} : vector<2x9x16xf32> to vector<2x9x9xf32>
    %460 = vector.broadcast %458 : f32 to vector<2x9x9xf32>
    %461 = arith.mulf %460, %459 : vector<2x9x9xf32>
    %462 = arith.addf %456, %461 : vector<2x9x9xf32>
    %c89 = arith.constant 89 : index
    %463 = memref.load %arg1[%c89] : memref<128xf32, #tpu.memory_space<smem>>
    %464 = vector.extract_strided_slice %457 {offsets = [0, 0, 1], sizes = [2, 9, 9], strides = [1, 1, 1]} : vector<2x9x16xf32> to vector<2x9x9xf32>
    %465 = vector.broadcast %463 : f32 to vector<2x9x9xf32>
    %466 = arith.mulf %465, %464 : vector<2x9x9xf32>
    %467 = arith.addf %462, %466 : vector<2x9x9xf32>
    %c90 = arith.constant 90 : index
    %468 = memref.load %arg1[%c90] : memref<128xf32, #tpu.memory_space<smem>>
    %469 = vector.extract_strided_slice %457 {offsets = [0, 0, 2], sizes = [2, 9, 9], strides = [1, 1, 1]} : vector<2x9x16xf32> to vector<2x9x9xf32>
    %470 = vector.broadcast %468 : f32 to vector<2x9x9xf32>
    %471 = arith.mulf %470, %469 : vector<2x9x9xf32>
    %472 = arith.addf %467, %471 : vector<2x9x9xf32>
    %c91 = arith.constant 91 : index
    %473 = memref.load %arg1[%c91] : memref<128xf32, #tpu.memory_space<smem>>
    %474 = vector.extract_strided_slice %457 {offsets = [0, 0, 3], sizes = [2, 9, 9], strides = [1, 1, 1]} : vector<2x9x16xf32> to vector<2x9x9xf32>
    %475 = vector.broadcast %473 : f32 to vector<2x9x9xf32>
    %476 = arith.mulf %475, %474 : vector<2x9x9xf32>
    %477 = arith.addf %472, %476 : vector<2x9x9xf32>
    %c92 = arith.constant 92 : index
    %478 = memref.load %arg1[%c92] : memref<128xf32, #tpu.memory_space<smem>>
    %479 = vector.extract_strided_slice %457 {offsets = [0, 0, 4], sizes = [2, 9, 9], strides = [1, 1, 1]} : vector<2x9x16xf32> to vector<2x9x9xf32>
    %480 = vector.broadcast %478 : f32 to vector<2x9x9xf32>
    %481 = arith.mulf %480, %479 : vector<2x9x9xf32>
    %482 = arith.addf %477, %481 : vector<2x9x9xf32>
    %c93 = arith.constant 93 : index
    %483 = memref.load %arg1[%c93] : memref<128xf32, #tpu.memory_space<smem>>
    %484 = vector.extract_strided_slice %457 {offsets = [0, 0, 5], sizes = [2, 9, 9], strides = [1, 1, 1]} : vector<2x9x16xf32> to vector<2x9x9xf32>
    %485 = vector.broadcast %483 : f32 to vector<2x9x9xf32>
    %486 = arith.mulf %485, %484 : vector<2x9x9xf32>
    %487 = arith.addf %482, %486 : vector<2x9x9xf32>
    %c94 = arith.constant 94 : index
    %488 = memref.load %arg1[%c94] : memref<128xf32, #tpu.memory_space<smem>>
    %489 = vector.extract_strided_slice %457 {offsets = [0, 0, 6], sizes = [2, 9, 9], strides = [1, 1, 1]} : vector<2x9x16xf32> to vector<2x9x9xf32>
    %490 = vector.broadcast %488 : f32 to vector<2x9x9xf32>
    %491 = arith.mulf %490, %489 : vector<2x9x9xf32>
    %492 = arith.addf %487, %491 : vector<2x9x9xf32>
    %c95 = arith.constant 95 : index
    %493 = memref.load %arg1[%c95] : memref<128xf32, #tpu.memory_space<smem>>
    %494 = vector.extract_strided_slice %457 {offsets = [0, 0, 7], sizes = [2, 9, 9], strides = [1, 1, 1]} : vector<2x9x16xf32> to vector<2x9x9xf32>
    %495 = vector.broadcast %493 : f32 to vector<2x9x9xf32>
    %496 = arith.mulf %495, %494 : vector<2x9x9xf32>
    %497 = arith.addf %492, %496 : vector<2x9x9xf32>
    %498 = vector.extract_strided_slice %333 {offsets = [0, 4, 0], sizes = [2, 9, 16], strides = [1, 1, 1]} : vector<2x16x16xf32> to vector<2x9x16xf32>
    %c96 = arith.constant 96 : index
    %499 = memref.load %arg1[%c96] : memref<128xf32, #tpu.memory_space<smem>>
    %500 = vector.extract_strided_slice %498 {offsets = [0, 0, 0], sizes = [2, 9, 9], strides = [1, 1, 1]} : vector<2x9x16xf32> to vector<2x9x9xf32>
    %501 = vector.broadcast %499 : f32 to vector<2x9x9xf32>
    %502 = arith.mulf %501, %500 : vector<2x9x9xf32>
    %503 = arith.addf %497, %502 : vector<2x9x9xf32>
    %c97 = arith.constant 97 : index
    %504 = memref.load %arg1[%c97] : memref<128xf32, #tpu.memory_space<smem>>
    %505 = vector.extract_strided_slice %498 {offsets = [0, 0, 1], sizes = [2, 9, 9], strides = [1, 1, 1]} : vector<2x9x16xf32> to vector<2x9x9xf32>
    %506 = vector.broadcast %504 : f32 to vector<2x9x9xf32>
    %507 = arith.mulf %506, %505 : vector<2x9x9xf32>
    %508 = arith.addf %503, %507 : vector<2x9x9xf32>
    %c98 = arith.constant 98 : index
    %509 = memref.load %arg1[%c98] : memref<128xf32, #tpu.memory_space<smem>>
    %510 = vector.extract_strided_slice %498 {offsets = [0, 0, 2], sizes = [2, 9, 9], strides = [1, 1, 1]} : vector<2x9x16xf32> to vector<2x9x9xf32>
    %511 = vector.broadcast %509 : f32 to vector<2x9x9xf32>
    %512 = arith.mulf %511, %510 : vector<2x9x9xf32>
    %513 = arith.addf %508, %512 : vector<2x9x9xf32>
    %c99 = arith.constant 99 : index
    %514 = memref.load %arg1[%c99] : memref<128xf32, #tpu.memory_space<smem>>
    %515 = vector.extract_strided_slice %498 {offsets = [0, 0, 3], sizes = [2, 9, 9], strides = [1, 1, 1]} : vector<2x9x16xf32> to vector<2x9x9xf32>
    %516 = vector.broadcast %514 : f32 to vector<2x9x9xf32>
    %517 = arith.mulf %516, %515 : vector<2x9x9xf32>
    %518 = arith.addf %513, %517 : vector<2x9x9xf32>
    %c100 = arith.constant 100 : index
    %519 = memref.load %arg1[%c100] : memref<128xf32, #tpu.memory_space<smem>>
    %520 = vector.extract_strided_slice %498 {offsets = [0, 0, 4], sizes = [2, 9, 9], strides = [1, 1, 1]} : vector<2x9x16xf32> to vector<2x9x9xf32>
    %521 = vector.broadcast %519 : f32 to vector<2x9x9xf32>
    %522 = arith.mulf %521, %520 : vector<2x9x9xf32>
    %523 = arith.addf %518, %522 : vector<2x9x9xf32>
    %c101 = arith.constant 101 : index
    %524 = memref.load %arg1[%c101] : memref<128xf32, #tpu.memory_space<smem>>
    %525 = vector.extract_strided_slice %498 {offsets = [0, 0, 5], sizes = [2, 9, 9], strides = [1, 1, 1]} : vector<2x9x16xf32> to vector<2x9x9xf32>
    %526 = vector.broadcast %524 : f32 to vector<2x9x9xf32>
    %527 = arith.mulf %526, %525 : vector<2x9x9xf32>
    %528 = arith.addf %523, %527 : vector<2x9x9xf32>
    %c102 = arith.constant 102 : index
    %529 = memref.load %arg1[%c102] : memref<128xf32, #tpu.memory_space<smem>>
    %530 = vector.extract_strided_slice %498 {offsets = [0, 0, 6], sizes = [2, 9, 9], strides = [1, 1, 1]} : vector<2x9x16xf32> to vector<2x9x9xf32>
    %531 = vector.broadcast %529 : f32 to vector<2x9x9xf32>
    %532 = arith.mulf %531, %530 : vector<2x9x9xf32>
    %533 = arith.addf %528, %532 : vector<2x9x9xf32>
    %c103 = arith.constant 103 : index
    %534 = memref.load %arg1[%c103] : memref<128xf32, #tpu.memory_space<smem>>
    %535 = vector.extract_strided_slice %498 {offsets = [0, 0, 7], sizes = [2, 9, 9], strides = [1, 1, 1]} : vector<2x9x16xf32> to vector<2x9x9xf32>
    %536 = vector.broadcast %534 : f32 to vector<2x9x9xf32>
    %537 = arith.mulf %536, %535 : vector<2x9x9xf32>
    %538 = arith.addf %533, %537 : vector<2x9x9xf32>
    %539 = vector.extract_strided_slice %333 {offsets = [0, 5, 0], sizes = [2, 9, 16], strides = [1, 1, 1]} : vector<2x16x16xf32> to vector<2x9x16xf32>
    %c104 = arith.constant 104 : index
    %540 = memref.load %arg1[%c104] : memref<128xf32, #tpu.memory_space<smem>>
    %541 = vector.extract_strided_slice %539 {offsets = [0, 0, 0], sizes = [2, 9, 9], strides = [1, 1, 1]} : vector<2x9x16xf32> to vector<2x9x9xf32>
    %542 = vector.broadcast %540 : f32 to vector<2x9x9xf32>
    %543 = arith.mulf %542, %541 : vector<2x9x9xf32>
    %544 = arith.addf %538, %543 : vector<2x9x9xf32>
    %c105 = arith.constant 105 : index
    %545 = memref.load %arg1[%c105] : memref<128xf32, #tpu.memory_space<smem>>
    %546 = vector.extract_strided_slice %539 {offsets = [0, 0, 1], sizes = [2, 9, 9], strides = [1, 1, 1]} : vector<2x9x16xf32> to vector<2x9x9xf32>
    %547 = vector.broadcast %545 : f32 to vector<2x9x9xf32>
    %548 = arith.mulf %547, %546 : vector<2x9x9xf32>
    %549 = arith.addf %544, %548 : vector<2x9x9xf32>
    %c106 = arith.constant 106 : index
    %550 = memref.load %arg1[%c106] : memref<128xf32, #tpu.memory_space<smem>>
    %551 = vector.extract_strided_slice %539 {offsets = [0, 0, 2], sizes = [2, 9, 9], strides = [1, 1, 1]} : vector<2x9x16xf32> to vector<2x9x9xf32>
    %552 = vector.broadcast %550 : f32 to vector<2x9x9xf32>
    %553 = arith.mulf %552, %551 : vector<2x9x9xf32>
    %554 = arith.addf %549, %553 : vector<2x9x9xf32>
    %c107 = arith.constant 107 : index
    %555 = memref.load %arg1[%c107] : memref<128xf32, #tpu.memory_space<smem>>
    %556 = vector.extract_strided_slice %539 {offsets = [0, 0, 3], sizes = [2, 9, 9], strides = [1, 1, 1]} : vector<2x9x16xf32> to vector<2x9x9xf32>
    %557 = vector.broadcast %555 : f32 to vector<2x9x9xf32>
    %558 = arith.mulf %557, %556 : vector<2x9x9xf32>
    %559 = arith.addf %554, %558 : vector<2x9x9xf32>
    %c108 = arith.constant 108 : index
    %560 = memref.load %arg1[%c108] : memref<128xf32, #tpu.memory_space<smem>>
    %561 = vector.extract_strided_slice %539 {offsets = [0, 0, 4], sizes = [2, 9, 9], strides = [1, 1, 1]} : vector<2x9x16xf32> to vector<2x9x9xf32>
    %562 = vector.broadcast %560 : f32 to vector<2x9x9xf32>
    %563 = arith.mulf %562, %561 : vector<2x9x9xf32>
    %564 = arith.addf %559, %563 : vector<2x9x9xf32>
    %c109 = arith.constant 109 : index
    %565 = memref.load %arg1[%c109] : memref<128xf32, #tpu.memory_space<smem>>
    %566 = vector.extract_strided_slice %539 {offsets = [0, 0, 5], sizes = [2, 9, 9], strides = [1, 1, 1]} : vector<2x9x16xf32> to vector<2x9x9xf32>
    %567 = vector.broadcast %565 : f32 to vector<2x9x9xf32>
    %568 = arith.mulf %567, %566 : vector<2x9x9xf32>
    %569 = arith.addf %564, %568 : vector<2x9x9xf32>
    %c110 = arith.constant 110 : index
    %570 = memref.load %arg1[%c110] : memref<128xf32, #tpu.memory_space<smem>>
    %571 = vector.extract_strided_slice %539 {offsets = [0, 0, 6], sizes = [2, 9, 9], strides = [1, 1, 1]} : vector<2x9x16xf32> to vector<2x9x9xf32>
    %572 = vector.broadcast %570 : f32 to vector<2x9x9xf32>
    %573 = arith.mulf %572, %571 : vector<2x9x9xf32>
    %574 = arith.addf %569, %573 : vector<2x9x9xf32>
    %c111 = arith.constant 111 : index
    %575 = memref.load %arg1[%c111] : memref<128xf32, #tpu.memory_space<smem>>
    %576 = vector.extract_strided_slice %539 {offsets = [0, 0, 7], sizes = [2, 9, 9], strides = [1, 1, 1]} : vector<2x9x16xf32> to vector<2x9x9xf32>
    %577 = vector.broadcast %575 : f32 to vector<2x9x9xf32>
    %578 = arith.mulf %577, %576 : vector<2x9x9xf32>
    %579 = arith.addf %574, %578 : vector<2x9x9xf32>
    %580 = vector.extract_strided_slice %333 {offsets = [0, 6, 0], sizes = [2, 9, 16], strides = [1, 1, 1]} : vector<2x16x16xf32> to vector<2x9x16xf32>
    %c112 = arith.constant 112 : index
    %581 = memref.load %arg1[%c112] : memref<128xf32, #tpu.memory_space<smem>>
    %582 = vector.extract_strided_slice %580 {offsets = [0, 0, 0], sizes = [2, 9, 9], strides = [1, 1, 1]} : vector<2x9x16xf32> to vector<2x9x9xf32>
    %583 = vector.broadcast %581 : f32 to vector<2x9x9xf32>
    %584 = arith.mulf %583, %582 : vector<2x9x9xf32>
    %585 = arith.addf %579, %584 : vector<2x9x9xf32>
    %c113 = arith.constant 113 : index
    %586 = memref.load %arg1[%c113] : memref<128xf32, #tpu.memory_space<smem>>
    %587 = vector.extract_strided_slice %580 {offsets = [0, 0, 1], sizes = [2, 9, 9], strides = [1, 1, 1]} : vector<2x9x16xf32> to vector<2x9x9xf32>
    %588 = vector.broadcast %586 : f32 to vector<2x9x9xf32>
    %589 = arith.mulf %588, %587 : vector<2x9x9xf32>
    %590 = arith.addf %585, %589 : vector<2x9x9xf32>
    %c114 = arith.constant 114 : index
    %591 = memref.load %arg1[%c114] : memref<128xf32, #tpu.memory_space<smem>>
    %592 = vector.extract_strided_slice %580 {offsets = [0, 0, 2], sizes = [2, 9, 9], strides = [1, 1, 1]} : vector<2x9x16xf32> to vector<2x9x9xf32>
    %593 = vector.broadcast %591 : f32 to vector<2x9x9xf32>
    %594 = arith.mulf %593, %592 : vector<2x9x9xf32>
    %595 = arith.addf %590, %594 : vector<2x9x9xf32>
    %c115 = arith.constant 115 : index
    %596 = memref.load %arg1[%c115] : memref<128xf32, #tpu.memory_space<smem>>
    %597 = vector.extract_strided_slice %580 {offsets = [0, 0, 3], sizes = [2, 9, 9], strides = [1, 1, 1]} : vector<2x9x16xf32> to vector<2x9x9xf32>
    %598 = vector.broadcast %596 : f32 to vector<2x9x9xf32>
    %599 = arith.mulf %598, %597 : vector<2x9x9xf32>
    %600 = arith.addf %595, %599 : vector<2x9x9xf32>
    %c116 = arith.constant 116 : index
    %601 = memref.load %arg1[%c116] : memref<128xf32, #tpu.memory_space<smem>>
    %602 = vector.extract_strided_slice %580 {offsets = [0, 0, 4], sizes = [2, 9, 9], strides = [1, 1, 1]} : vector<2x9x16xf32> to vector<2x9x9xf32>
    %603 = vector.broadcast %601 : f32 to vector<2x9x9xf32>
    %604 = arith.mulf %603, %602 : vector<2x9x9xf32>
    %605 = arith.addf %600, %604 : vector<2x9x9xf32>
    %c117 = arith.constant 117 : index
    %606 = memref.load %arg1[%c117] : memref<128xf32, #tpu.memory_space<smem>>
    %607 = vector.extract_strided_slice %580 {offsets = [0, 0, 5], sizes = [2, 9, 9], strides = [1, 1, 1]} : vector<2x9x16xf32> to vector<2x9x9xf32>
    %608 = vector.broadcast %606 : f32 to vector<2x9x9xf32>
    %609 = arith.mulf %608, %607 : vector<2x9x9xf32>
    %610 = arith.addf %605, %609 : vector<2x9x9xf32>
    %c118 = arith.constant 118 : index
    %611 = memref.load %arg1[%c118] : memref<128xf32, #tpu.memory_space<smem>>
    %612 = vector.extract_strided_slice %580 {offsets = [0, 0, 6], sizes = [2, 9, 9], strides = [1, 1, 1]} : vector<2x9x16xf32> to vector<2x9x9xf32>
    %613 = vector.broadcast %611 : f32 to vector<2x9x9xf32>
    %614 = arith.mulf %613, %612 : vector<2x9x9xf32>
    %615 = arith.addf %610, %614 : vector<2x9x9xf32>
    %c119 = arith.constant 119 : index
    %616 = memref.load %arg1[%c119] : memref<128xf32, #tpu.memory_space<smem>>
    %617 = vector.extract_strided_slice %580 {offsets = [0, 0, 7], sizes = [2, 9, 9], strides = [1, 1, 1]} : vector<2x9x16xf32> to vector<2x9x9xf32>
    %618 = vector.broadcast %616 : f32 to vector<2x9x9xf32>
    %619 = arith.mulf %618, %617 : vector<2x9x9xf32>
    %620 = arith.addf %615, %619 : vector<2x9x9xf32>
    %621 = vector.extract_strided_slice %333 {offsets = [0, 7, 0], sizes = [2, 9, 16], strides = [1, 1, 1]} : vector<2x16x16xf32> to vector<2x9x16xf32>
    %c120 = arith.constant 120 : index
    %622 = memref.load %arg1[%c120] : memref<128xf32, #tpu.memory_space<smem>>
    %623 = vector.extract_strided_slice %621 {offsets = [0, 0, 0], sizes = [2, 9, 9], strides = [1, 1, 1]} : vector<2x9x16xf32> to vector<2x9x9xf32>
    %624 = vector.broadcast %622 : f32 to vector<2x9x9xf32>
    %625 = arith.mulf %624, %623 : vector<2x9x9xf32>
    %626 = arith.addf %620, %625 : vector<2x9x9xf32>
    %c121 = arith.constant 121 : index
    %627 = memref.load %arg1[%c121] : memref<128xf32, #tpu.memory_space<smem>>
    %628 = vector.extract_strided_slice %621 {offsets = [0, 0, 1], sizes = [2, 9, 9], strides = [1, 1, 1]} : vector<2x9x16xf32> to vector<2x9x9xf32>
    %629 = vector.broadcast %627 : f32 to vector<2x9x9xf32>
    %630 = arith.mulf %629, %628 : vector<2x9x9xf32>
    %631 = arith.addf %626, %630 : vector<2x9x9xf32>
    %c122 = arith.constant 122 : index
    %632 = memref.load %arg1[%c122] : memref<128xf32, #tpu.memory_space<smem>>
    %633 = vector.extract_strided_slice %621 {offsets = [0, 0, 2], sizes = [2, 9, 9], strides = [1, 1, 1]} : vector<2x9x16xf32> to vector<2x9x9xf32>
    %634 = vector.broadcast %632 : f32 to vector<2x9x9xf32>
    %635 = arith.mulf %634, %633 : vector<2x9x9xf32>
    %636 = arith.addf %631, %635 : vector<2x9x9xf32>
    %c123 = arith.constant 123 : index
    %637 = memref.load %arg1[%c123] : memref<128xf32, #tpu.memory_space<smem>>
    %638 = vector.extract_strided_slice %621 {offsets = [0, 0, 3], sizes = [2, 9, 9], strides = [1, 1, 1]} : vector<2x9x16xf32> to vector<2x9x9xf32>
    %639 = vector.broadcast %637 : f32 to vector<2x9x9xf32>
    %640 = arith.mulf %639, %638 : vector<2x9x9xf32>
    %641 = arith.addf %636, %640 : vector<2x9x9xf32>
    %c124 = arith.constant 124 : index
    %642 = memref.load %arg1[%c124] : memref<128xf32, #tpu.memory_space<smem>>
    %643 = vector.extract_strided_slice %621 {offsets = [0, 0, 4], sizes = [2, 9, 9], strides = [1, 1, 1]} : vector<2x9x16xf32> to vector<2x9x9xf32>
    %644 = vector.broadcast %642 : f32 to vector<2x9x9xf32>
    %645 = arith.mulf %644, %643 : vector<2x9x9xf32>
    %646 = arith.addf %641, %645 : vector<2x9x9xf32>
    %c125 = arith.constant 125 : index
    %647 = memref.load %arg1[%c125] : memref<128xf32, #tpu.memory_space<smem>>
    %648 = vector.extract_strided_slice %621 {offsets = [0, 0, 5], sizes = [2, 9, 9], strides = [1, 1, 1]} : vector<2x9x16xf32> to vector<2x9x9xf32>
    %649 = vector.broadcast %647 : f32 to vector<2x9x9xf32>
    %650 = arith.mulf %649, %648 : vector<2x9x9xf32>
    %651 = arith.addf %646, %650 : vector<2x9x9xf32>
    %c126 = arith.constant 126 : index
    %652 = memref.load %arg1[%c126] : memref<128xf32, #tpu.memory_space<smem>>
    %653 = vector.extract_strided_slice %621 {offsets = [0, 0, 6], sizes = [2, 9, 9], strides = [1, 1, 1]} : vector<2x9x16xf32> to vector<2x9x9xf32>
    %654 = vector.broadcast %652 : f32 to vector<2x9x9xf32>
    %655 = arith.mulf %654, %653 : vector<2x9x9xf32>
    %656 = arith.addf %651, %655 : vector<2x9x9xf32>
    %c127 = arith.constant 127 : index
    %657 = memref.load %arg1[%c127] : memref<128xf32, #tpu.memory_space<smem>>
    %658 = vector.extract_strided_slice %621 {offsets = [0, 0, 7], sizes = [2, 9, 9], strides = [1, 1, 1]} : vector<2x9x16xf32> to vector<2x9x9xf32>
    %659 = vector.broadcast %657 : f32 to vector<2x9x9xf32>
    %660 = arith.mulf %659, %658 : vector<2x9x9xf32>
    %661 = arith.addf %656, %660 : vector<2x9x9xf32>
    %c0_4 = arith.constant 0 : index
    %662 = memref.load %arg2[%c0_4] : memref<1xf32, #tpu.memory_space<smem>>
    %663 = vector.broadcast %662 : f32 to vector<2x9x9xf32>
    %664 = arith.addf %661, %663 : vector<2x9x9xf32>
    %cst_5 = arith.constant 0.000000e+00 : f32
    %665 = vector.broadcast %cst_5 : f32 to vector<2x9x9xf32>
    %666 = arith.cmpf ogt, %664, %665 : vector<2x9x9xf32>
    %cst_6 = arith.constant 0.331514597 : f32
    %667 = vector.broadcast %cst_6 : f32 to vector<2x9x9xf32>
    %668 = arith.mulf %664, %667 : vector<2x9x9xf32>
    %669 = arith.select %666, %664, %668 : vector<2x9x9xi1>, vector<2x9x9xf32>
    %c0_7 = arith.constant 0 : index
    %c0_8 = arith.constant 0 : index
    %c0_9 = arith.constant 0 : index
    %670 = vector.load %arg3[%c0_7, %c0_8, %c0_9] : memref<2x9x9xf32, #tpu.memory_space<vmem>>, vector<2x9x9xf32>
    tpu.vector_store %arg3[%c0_7, %c0_8, %c0_9], %669 {strides = array<i32>} : memref<2x9x9xf32, #tpu.memory_space<vmem>>, vector<2x9x9xf32>,
    return
  }
}

</mosaic_0001>

<llo_original>
// kernel: conv2d_leaky_relu.1
$region0: #{conv2d_leaky_relu.1}
  #allocation0 [shape = 'u32[]', space=smem, size = 0x4, offset = 0x4, fixed_abs, tag = 'smem constant byte address 0x4 - core index']
  #allocation1 [shape = 'u32[144,128]{1,0:T(1,128)}', space=vmem, size = 0x12000, scoped, tag = 'internal scratch']
  #allocation2 [shape = 'f32[1]{0:T(128)S(6)}', space=smem, size = 0x200, scoped, tag = 'scoped memory for conv2d_leaky_relu.1']
  %s0 = inlined_call_operand.hbm [shape: f32[2,2,16,16], index: 0, kind: input, shape index: {}]
  %s1 = inlined_call_operand.vmem [shape: f32[128], index: 1, kind: input, shape index: {}]
  %s2 = inlined_call_operand.<no memory space> [shape: f32[1], index: 2, kind: input, shape index: {}]
  %s3 = inlined_call_operand.vmem [shape: f32[2,9,9], index: 3, kind: output, shape index: {}]
  %s4 = sld [smem:[#allocation0]]
  $region30: #{conv2d_leaky_relu.1} parent=0
    _
  %s6 = ssub.s32 1, %s4
  %s7 = scalar_select 0, %s6, %s4
  %8 = sst [smem:[#allocation2]] %s2
  $region1: #{conv2d_leaky_relu.1} parent=0
    #allocation3 [shape = 'u8[32768]{0}', space=vmem, size = 0x8000, scoped, tag = 'input window, operand 0, single buffered']
    #allocation4 [shape = 's32[1]{0}', space=sflag, size = 0x4, scoped, tag = 'scoped memory for conv2d_leaky_relu.1']
    #allocation5 [shape = 's32[1]{0}', space=sflag, size = 0x4, scoped, tag = 'scoped memory for conv2d_leaky_relu.1']
    #allocation6 [shape = 'u8[512]{0}', space=smem, size = 0x200, scoped, tag = 'input window, operand 1, single buffered']
    %9 = vsyncpa [#allocation4], 0
    %10 = vsyncpa [#allocation5], 0
    // Predicated region
    $region2: #{conv2d_leaky_relu.1} parent=1 // pred_check
      _
    $region3: #{conv2d_leaky_relu.1} parent=1 // pred_check_branch
      %12 = sbr.rel (0) target = $region5
    $region4: #{conv2d_leaky_relu.1} parent=1 // pred_region
      %s14 = ssub.s32 1024, 1024
      %15 = vsyncadd [#allocation4], %s14
      %s16 = sshll.u32 [#allocation3], 4
      %s17 = int_to_ptr.vmem [resolvable:$true] %s16
      %22 = dma.hbm_to_vmem [thread:$0]  %s0, 1024, %s17, [#allocation4], 128, 128, 8
    $region5: #{conv2d_leaky_relu.1} parent=1 // pred_fallthru
      _
    // Predicated region
    $region6: #{conv2d_leaky_relu.1} parent=1 // pred_check
      _
    $region7: #{conv2d_leaky_relu.1} parent=1 // pred_check_branch
      %24 = sbr.rel (0) target = $region9
    $region8: #{conv2d_leaky_relu.1} parent=1 // pred_region
      %s26 = ssub.s32 16, 16
      %27 = vsyncadd [#allocation5], %s26
      %s29 = sshll.u32 %s1, 4
      %s30 = int_to_ptr.vmem [resolvable:$true] %s29
      %32 = dma.vmem_to_smem %s30, 16, [#allocation6], [#allocation5]
    $region9: #{conv2d_leaky_relu.1} parent=1 // pred_fallthru
      _
    // Predicated region
    $region10: #{conv2d_leaky_relu.1} parent=1 // pred_check
      _
    $region11: #{conv2d_leaky_relu.1} parent=1 // pred_check_branch
      %34 = sbr.rel (0) target = $region13
    $region12: #{conv2d_leaky_relu.1} parent=1 // pred_region
      _
    $region13: #{conv2d_leaky_relu.1} parent=1 // pred_fallthru
      _
    // Predicated region
    $region14: #{conv2d_leaky_relu.1} parent=1 // pred_check
      _
    $region15: #{conv2d_leaky_relu.1} parent=1 // pred_check_branch
      %36 = sbr.rel (0) target = $region17
    $region16: #{conv2d_leaky_relu.1} parent=1 // pred_region
      %37 = dma.done [#allocation4], 1024
    $region17: #{conv2d_leaky_relu.1} parent=1 // pred_fallthru
      _
    // Predicated region
    $region18: #{conv2d_leaky_relu.1} parent=1 // pred_check
      _
    $region19: #{conv2d_leaky_relu.1} parent=1 // pred_check_branch
      %39 = sbr.rel (0) target = $region21
    $region20: #{conv2d_leaky_relu.1} parent=1 // pred_region
      %40 = dma.done [#allocation5], 16
    $region21: #{conv2d_leaky_relu.1} parent=1 // pred_fallthru
      _
    %41 = sfence
    %v42 = vld [vmem:[#allocation3] sm:$0xff]
    %v43 = vld [vmem:[#allocation3 + $0x8] sm:$0xff]
    %v44 = vld [vmem:[#allocation3 + $0x10] sm:$0xff]
    %v45 = vld [vmem:[#allocation3 + $0x18] sm:$0xff]
    %v46 = vld [vmem:[#allocation3 + $0x20] sm:$0xff]
    %v47 = vld [vmem:[#allocation3 + $0x28] sm:$0xff]
    %v48 = vld [vmem:[#allocation3 + $0x30] sm:$0xff]
    %v49 = vld [vmem:[#allocation3 + $0x38] sm:$0xff]
    %s50 = sld [smem:[#allocation6]]
    %v51 = vstv %s50
    %v52 = vmul.f32 %v51, %v42
    %v53 = vmul.f32 %v51, %v43
    %v54 = vmul.f32 %v51, %v46
    %v55 = vmul.f32 %v51, %v47
    %v56 = vadd.f32 %v52, 0.0
    %v57 = vadd.f32 %v53, 0.0
    %v58 = vadd.f32 %v54, 0.0
    %v59 = vadd.f32 %v55, 0.0
    %s60 = sld [smem:[#allocation6 + $0x1]]
    %v61 = vstv %s60
    %v62 = vmul.f32 %v61, %v42
    %v63 = vmul.f32 %v61, %v43
    %v64 = vmul.f32 %v61, %v46
    %v65 = vmul.f32 %v61, %v47
    %70 = vrot.lane.b32.xlu0 %v62, 127
    %v71 = vpop.permute.xlu0 %70
    %72 = vrot.lane.b32.xlu0 %v63, 127
    %v73 = vpop.permute.xlu0 %72
    %74 = vrot.lane.b32.xlu0 %v64, 127
    %v75 = vpop.permute.xlu0 %74
    %76 = vrot.lane.b32.xlu0 %v65, 127
    %v77 = vpop.permute.xlu0 %76
    %v82 = vadd.f32 %v56, %v71
    %v83 = vadd.f32 %v57, %v73
    %v84 = vadd.f32 %v58, %v75
    %v85 = vadd.f32 %v59, %v77
    %s86 = sld [smem:[#allocation6 + $0x2]]
    %v87 = vstv %s86
    %v88 = vmul.f32 %v87, %v42
    %v89 = vmul.f32 %v87, %v43
    %v90 = vmul.f32 %v87, %v46
    %v91 = vmul.f32 %v87, %v47
    %96 = vrot.lane.b32.xlu0 %v88, 126
    %v97 = vpop.permute.xlu0 %96
    %98 = vrot.lane.b32.xlu0 %v89, 126
    %v99 = vpop.permute.xlu0 %98
    %100 = vrot.lane.b32.xlu0 %v90, 126
    %v101 = vpop.permute.xlu0 %100
    %102 = vrot.lane.b32.xlu0 %v91, 126
    %v103 = vpop.permute.xlu0 %102
    %v108 = vadd.f32 %v82, %v97
    %v109 = vadd.f32 %v83, %v99
    %v110 = vadd.f32 %v84, %v101
    %v111 = vadd.f32 %v85, %v103
    %s112 = sld [smem:[#allocation6 + $0x3]]
    %v113 = vstv %s112
    %v114 = vmul.f32 %v113, %v42
    %v115 = vmul.f32 %v113, %v43
    %v116 = vmul.f32 %v113, %v46
    %v117 = vmul.f32 %v113, %v47
    %122 = vrot.lane.b32.xlu0 %v114, 125
    %v123 = vpop.permute.xlu0 %122
    %124 = vrot.lane.b32.xlu0 %v115, 125
    %v125 = vpop.permute.xlu0 %124
    %126 = vrot.lane.b32.xlu0 %v116, 125
    %v127 = vpop.permute.xlu0 %126
    %128 = vrot.lane.b32.xlu0 %v117, 125
    %v129 = vpop.permute.xlu0 %128
    %v134 = vadd.f32 %v108, %v123
    %v135 = vadd.f32 %v109, %v125
    %v136 = vadd.f32 %v110, %v127
    %v137 = vadd.f32 %v111, %v129
    %s138 = sld [smem:[#allocation6 + $0x4]]
    %v139 = vstv %s138
    %v140 = vmul.f32 %v139, %v42
    %v141 = vmul.f32 %v139, %v43
    %v142 = vmul.f32 %v139, %v46
    %v143 = vmul.f32 %v139, %v47
    %148 = vrot.lane.b32.xlu0 %v140, 124
    %v149 = vpop.permute.xlu0 %148
    %150 = vrot.lane.b32.xlu0 %v141, 124
    %v151 = vpop.permute.xlu0 %150
    %152 = vrot.lane.b32.xlu0 %v142, 124
    %v153 = vpop.permute.xlu0 %152
    %154 = vrot.lane.b32.xlu0 %v143, 124
    %v155 = vpop.permute.xlu0 %154
    %v160 = vadd.f32 %v134, %v149
    %v161 = vadd.f32 %v135, %v151
    %v162 = vadd.f32 %v136, %v153
    %v163 = vadd.f32 %v137, %v155
    %s164 = sld [smem:[#allocation6 + $0x5]]
    %v165 = vstv %s164
    %v166 = vmul.f32 %v165, %v42
    %v167 = vmul.f32 %v165, %v43
    %v168 = vmul.f32 %v165, %v46
    %v169 = vmul.f32 %v165, %v47
    %174 = vrot.lane.b32.xlu0 %v166, 123
    %v175 = vpop.permute.xlu0 %174
    %176 = vrot.lane.b32.xlu0 %v167, 123
    %v177 = vpop.permute.xlu0 %176
    %178 = vrot.lane.b32.xlu0 %v168, 123
    %v179 = vpop.permute.xlu0 %178
    %180 = vrot.lane.b32.xlu0 %v169, 123
    %v181 = vpop.permute.xlu0 %180
    %v186 = vadd.f32 %v160, %v175
    %v187 = vadd.f32 %v161, %v177
    %v188 = vadd.f32 %v162, %v179
    %v189 = vadd.f32 %v163, %v181
    %s190 = sld [smem:[#allocation6 + $0x6]]
    %v191 = vstv %s190
    %v192 = vmul.f32 %v191, %v42
    %v193 = vmul.f32 %v191, %v43
    %v194 = vmul.f32 %v191, %v46
    %v195 = vmul.f32 %v191, %v47
    %200 = vrot.lane.b32.xlu0 %v192, 122
    %v201 = vpop.permute.xlu0 %200
    %202 = vrot.lane.b32.xlu0 %v193, 122
    %v203 = vpop.permute.xlu0 %202
    %204 = vrot.lane.b32.xlu0 %v194, 122
    %v205 = vpop.permute.xlu0 %204
    %206 = vrot.lane.b32.xlu0 %v195, 122
    %v207 = vpop.permute.xlu0 %206
    %v212 = vadd.f32 %v186, %v201
    %v213 = vadd.f32 %v187, %v203
    %v214 = vadd.f32 %v188, %v205
    %v215 = vadd.f32 %v189, %v207
    %s216 = sld [smem:[#allocation6 + $0x7]]
    %v217 = vstv %s216
    %v218 = vmul.f32 %v217, %v42
    %v219 = vmul.f32 %v217, %v43
    %v220 = vmul.f32 %v217, %v46
    %v221 = vmul.f32 %v217, %v47
    %226 = vrot.lane.b32.xlu0 %v218, 121
    %v227 = vpop.permute.xlu0 %226
    %228 = vrot.lane.b32.xlu0 %v219, 121
    %v229 = vpop.permute.xlu0 %228
    %230 = vrot.lane.b32.xlu0 %v220, 121
    %v231 = vpop.permute.xlu0 %230
    %232 = vrot.lane.b32.xlu0 %v221, 121
    %v233 = vpop.permute.xlu0 %232
    %v238 = vadd.f32 %v212, %v227
    %v239 = vadd.f32 %v213, %v229
    %v240 = vadd.f32 %v214, %v231
    %v241 = vadd.f32 %v215, %v233
    %s242 = sld [smem:[#allocation6 + $0x8]]
    %v243 = vstv %s242
    %v244 = vmul.f32 %v243, %v42
    %v245 = vmul.f32 %v243, %v43
    %v246 = vmul.f32 %v243, %v46
    %v247 = vmul.f32 %v243, %v47
    %vm252 = vcmask 1046528
    %v253 = vrot.slane %v244, 1
    %v254 = vrot.slane %v245, 1
    %v255 = vsel %vm252, %v253, %v254
    %v256 = vrot.slane %v246, 1
    %v257 = vrot.slane %v247, 1
    %v258 = vsel %vm252, %v256, %v257
    %v263 = vadd.f32 %v238, %v255
    %v264 = vadd.f32 %v239, %v254
    %v265 = vadd.f32 %v240, %v258
    %v266 = vadd.f32 %v241, %v257
    %s267 = sld [smem:[#allocation6 + $0x9]]
    %v268 = vstv %s267
    %v269 = vmul.f32 %v268, %v42
    %v270 = vmul.f32 %v268, %v43
    %v271 = vmul.f32 %v268, %v46
    %v272 = vmul.f32 %v268, %v47
    %v277 = vrot.slane %v269, 1
    %v278 = vrot.slane %v270, 1
    %v279 = vsel %vm252, %v277, %v278
    %v280 = vrot.slane %v271, 1
    %v281 = vrot.slane %v272, 1
    %v282 = vsel %vm252, %v280, %v281
    %283 = vrot.lane.b32.xlu0 %v279, 127
    %v284 = vpop.permute.xlu0 %283
    %285 = vrot.lane.b32.xlu0 %v278, 127
    %v286 = vpop.permute.xlu0 %285
    %287 = vrot.lane.b32.xlu0 %v282, 127
    %v288 = vpop.permute.xlu0 %287
    %289 = vrot.lane.b32.xlu0 %v281, 127
    %v290 = vpop.permute.xlu0 %289
    %v295 = vadd.f32 %v263, %v284
    %v296 = vadd.f32 %v264, %v286
    %v297 = vadd.f32 %v265, %v288
    %v298 = vadd.f32 %v266, %v290
    %s299 = sld [smem:[#allocation6 + $0xa]]
    %v300 = vstv %s299
    %v301 = vmul.f32 %v300, %v42
    %v302 = vmul.f32 %v300, %v43
    %v303 = vmul.f32 %v300, %v46
    %v304 = vmul.f32 %v300, %v47
    %v309 = vrot.slane %v301, 1
    %v310 = vrot.slane %v302, 1
    %v311 = vsel %vm252, %v309, %v310
    %v312 = vrot.slane %v303, 1
    %v313 = vrot.slane %v304, 1
    %v314 = vsel %vm252, %v312, %v313
    %315 = vrot.lane.b32.xlu0 %v311, 126
    %v316 = vpop.permute.xlu0 %315
    %317 = vrot.lane.b32.xlu0 %v310, 126
    %v318 = vpop.permute.xlu0 %317
    %319 = vrot.lane.b32.xlu0 %v314, 126
    %v320 = vpop.permute.xlu0 %319
    %321 = vrot.lane.b32.xlu0 %v313, 126
    %v322 = vpop.permute.xlu0 %321
    %v327 = vadd.f32 %v295, %v316
    %v328 = vadd.f32 %v296, %v318
    %v329 = vadd.f32 %v297, %v320
    %v330 = vadd.f32 %v298, %v322
    %s331 = sld [smem:[#allocation6 + $0xb]]
    %v332 = vstv %s331
    %v333 = vmul.f32 %v332, %v42
    %v334 = vmul.f32 %v332, %v43
    %v335 = vmul.f32 %v332, %v46
    %v336 = vmul.f32 %v332, %v47
    %v341 = vrot.slane %v333, 1
    %v342 = vrot.slane %v334, 1
    %v343 = vsel %vm252, %v341, %v342
    %v344 = vrot.slane %v335, 1
    %v345 = vrot.slane %v336, 1
    %v346 = vsel %vm252, %v344, %v345
    %347 = vrot.lane.b32.xlu0 %v343, 125
    %v348 = vpop.permute.xlu0 %347
    %349 = vrot.lane.b32.xlu0 %v342, 125
    %v350 = vpop.permute.xlu0 %349
    %351 = vrot.lane.b32.xlu0 %v346, 125
    %v352 = vpop.permute.xlu0 %351
    %353 = vrot.lane.b32.xlu0 %v345, 125
    %v354 = vpop.permute.xlu0 %353
    %v359 = vadd.f32 %v327, %v348
    %v360 = vadd.f32 %v328, %v350
    %v361 = vadd.f32 %v329, %v352
    %v362 = vadd.f32 %v330, %v354
    %s363 = sld [smem:[#allocation6 + $0xc]]
    %v364 = vstv %s363
    %v365 = vmul.f32 %v364, %v42
    %v366 = vmul.f32 %v364, %v43
    %v367 = vmul.f32 %v364, %v46
    %v368 = vmul.f32 %v364, %v47
    %v373 = vrot.slane %v365, 1
    %v374 = vrot.slane %v366, 1
    %v375 = vsel %vm252, %v373, %v374
    %v376 = vrot.slane %v367, 1
    %v377 = vrot.slane %v368, 1
    %v378 = vsel %vm252, %v376, %v377
    %379 = vrot.lane.b32.xlu0 %v375, 124
    %v380 = vpop.permute.xlu0 %379
    %381 = vrot.lane.b32.xlu0 %v374, 124
    %v382 = vpop.permute.xlu0 %381
    %383 = vrot.lane.b32.xlu0 %v378, 124
    %v384 = vpop.permute.xlu0 %383
    %385 = vrot.lane.b32.xlu0 %v377, 124
    %v386 = vpop.permute.xlu0 %385
    %v391 = vadd.f32 %v359, %v380
    %v392 = vadd.f32 %v360, %v382
    %v393 = vadd.f32 %v361, %v384
    %v394 = vadd.f32 %v362, %v386
    %s395 = sld [smem:[#allocation6 + $0xd]]
    %v396 = vstv %s395
    %v397 = vmul.f32 %v396, %v42
    %v398 = vmul.f32 %v396, %v43
    %v399 = vmul.f32 %v396, %v46
    %v400 = vmul.f32 %v396, %v47
    %v405 = vrot.slane %v397, 1
    %v406 = vrot.slane %v398, 1
    %v407 = vsel %vm252, %v405, %v406
    %v408 = vrot.slane %v399, 1
    %v409 = vrot.slane %v400, 1
    %v410 = vsel %vm252, %v408, %v409
    %411 = vrot.lane.b32.xlu0 %v407, 123
    %v412 = vpop.permute.xlu0 %411
    %413 = vrot.lane.b32.xlu0 %v406, 123
    %v414 = vpop.permute.xlu0 %413
    %415 = vrot.lane.b32.xlu0 %v410, 123
    %v416 = vpop.permute.xlu0 %415
    %417 = vrot.lane.b32.xlu0 %v409, 123
    %v418 = vpop.permute.xlu0 %417
    %v423 = vadd.f32 %v391, %v412
    %v424 = vadd.f32 %v392, %v414
    %v425 = vadd.f32 %v393, %v416
    %v426 = vadd.f32 %v394, %v418
    %s427 = sld [smem:[#allocation6 + $0xe]]
    %v428 = vstv %s427
    %v429 = vmul.f32 %v428, %v42
    %v430 = vmul.f32 %v428, %v43
    %v431 = vmul.f32 %v428, %v46
    %v432 = vmul.f32 %v428, %v47
    %v437 = vrot.slane %v429, 1
    %v438 = vrot.slane %v430, 1
    %v439 = vsel %vm252, %v437, %v438
    %v440 = vrot.slane %v431, 1
    %v441 = vrot.slane %v432, 1
    %v442 = vsel %vm252, %v440, %v441
    %443 = vrot.lane.b32.xlu0 %v439, 122
    %v444 = vpop.permute.xlu0 %443
    %445 = vrot.lane.b32.xlu0 %v438, 122
    %v446 = vpop.permute.xlu0 %445
    %447 = vrot.lane.b32.xlu0 %v442, 122
    %v448 = vpop.permute.xlu0 %447
    %449 = vrot.lane.b32.xlu0 %v441, 122
    %v450 = vpop.permute.xlu0 %449
    %v455 = vadd.f32 %v423, %v444
    %v456 = vadd.f32 %v424, %v446
    %v457 = vadd.f32 %v425, %v448
    %v458 = vadd.f32 %v426, %v450
    %s459 = sld [smem:[#allocation6 + $0xf]]
    %v460 = vstv %s459
    %v461 = vmul.f32 %v460, %v42
    %v462 = vmul.f32 %v460, %v43
    %v463 = vmul.f32 %v460, %v46
    %v464 = vmul.f32 %v460, %v47
    %v469 = vrot.slane %v461, 1
    %v470 = vrot.slane %v462, 1
    %v471 = vsel %vm252, %v469, %v470
    %v472 = vrot.slane %v463, 1
    %v473 = vrot.slane %v464, 1
    %v474 = vsel %vm252, %v472, %v473
    %475 = vrot.lane.b32.xlu0 %v471, 121
    %v476 = vpop.permute.xlu0 %475
    %477 = vrot.lane.b32.xlu0 %v470, 121
    %v478 = vpop.permute.xlu0 %477
    %479 = vrot.lane.b32.xlu0 %v474, 121
    %v480 = vpop.permute.xlu0 %479
    %481 = vrot.lane.b32.xlu0 %v473, 121
    %v482 = vpop.permute.xlu0 %481
    %v487 = vadd.f32 %v455, %v476
    %v488 = vadd.f32 %v456, %v478
    %v489 = vadd.f32 %v457, %v480
    %v490 = vadd.f32 %v458, %v482
    %s491 = sld [smem:[#allocation6 + $0x10]]
    %v492 = vstv %s491
    %v493 = vmul.f32 %v492, %v42
    %v494 = vmul.f32 %v492, %v43
    %v495 = vmul.f32 %v492, %v46
    %v496 = vmul.f32 %v492, %v47
    %vm501 = vcmask 1045504
    %v502 = vrot.slane %v493, 2
    %v503 = vrot.slane %v494, 2
    %v504 = vsel %vm501, %v502, %v503
    %v505 = vrot.slane %v495, 2
    %v506 = vrot.slane %v496, 2
    %v507 = vsel %vm501, %v505, %v506
    %v512 = vadd.f32 %v487, %v504
    %v513 = vadd.f32 %v488, %v503
    %v514 = vadd.f32 %v489, %v507
    %v515 = vadd.f32 %v490, %v506
    %s516 = sld [smem:[#allocation6 + $0x11]]
    %v517 = vstv %s516
    %v518 = vmul.f32 %v517, %v42
    %v519 = vmul.f32 %v517, %v43
    %v520 = vmul.f32 %v517, %v46
    %v521 = vmul.f32 %v517, %v47
    %v526 = vrot.slane %v518, 2
    %v527 = vrot.slane %v519, 2
    %v528 = vsel %vm501, %v526, %v527
    %v529 = vrot.slane %v520, 2
    %v530 = vrot.slane %v521, 2
    %v531 = vsel %vm501, %v529, %v530
    %532 = vrot.lane.b32.xlu0 %v528, 127
    %v533 = vpop.permute.xlu0 %532
    %534 = vrot.lane.b32.xlu0 %v527, 127
    %v535 = vpop.permute.xlu0 %534
    %536 = vrot.lane.b32.xlu0 %v531, 127
    %v537 = vpop.permute.xlu0 %536
    %538 = vrot.lane.b32.xlu0 %v530, 127
    %v539 = vpop.permute.xlu0 %538
    %v544 = vadd.f32 %v512, %v533
    %v545 = vadd.f32 %v513, %v535
    %v546 = vadd.f32 %v514, %v537
    %v547 = vadd.f32 %v515, %v539
    %s548 = sld [smem:[#allocation6 + $0x12]]
    %v549 = vstv %s548
    %v550 = vmul.f32 %v549, %v42
    %v551 = vmul.f32 %v549, %v43
    %v552 = vmul.f32 %v549, %v46
    %v553 = vmul.f32 %v549, %v47
    %v558 = vrot.slane %v550, 2
    %v559 = vrot.slane %v551, 2
    %v560 = vsel %vm501, %v558, %v559
    %v561 = vrot.slane %v552, 2
    %v562 = vrot.slane %v553, 2
    %v563 = vsel %vm501, %v561, %v562
    %564 = vrot.lane.b32.xlu0 %v560, 126
    %v565 = vpop.permute.xlu0 %564
    %566 = vrot.lane.b32.xlu0 %v559, 126
    %v567 = vpop.permute.xlu0 %566
    %568 = vrot.lane.b32.xlu0 %v563, 126
    %v569 = vpop.permute.xlu0 %568
    %570 = vrot.lane.b32.xlu0 %v562, 126
    %v571 = vpop.permute.xlu0 %570
    %v576 = vadd.f32 %v544, %v565
    %v577 = vadd.f32 %v545, %v567
    %v578 = vadd.f32 %v546, %v569
    %v579 = vadd.f32 %v547, %v571
    %s580 = sld [smem:[#allocation6 + $0x13]]
    %v581 = vstv %s580
    %v582 = vmul.f32 %v581, %v42
    %v583 = vmul.f32 %v581, %v43
    %v584 = vmul.f32 %v581, %v46
    %v585 = vmul.f32 %v581, %v47
    %v590 = vrot.slane %v582, 2
    %v591 = vrot.slane %v583, 2
    %v592 = vsel %vm501, %v590, %v591
    %v593 = vrot.slane %v584, 2
    %v594 = vrot.slane %v585, 2
    %v595 = vsel %vm501, %v593, %v594
    %596 = vrot.lane.b32.xlu0 %v592, 125
    %v597 = vpop.permute.xlu0 %596
    %598 = vrot.lane.b32.xlu0 %v591, 125
    %v599 = vpop.permute.xlu0 %598
    %600 = vrot.lane.b32.xlu0 %v595, 125
    %v601 = vpop.permute.xlu0 %600
    %602 = vrot.lane.b32.xlu0 %v594, 125
    %v603 = vpop.permute.xlu0 %602
    %v608 = vadd.f32 %v576, %v597
    %v609 = vadd.f32 %v577, %v599
    %v610 = vadd.f32 %v578, %v601
    %v611 = vadd.f32 %v579, %v603
    %s612 = sld [smem:[#allocation6 + $0x14]]
    %v613 = vstv %s612
    %v614 = vmul.f32 %v613, %v42
    %v615 = vmul.f32 %v613, %v43
    %v616 = vmul.f32 %v613, %v46
    %v617 = vmul.f32 %v613, %v47
    %v622 = vrot.slane %v614, 2
    %v623 = vrot.slane %v615, 2
    %v624 = vsel %vm501, %v622, %v623
    %v625 = vrot.slane %v616, 2
    %v626 = vrot.slane %v617, 2
    %v627 = vsel %vm501, %v625, %v626
    %628 = vrot.lane.b32.xlu0 %v624, 124
    %v629 = vpop.permute.xlu0 %628
    %630 = vrot.lane.b32.xlu0 %v623, 124
    %v631 = vpop.permute.xlu0 %630
    %632 = vrot.lane.b32.xlu0 %v627, 124
    %v633 = vpop.permute.xlu0 %632
    %634 = vrot.lane.b32.xlu0 %v626, 124
    %v635 = vpop.permute.xlu0 %634
    %v640 = vadd.f32 %v608, %v629
    %v641 = vadd.f32 %v609, %v631
    %v642 = vadd.f32 %v610, %v633
    %v643 = vadd.f32 %v611, %v635
    %s644 = sld [smem:[#allocation6 + $0x15]]
    %v645 = vstv %s644
    %v646 = vmul.f32 %v645, %v42
    %v647 = vmul.f32 %v645, %v43
    %v648 = vmul.f32 %v645, %v46
    %v649 = vmul.f32 %v645, %v47
    %v654 = vrot.slane %v646, 2
    %v655 = vrot.slane %v647, 2
    %v656 = vsel %vm501, %v654, %v655
    %v657 = vrot.slane %v648, 2
    %v658 = vrot.slane %v649, 2
    %v659 = vsel %vm501, %v657, %v658
    %660 = vrot.lane.b32.xlu0 %v656, 123
    %v661 = vpop.permute.xlu0 %660
    %662 = vrot.lane.b32.xlu0 %v655, 123
    %v663 = vpop.permute.xlu0 %662
    %664 = vrot.lane.b32.xlu0 %v659, 123
    %v665 = vpop.permute.xlu0 %664
    %666 = vrot.lane.b32.xlu0 %v658, 123
    %v667 = vpop.permute.xlu0 %666
    %v672 = vadd.f32 %v640, %v661
    %v673 = vadd.f32 %v641, %v663
    %v674 = vadd.f32 %v642, %v665
    %v675 = vadd.f32 %v643, %v667
    %s676 = sld [smem:[#allocation6 + $0x16]]
    %v677 = vstv %s676
    %v678 = vmul.f32 %v677, %v42
    %v679 = vmul.f32 %v677, %v43
    %v680 = vmul.f32 %v677, %v46
    %v681 = vmul.f32 %v677, %v47
    %v686 = vrot.slane %v678, 2
    %v687 = vrot.slane %v679, 2
    %v688 = vsel %vm501, %v686, %v687
    %v689 = vrot.slane %v680, 2
    %v690 = vrot.slane %v681, 2
    %v691 = vsel %vm501, %v689, %v690
    %692 = vrot.lane.b32.xlu0 %v688, 122
    %v693 = vpop.permute.xlu0 %692
    %694 = vrot.lane.b32.xlu0 %v687, 122
    %v695 = vpop.permute.xlu0 %694
    %696 = vrot.lane.b32.xlu0 %v691, 122
    %v697 = vpop.permute.xlu0 %696
    %698 = vrot.lane.b32.xlu0 %v690, 122
    %v699 = vpop.permute.xlu0 %698
    %v704 = vadd.f32 %v672, %v693
    %v705 = vadd.f32 %v673, %v695
    %v706 = vadd.f32 %v674, %v697
    %v707 = vadd.f32 %v675, %v699
    %s708 = sld [smem:[#allocation6 + $0x17]]
    %v709 = vstv %s708
    %v710 = vmul.f32 %v709, %v42
    %v711 = vmul.f32 %v709, %v43
    %v712 = vmul.f32 %v709, %v46
    %v713 = vmul.f32 %v709, %v47
    %v718 = vrot.slane %v710, 2
    %v719 = vrot.slane %v711, 2
    %v720 = vsel %vm501, %v718, %v719
    %v721 = vrot.slane %v712, 2
    %v722 = vrot.slane %v713, 2
    %v723 = vsel %vm501, %v721, %v722
    %724 = vrot.lane.b32.xlu0 %v720, 121
    %v725 = vpop.permute.xlu0 %724
    %726 = vrot.lane.b32.xlu0 %v719, 121
    %v727 = vpop.permute.xlu0 %726
    %728 = vrot.lane.b32.xlu0 %v723, 121
    %v729 = vpop.permute.xlu0 %728
    %730 = vrot.lane.b32.xlu0 %v722, 121
    %v731 = vpop.permute.xlu0 %730
    %v736 = vadd.f32 %v704, %v725
    %v737 = vadd.f32 %v705, %v727
    %v738 = vadd.f32 %v706, %v729
    %v739 = vadd.f32 %v707, %v731
    %s740 = sld [smem:[#allocation6 + $0x18]]
    %v741 = vstv %s740
    %v742 = vmul.f32 %v741, %v42
    %v743 = vmul.f32 %v741, %v43
    %v744 = vmul.f32 %v741, %v46
    %v745 = vmul.f32 %v741, %v47
    %vm750 = vcmask 1044480
    %v751 = vrot.slane %v742, 3
    %v752 = vrot.slane %v743, 3
    %v753 = vsel %vm750, %v751, %v752
    %v754 = vrot.slane %v744, 3
    %v755 = vrot.slane %v745, 3
    %v756 = vsel %vm750, %v754, %v755
    %v761 = vadd.f32 %v736, %v753
    %v762 = vadd.f32 %v737, %v752
    %v763 = vadd.f32 %v738, %v756
    %v764 = vadd.f32 %v739, %v755
    %s765 = sld [smem:[#allocation6 + $0x19]]
    %v766 = vstv %s765
    %v767 = vmul.f32 %v766, %v42
    %v768 = vmul.f32 %v766, %v43
    %v769 = vmul.f32 %v766, %v46
    %v770 = vmul.f32 %v766, %v47
    %v775 = vrot.slane %v767, 3
    %v776 = vrot.slane %v768, 3
    %v777 = vsel %vm750, %v775, %v776
    %v778 = vrot.slane %v769, 3
    %v779 = vrot.slane %v770, 3
    %v780 = vsel %vm750, %v778, %v779
    %781 = vrot.lane.b32.xlu0 %v777, 127
    %v782 = vpop.permute.xlu0 %781
    %783 = vrot.lane.b32.xlu0 %v776, 127
    %v784 = vpop.permute.xlu0 %783
    %785 = vrot.lane.b32.xlu0 %v780, 127
    %v786 = vpop.permute.xlu0 %785
    %787 = vrot.lane.b32.xlu0 %v779, 127
    %v788 = vpop.permute.xlu0 %787
    %v793 = vadd.f32 %v761, %v782
    %v794 = vadd.f32 %v762, %v784
    %v795 = vadd.f32 %v763, %v786
    %v796 = vadd.f32 %v764, %v788
    %s797 = sld [smem:[#allocation6 + $0x1a]]
    %v798 = vstv %s797
    %v799 = vmul.f32 %v798, %v42
    %v800 = vmul.f32 %v798, %v43
    %v801 = vmul.f32 %v798, %v46
    %v802 = vmul.f32 %v798, %v47
    %v807 = vrot.slane %v799, 3
    %v808 = vrot.slane %v800, 3
    %v809 = vsel %vm750, %v807, %v808
    %v810 = vrot.slane %v801, 3
    %v811 = vrot.slane %v802, 3
    %v812 = vsel %vm750, %v810, %v811
    %813 = vrot.lane.b32.xlu0 %v809, 126
    %v814 = vpop.permute.xlu0 %813
    %815 = vrot.lane.b32.xlu0 %v808, 126
    %v816 = vpop.permute.xlu0 %815
    %817 = vrot.lane.b32.xlu0 %v812, 126
    %v818 = vpop.permute.xlu0 %817
    %819 = vrot.lane.b32.xlu0 %v811, 126
    %v820 = vpop.permute.xlu0 %819
    %v825 = vadd.f32 %v793, %v814
    %v826 = vadd.f32 %v794, %v816
    %v827 = vadd.f32 %v795, %v818
    %v828 = vadd.f32 %v796, %v820
    %s829 = sld [smem:[#allocation6 + $0x1b]]
    %v830 = vstv %s829
    %v831 = vmul.f32 %v830, %v42
    %v832 = vmul.f32 %v830, %v43
    %v833 = vmul.f32 %v830, %v46
    %v834 = vmul.f32 %v830, %v47
    %v839 = vrot.slane %v831, 3
    %v840 = vrot.slane %v832, 3
    %v841 = vsel %vm750, %v839, %v840
    %v842 = vrot.slane %v833, 3
    %v843 = vrot.slane %v834, 3
    %v844 = vsel %vm750, %v842, %v843
    %845 = vrot.lane.b32.xlu0 %v841, 125
    %v846 = vpop.permute.xlu0 %845
    %847 = vrot.lane.b32.xlu0 %v840, 125
    %v848 = vpop.permute.xlu0 %847
    %849 = vrot.lane.b32.xlu0 %v844, 125
    %v850 = vpop.permute.xlu0 %849
    %851 = vrot.lane.b32.xlu0 %v843, 125
    %v852 = vpop.permute.xlu0 %851
    %v857 = vadd.f32 %v825, %v846
    %v858 = vadd.f32 %v826, %v848
    %v859 = vadd.f32 %v827, %v850
    %v860 = vadd.f32 %v828, %v852
    %s861 = sld [smem:[#allocation6 + $0x1c]]
    %v862 = vstv %s861
    %v863 = vmul.f32 %v862, %v42
    %v864 = vmul.f32 %v862, %v43
    %v865 = vmul.f32 %v862, %v46
    %v866 = vmul.f32 %v862, %v47
    %v871 = vrot.slane %v863, 3
    %v872 = vrot.slane %v864, 3
    %v873 = vsel %vm750, %v871, %v872
    %v874 = vrot.slane %v865, 3
    %v875 = vrot.slane %v866, 3
    %v876 = vsel %vm750, %v874, %v875
    %877 = vrot.lane.b32.xlu0 %v873, 124
    %v878 = vpop.permute.xlu0 %877
    %879 = vrot.lane.b32.xlu0 %v872, 124
    %v880 = vpop.permute.xlu0 %879
    %881 = vrot.lane.b32.xlu0 %v876, 124
    %v882 = vpop.permute.xlu0 %881
    %883 = vrot.lane.b32.xlu0 %v875, 124
    %v884 = vpop.permute.xlu0 %883
    %v889 = vadd.f32 %v857, %v878
    %v890 = vadd.f32 %v858, %v880
    %v891 = vadd.f32 %v859, %v882
    %v892 = vadd.f32 %v860, %v884
    %s893 = sld [smem:[#allocation6 + $0x1d]]
    %v894 = vstv %s893
    %v895 = vmul.f32 %v894, %v42
    %v896 = vmul.f32 %v894, %v43
    %v897 = vmul.f32 %v894, %v46
    %v898 = vmul.f32 %v894, %v47
    %v903 = vrot.slane %v895, 3
    %v904 = vrot.slane %v896, 3
    %v905 = vsel %vm750, %v903, %v904
    %v906 = vrot.slane %v897, 3
    %v907 = vrot.slane %v898, 3
    %v908 = vsel %vm750, %v906, %v907
    %909 = vrot.lane.b32.xlu0 %v905, 123
    %v910 = vpop.permute.xlu0 %909
    %911 = vrot.lane.b32.xlu0 %v904, 123
    %v912 = vpop.permute.xlu0 %911
    %913 = vrot.lane.b32.xlu0 %v908, 123
    %v914 = vpop.permute.xlu0 %913
    %915 = vrot.lane.b32.xlu0 %v907, 123
    %v916 = vpop.permute.xlu0 %915
    %v921 = vadd.f32 %v889, %v910
    %v922 = vadd.f32 %v890, %v912
    %v923 = vadd.f32 %v891, %v914
    %v924 = vadd.f32 %v892, %v916
    %s925 = sld [smem:[#allocation6 + $0x1e]]
    %v926 = vstv %s925
    %v927 = vmul.f32 %v926, %v42
    %v928 = vmul.f32 %v926, %v43
    %v929 = vmul.f32 %v926, %v46
    %v930 = vmul.f32 %v926, %v47
    %v935 = vrot.slane %v927, 3
    %v936 = vrot.slane %v928, 3
    %v937 = vsel %vm750, %v935, %v936
    %v938 = vrot.slane %v929, 3
    %v939 = vrot.slane %v930, 3
    %v940 = vsel %vm750, %v938, %v939
    %941 = vrot.lane.b32.xlu0 %v937, 122
    %v942 = vpop.permute.xlu0 %941
    %943 = vrot.lane.b32.xlu0 %v936, 122
    %v944 = vpop.permute.xlu0 %943
    %945 = vrot.lane.b32.xlu0 %v940, 122
    %v946 = vpop.permute.xlu0 %945
    %947 = vrot.lane.b32.xlu0 %v939, 122
    %v948 = vpop.permute.xlu0 %947
    %v953 = vadd.f32 %v921, %v942
    %v954 = vadd.f32 %v922, %v944
    %v955 = vadd.f32 %v923, %v946
    %v956 = vadd.f32 %v924, %v948
    %s957 = sld [smem:[#allocation6 + $0x1f]]
    %v958 = vstv %s957
    %v959 = vmul.f32 %v958, %v42
    %v960 = vmul.f32 %v958, %v43
    %v961 = vmul.f32 %v958, %v46
    %v962 = vmul.f32 %v958, %v47
    %v967 = vrot.slane %v959, 3
    %v968 = vrot.slane %v960, 3
    %v969 = vsel %vm750, %v967, %v968
    %v970 = vrot.slane %v961, 3
    %v971 = vrot.slane %v962, 3
    %v972 = vsel %vm750, %v970, %v971
    %973 = vrot.lane.b32.xlu0 %v969, 121
    %v974 = vpop.permute.xlu0 %973
    %975 = vrot.lane.b32.xlu0 %v968, 121
    %v976 = vpop.permute.xlu0 %975
    %977 = vrot.lane.b32.xlu0 %v972, 121
    %v978 = vpop.permute.xlu0 %977
    %979 = vrot.lane.b32.xlu0 %v971, 121
    %v980 = vpop.permute.xlu0 %979
    %v985 = vadd.f32 %v953, %v974
    %v986 = vadd.f32 %v954, %v976
    %v987 = vadd.f32 %v955, %v978
    %v988 = vadd.f32 %v956, %v980
    %s989 = sld [smem:[#allocation6 + $0x20]]
    %v990 = vstv %s989
    %v991 = vmul.f32 %v990, %v42
    %v992 = vmul.f32 %v990, %v43
    %v993 = vmul.f32 %v990, %v46
    %v994 = vmul.f32 %v990, %v47
    %vm999 = vcmask 1043456
    %v1000 = vrot.slane %v991, 4
    %v1001 = vrot.slane %v992, 4
    %v1002 = vsel %vm999, %v1000, %v1001
    %v1003 = vrot.slane %v993, 4
    %v1004 = vrot.slane %v994, 4
    %v1005 = vsel %vm999, %v1003, %v1004
    %v1010 = vadd.f32 %v985, %v1002
    %v1011 = vadd.f32 %v986, %v1001
    %v1012 = vadd.f32 %v987, %v1005
    %v1013 = vadd.f32 %v988, %v1004
    %s1014 = sld [smem:[#allocation6 + $0x21]]
    %v1015 = vstv %s1014
    %v1016 = vmul.f32 %v1015, %v42
    %v1017 = vmul.f32 %v1015, %v43
    %v1018 = vmul.f32 %v1015, %v46
    %v1019 = vmul.f32 %v1015, %v47
    %v1024 = vrot.slane %v1016, 4
    %v1025 = vrot.slane %v1017, 4
    %v1026 = vsel %vm999, %v1024, %v1025
    %v1027 = vrot.slane %v1018, 4
    %v1028 = vrot.slane %v1019, 4
    %v1029 = vsel %vm999, %v1027, %v1028
    %1030 = vrot.lane.b32.xlu0 %v1026, 127
    %v1031 = vpop.permute.xlu0 %1030
    %1032 = vrot.lane.b32.xlu0 %v1025, 127
    %v1033 = vpop.permute.xlu0 %1032
    %1034 = vrot.lane.b32.xlu0 %v1029, 127
    %v1035 = vpop.permute.xlu0 %1034
    %1036 = vrot.lane.b32.xlu0 %v1028, 127
    %v1037 = vpop.permute.xlu0 %1036
    %v1042 = vadd.f32 %v1010, %v1031
    %v1043 = vadd.f32 %v1011, %v1033
    %v1044 = vadd.f32 %v1012, %v1035
    %v1045 = vadd.f32 %v1013, %v1037
    %s1046 = sld [smem:[#allocation6 + $0x22]]
    %v1047 = vstv %s1046
    %v1048 = vmul.f32 %v1047, %v42
    %v1049 = vmul.f32 %v1047, %v43
    %v1050 = vmul.f32 %v1047, %v46
    %v1051 = vmul.f32 %v1047, %v47
    %v1056 = vrot.slane %v1048, 4
    %v1057 = vrot.slane %v1049, 4
    %v1058 = vsel %vm999, %v1056, %v1057
    %v1059 = vrot.slane %v1050, 4
    %v1060 = vrot.slane %v1051, 4
    %v1061 = vsel %vm999, %v1059, %v1060
    %1062 = vrot.lane.b32.xlu0 %v1058, 126
    %v1063 = vpop.permute.xlu0 %1062
    %1064 = vrot.lane.b32.xlu0 %v1057, 126
    %v1065 = vpop.permute.xlu0 %1064
    %1066 = vrot.lane.b32.xlu0 %v1061, 126
    %v1067 = vpop.permute.xlu0 %1066
    %1068 = vrot.lane.b32.xlu0 %v1060, 126
    %v1069 = vpop.permute.xlu0 %1068
    %v1074 = vadd.f32 %v1042, %v1063
    %v1075 = vadd.f32 %v1043, %v1065
    %v1076 = vadd.f32 %v1044, %v1067
    %v1077 = vadd.f32 %v1045, %v1069
    %s1078 = sld [smem:[#allocation6 + $0x23]]
    %v1079 = vstv %s1078
    %v1080 = vmul.f32 %v1079, %v42
    %v1081 = vmul.f32 %v1079, %v43
    %v1082 = vmul.f32 %v1079, %v46
    %v1083 = vmul.f32 %v1079, %v47
    %v1088 = vrot.slane %v1080, 4
    %v1089 = vrot.slane %v1081, 4
    %v1090 = vsel %vm999, %v1088, %v1089
    %v1091 = vrot.slane %v1082, 4
    %v1092 = vrot.slane %v1083, 4
    %v1093 = vsel %vm999, %v1091, %v1092
    %1094 = vrot.lane.b32.xlu0 %v1090, 125
    %v1095 = vpop.permute.xlu0 %1094
    %1096 = vrot.lane.b32.xlu0 %v1089, 125
    %v1097 = vpop.permute.xlu0 %1096
    %1098 = vrot.lane.b32.xlu0 %v1093, 125
    %v1099 = vpop.permute.xlu0 %1098
    %1100 = vrot.lane.b32.xlu0 %v1092, 125
    %v1101 = vpop.permute.xlu0 %1100
    %v1106 = vadd.f32 %v1074, %v1095
    %v1107 = vadd.f32 %v1075, %v1097
    %v1108 = vadd.f32 %v1076, %v1099
    %v1109 = vadd.f32 %v1077, %v1101
    %s1110 = sld [smem:[#allocation6 + $0x24]]
    %v1111 = vstv %s1110
    %v1112 = vmul.f32 %v1111, %v42
    %v1113 = vmul.f32 %v1111, %v43
    %v1114 = vmul.f32 %v1111, %v46
    %v1115 = vmul.f32 %v1111, %v47
    %v1120 = vrot.slane %v1112, 4
    %v1121 = vrot.slane %v1113, 4
    %v1122 = vsel %vm999, %v1120, %v1121
    %v1123 = vrot.slane %v1114, 4
    %v1124 = vrot.slane %v1115, 4
    %v1125 = vsel %vm999, %v1123, %v1124
    %1126 = vrot.lane.b32.xlu0 %v1122, 124
    %v1127 = vpop.permute.xlu0 %1126
    %1128 = vrot.lane.b32.xlu0 %v1121, 124
    %v1129 = vpop.permute.xlu0 %1128
    %1130 = vrot.lane.b32.xlu0 %v1125, 124
    %v1131 = vpop.permute.xlu0 %1130
    %1132 = vrot.lane.b32.xlu0 %v1124, 124
    %v1133 = vpop.permute.xlu0 %1132
    %v1138 = vadd.f32 %v1106, %v1127
    %v1139 = vadd.f32 %v1107, %v1129
    %v1140 = vadd.f32 %v1108, %v1131
    %v1141 = vadd.f32 %v1109, %v1133
    %s1142 = sld [smem:[#allocation6 + $0x25]]
    %v1143 = vstv %s1142
    %v1144 = vmul.f32 %v1143, %v42
    %v1145 = vmul.f32 %v1143, %v43
    %v1146 = vmul.f32 %v1143, %v46
    %v1147 = vmul.f32 %v1143, %v47
    %v1152 = vrot.slane %v1144, 4
    %v1153 = vrot.slane %v1145, 4
    %v1154 = vsel %vm999, %v1152, %v1153
    %v1155 = vrot.slane %v1146, 4
    %v1156 = vrot.slane %v1147, 4
    %v1157 = vsel %vm999, %v1155, %v1156
    %1158 = vrot.lane.b32.xlu0 %v1154, 123
    %v1159 = vpop.permute.xlu0 %1158
    %1160 = vrot.lane.b32.xlu0 %v1153, 123
    %v1161 = vpop.permute.xlu0 %1160
    %1162 = vrot.lane.b32.xlu0 %v1157, 123
    %v1163 = vpop.permute.xlu0 %1162
    %1164 = vrot.lane.b32.xlu0 %v1156, 123
    %v1165 = vpop.permute.xlu0 %1164
    %v1170 = vadd.f32 %v1138, %v1159
    %v1171 = vadd.f32 %v1139, %v1161
    %v1172 = vadd.f32 %v1140, %v1163
    %v1173 = vadd.f32 %v1141, %v1165
    %s1174 = sld [smem:[#allocation6 + $0x26]]
    %v1175 = vstv %s1174
    %v1176 = vmul.f32 %v1175, %v42
    %v1177 = vmul.f32 %v1175, %v43
    %v1178 = vmul.f32 %v1175, %v46
    %v1179 = vmul.f32 %v1175, %v47
    %v1184 = vrot.slane %v1176, 4
    %v1185 = vrot.slane %v1177, 4
    %v1186 = vsel %vm999, %v1184, %v1185
    %v1187 = vrot.slane %v1178, 4
    %v1188 = vrot.slane %v1179, 4
    %v1189 = vsel %vm999, %v1187, %v1188
    %1190 = vrot.lane.b32.xlu0 %v1186, 122
    %v1191 = vpop.permute.xlu0 %1190
    %1192 = vrot.lane.b32.xlu0 %v1185, 122
    %v1193 = vpop.permute.xlu0 %1192
    %1194 = vrot.lane.b32.xlu0 %v1189, 122
    %v1195 = vpop.permute.xlu0 %1194
    %1196 = vrot.lane.b32.xlu0 %v1188, 122
    %v1197 = vpop.permute.xlu0 %1196
    %v1202 = vadd.f32 %v1170, %v1191
    %v1203 = vadd.f32 %v1171, %v1193
    %v1204 = vadd.f32 %v1172, %v1195
    %v1205 = vadd.f32 %v1173, %v1197
    %s1206 = sld [smem:[#allocation6 + $0x27]]
    %v1207 = vstv %s1206
    %v1208 = vmul.f32 %v1207, %v42
    %v1209 = vmul.f32 %v1207, %v43
    %v1210 = vmul.f32 %v1207, %v46
    %v1211 = vmul.f32 %v1207, %v47
    %v1216 = vrot.slane %v1208, 4
    %v1217 = vrot.slane %v1209, 4
    %v1218 = vsel %vm999, %v1216, %v1217
    %v1219 = vrot.slane %v1210, 4
    %v1220 = vrot.slane %v1211, 4
    %v1221 = vsel %vm999, %v1219, %v1220
    %1222 = vrot.lane.b32.xlu0 %v1218, 121
    %v1223 = vpop.permute.xlu0 %1222
    %1224 = vrot.lane.b32.xlu0 %v1217, 121
    %v1225 = vpop.permute.xlu0 %1224
    %1226 = vrot.lane.b32.xlu0 %v1221, 121
    %v1227 = vpop.permute.xlu0 %1226
    %1228 = vrot.lane.b32.xlu0 %v1220, 121
    %v1229 = vpop.permute.xlu0 %1228
    %v1234 = vadd.f32 %v1202, %v1223
    %v1235 = vadd.f32 %v1203, %v1225
    %v1236 = vadd.f32 %v1204, %v1227
    %v1237 = vadd.f32 %v1205, %v1229
    %s1238 = sld [smem:[#allocation6 + $0x28]]
    %v1239 = vstv %s1238
    %v1240 = vmul.f32 %v1239, %v42
    %v1241 = vmul.f32 %v1239, %v43
    %v1242 = vmul.f32 %v1239, %v46
    %v1243 = vmul.f32 %v1239, %v47
    %vm1248 = vcmask 1042432
    %v1249 = vrot.slane %v1240, 5
    %v1250 = vrot.slane %v1241, 5
    %v1251 = vsel %vm1248, %v1249, %v1250
    %v1252 = vrot.slane %v1242, 5
    %v1253 = vrot.slane %v1243, 5
    %v1254 = vsel %vm1248, %v1252, %v1253
    %v1259 = vadd.f32 %v1234, %v1251
    %v1260 = vadd.f32 %v1235, %v1250
    %v1261 = vadd.f32 %v1236, %v1254
    %v1262 = vadd.f32 %v1237, %v1253
    %s1263 = sld [smem:[#allocation6 + $0x29]]
    %v1264 = vstv %s1263
    %v1265 = vmul.f32 %v1264, %v42
    %v1266 = vmul.f32 %v1264, %v43
    %v1267 = vmul.f32 %v1264, %v46
    %v1268 = vmul.f32 %v1264, %v47
    %v1273 = vrot.slane %v1265, 5
    %v1274 = vrot.slane %v1266, 5
    %v1275 = vsel %vm1248, %v1273, %v1274
    %v1276 = vrot.slane %v1267, 5
    %v1277 = vrot.slane %v1268, 5
    %v1278 = vsel %vm1248, %v1276, %v1277
    %1279 = vrot.lane.b32.xlu0 %v1275, 127
    %v1280 = vpop.permute.xlu0 %1279
    %1281 = vrot.lane.b32.xlu0 %v1274, 127
    %v1282 = vpop.permute.xlu0 %1281
    %1283 = vrot.lane.b32.xlu0 %v1278, 127
    %v1284 = vpop.permute.xlu0 %1283
    %1285 = vrot.lane.b32.xlu0 %v1277, 127
    %v1286 = vpop.permute.xlu0 %1285
    %v1291 = vadd.f32 %v1259, %v1280
    %v1292 = vadd.f32 %v1260, %v1282
    %v1293 = vadd.f32 %v1261, %v1284
    %v1294 = vadd.f32 %v1262, %v1286
    %s1295 = sld [smem:[#allocation6 + $0x2a]]
    %v1296 = vstv %s1295
    %v1297 = vmul.f32 %v1296, %v42
    %v1298 = vmul.f32 %v1296, %v43
    %v1299 = vmul.f32 %v1296, %v46
    %v1300 = vmul.f32 %v1296, %v47
    %v1305 = vrot.slane %v1297, 5
    %v1306 = vrot.slane %v1298, 5
    %v1307 = vsel %vm1248, %v1305, %v1306
    %v1308 = vrot.slane %v1299, 5
    %v1309 = vrot.slane %v1300, 5
    %v1310 = vsel %vm1248, %v1308, %v1309
    %1311 = vrot.lane.b32.xlu0 %v1307, 126
    %v1312 = vpop.permute.xlu0 %1311
    %1313 = vrot.lane.b32.xlu0 %v1306, 126
    %v1314 = vpop.permute.xlu0 %1313
    %1315 = vrot.lane.b32.xlu0 %v1310, 126
    %v1316 = vpop.permute.xlu0 %1315
    %1317 = vrot.lane.b32.xlu0 %v1309, 126
    %v1318 = vpop.permute.xlu0 %1317
    %v1323 = vadd.f32 %v1291, %v1312
    %v1324 = vadd.f32 %v1292, %v1314
    %v1325 = vadd.f32 %v1293, %v1316
    %v1326 = vadd.f32 %v1294, %v1318
    %s1327 = sld [smem:[#allocation6 + $0x2b]]
    %v1328 = vstv %s1327
    %v1329 = vmul.f32 %v1328, %v42
    %v1330 = vmul.f32 %v1328, %v43
    %v1331 = vmul.f32 %v1328, %v46
    %v1332 = vmul.f32 %v1328, %v47
    %v1337 = vrot.slane %v1329, 5
    %v1338 = vrot.slane %v1330, 5
    %v1339 = vsel %vm1248, %v1337, %v1338
    %v1340 = vrot.slane %v1331, 5
    %v1341 = vrot.slane %v1332, 5
    %v1342 = vsel %vm1248, %v1340, %v1341
    %1343 = vrot.lane.b32.xlu0 %v1339, 125
    %v1344 = vpop.permute.xlu0 %1343
    %1345 = vrot.lane.b32.xlu0 %v1338, 125
    %v1346 = vpop.permute.xlu0 %1345
    %1347 = vrot.lane.b32.xlu0 %v1342, 125
    %v1348 = vpop.permute.xlu0 %1347
    %1349 = vrot.lane.b32.xlu0 %v1341, 125
    %v1350 = vpop.permute.xlu0 %1349
    %v1355 = vadd.f32 %v1323, %v1344
    %v1356 = vadd.f32 %v1324, %v1346
    %v1357 = vadd.f32 %v1325, %v1348
    %v1358 = vadd.f32 %v1326, %v1350
    %s1359 = sld [smem:[#allocation6 + $0x2c]]
    %v1360 = vstv %s1359
    %v1361 = vmul.f32 %v1360, %v42
    %v1362 = vmul.f32 %v1360, %v43
    %v1363 = vmul.f32 %v1360, %v46
    %v1364 = vmul.f32 %v1360, %v47
    %v1369 = vrot.slane %v1361, 5
    %v1370 = vrot.slane %v1362, 5
    %v1371 = vsel %vm1248, %v1369, %v1370
    %v1372 = vrot.slane %v1363, 5
    %v1373 = vrot.slane %v1364, 5
    %v1374 = vsel %vm1248, %v1372, %v1373
    %1375 = vrot.lane.b32.xlu0 %v1371, 124
    %v1376 = vpop.permute.xlu0 %1375
    %1377 = vrot.lane.b32.xlu0 %v1370, 124
    %v1378 = vpop.permute.xlu0 %1377
    %1379 = vrot.lane.b32.xlu0 %v1374, 124
    %v1380 = vpop.permute.xlu0 %1379
    %1381 = vrot.lane.b32.xlu0 %v1373, 124
    %v1382 = vpop.permute.xlu0 %1381
    %v1387 = vadd.f32 %v1355, %v1376
    %v1388 = vadd.f32 %v1356, %v1378
    %v1389 = vadd.f32 %v1357, %v1380
    %v1390 = vadd.f32 %v1358, %v1382
    %s1391 = sld [smem:[#allocation6 + $0x2d]]
    %v1392 = vstv %s1391
    %v1393 = vmul.f32 %v1392, %v42
    %v1394 = vmul.f32 %v1392, %v43
    %v1395 = vmul.f32 %v1392, %v46
    %v1396 = vmul.f32 %v1392, %v47
    %v1401 = vrot.slane %v1393, 5
    %v1402 = vrot.slane %v1394, 5
    %v1403 = vsel %vm1248, %v1401, %v1402
    %v1404 = vrot.slane %v1395, 5
    %v1405 = vrot.slane %v1396, 5
    %v1406 = vsel %vm1248, %v1404, %v1405
    %1407 = vrot.lane.b32.xlu0 %v1403, 123
    %v1408 = vpop.permute.xlu0 %1407
    %1409 = vrot.lane.b32.xlu0 %v1402, 123
    %v1410 = vpop.permute.xlu0 %1409
    %1411 = vrot.lane.b32.xlu0 %v1406, 123
    %v1412 = vpop.permute.xlu0 %1411
    %1413 = vrot.lane.b32.xlu0 %v1405, 123
    %v1414 = vpop.permute.xlu0 %1413
    %v1419 = vadd.f32 %v1387, %v1408
    %v1420 = vadd.f32 %v1388, %v1410
    %v1421 = vadd.f32 %v1389, %v1412
    %v1422 = vadd.f32 %v1390, %v1414
    %s1423 = sld [smem:[#allocation6 + $0x2e]]
    %v1424 = vstv %s1423
    %v1425 = vmul.f32 %v1424, %v42
    %v1426 = vmul.f32 %v1424, %v43
    %v1427 = vmul.f32 %v1424, %v46
    %v1428 = vmul.f32 %v1424, %v47
    %v1433 = vrot.slane %v1425, 5
    %v1434 = vrot.slane %v1426, 5
    %v1435 = vsel %vm1248, %v1433, %v1434
    %v1436 = vrot.slane %v1427, 5
    %v1437 = vrot.slane %v1428, 5
    %v1438 = vsel %vm1248, %v1436, %v1437
    %1439 = vrot.lane.b32.xlu0 %v1435, 122
    %v1440 = vpop.permute.xlu0 %1439
    %1441 = vrot.lane.b32.xlu0 %v1434, 122
    %v1442 = vpop.permute.xlu0 %1441
    %1443 = vrot.lane.b32.xlu0 %v1438, 122
    %v1444 = vpop.permute.xlu0 %1443
    %1445 = vrot.lane.b32.xlu0 %v1437, 122
    %v1446 = vpop.permute.xlu0 %1445
    %v1451 = vadd.f32 %v1419, %v1440
    %v1452 = vadd.f32 %v1420, %v1442
    %v1453 = vadd.f32 %v1421, %v1444
    %v1454 = vadd.f32 %v1422, %v1446
    %s1455 = sld [smem:[#allocation6 + $0x2f]]
    %v1456 = vstv %s1455
    %v1457 = vmul.f32 %v1456, %v42
    %v1458 = vmul.f32 %v1456, %v43
    %v1459 = vmul.f32 %v1456, %v46
    %v1460 = vmul.f32 %v1456, %v47
    %v1465 = vrot.slane %v1457, 5
    %v1466 = vrot.slane %v1458, 5
    %v1467 = vsel %vm1248, %v1465, %v1466
    %v1468 = vrot.slane %v1459, 5
    %v1469 = vrot.slane %v1460, 5
    %v1470 = vsel %vm1248, %v1468, %v1469
    %1471 = vrot.lane.b32.xlu0 %v1467, 121
    %v1472 = vpop.permute.xlu0 %1471
    %1473 = vrot.lane.b32.xlu0 %v1466, 121
    %v1474 = vpop.permute.xlu0 %1473
    %1475 = vrot.lane.b32.xlu0 %v1470, 121
    %v1476 = vpop.permute.xlu0 %1475
    %1477 = vrot.lane.b32.xlu0 %v1469, 121
    %v1478 = vpop.permute.xlu0 %1477
    %v1483 = vadd.f32 %v1451, %v1472
    %v1484 = vadd.f32 %v1452, %v1474
    %v1485 = vadd.f32 %v1453, %v1476
    %v1486 = vadd.f32 %v1454, %v1478
    %s1487 = sld [smem:[#allocation6 + $0x30]]
    %v1488 = vstv %s1487
    %v1489 = vmul.f32 %v1488, %v42
    %v1490 = vmul.f32 %v1488, %v43
    %v1491 = vmul.f32 %v1488, %v46
    %v1492 = vmul.f32 %v1488, %v47
    %vm1497 = vcmask 1041408
    %v1498 = vrot.slane %v1489, 6
    %v1499 = vrot.slane %v1490, 6
    %v1500 = vsel %vm1497, %v1498, %v1499
    %v1501 = vrot.slane %v1491, 6
    %v1502 = vrot.slane %v1492, 6
    %v1503 = vsel %vm1497, %v1501, %v1502
    %v1508 = vadd.f32 %v1483, %v1500
    %v1509 = vadd.f32 %v1484, %v1499
    %v1510 = vadd.f32 %v1485, %v1503
    %v1511 = vadd.f32 %v1486, %v1502
    %s1512 = sld [smem:[#allocation6 + $0x31]]
    %v1513 = vstv %s1512
    %v1514 = vmul.f32 %v1513, %v42
    %v1515 = vmul.f32 %v1513, %v43
    %v1516 = vmul.f32 %v1513, %v46
    %v1517 = vmul.f32 %v1513, %v47
    %v1522 = vrot.slane %v1514, 6
    %v1523 = vrot.slane %v1515, 6
    %v1524 = vsel %vm1497, %v1522, %v1523
    %v1525 = vrot.slane %v1516, 6
    %v1526 = vrot.slane %v1517, 6
    %v1527 = vsel %vm1497, %v1525, %v1526
    %1528 = vrot.lane.b32.xlu0 %v1524, 127
    %v1529 = vpop.permute.xlu0 %1528
    %1530 = vrot.lane.b32.xlu0 %v1523, 127
    %v1531 = vpop.permute.xlu0 %1530
    %1532 = vrot.lane.b32.xlu0 %v1527, 127
    %v1533 = vpop.permute.xlu0 %1532
    %1534 = vrot.lane.b32.xlu0 %v1526, 127
    %v1535 = vpop.permute.xlu0 %1534
    %v1540 = vadd.f32 %v1508, %v1529
    %v1541 = vadd.f32 %v1509, %v1531
    %v1542 = vadd.f32 %v1510, %v1533
    %v1543 = vadd.f32 %v1511, %v1535
    %s1544 = sld [smem:[#allocation6 + $0x32]]
    %v1545 = vstv %s1544
    %v1546 = vmul.f32 %v1545, %v42
    %v1547 = vmul.f32 %v1545, %v43
    %v1548 = vmul.f32 %v1545, %v46
    %v1549 = vmul.f32 %v1545, %v47
    %v1554 = vrot.slane %v1546, 6
    %v1555 = vrot.slane %v1547, 6
    %v1556 = vsel %vm1497, %v1554, %v1555
    %v1557 = vrot.slane %v1548, 6
    %v1558 = vrot.slane %v1549, 6
    %v1559 = vsel %vm1497, %v1557, %v1558
    %1560 = vrot.lane.b32.xlu0 %v1556, 126
    %v1561 = vpop.permute.xlu0 %1560
    %1562 = vrot.lane.b32.xlu0 %v1555, 126
    %v1563 = vpop.permute.xlu0 %1562
    %1564 = vrot.lane.b32.xlu0 %v1559, 126
    %v1565 = vpop.permute.xlu0 %1564
    %1566 = vrot.lane.b32.xlu0 %v1558, 126
    %v1567 = vpop.permute.xlu0 %1566
    %v1572 = vadd.f32 %v1540, %v1561
    %v1573 = vadd.f32 %v1541, %v1563
    %v1574 = vadd.f32 %v1542, %v1565
    %v1575 = vadd.f32 %v1543, %v1567
    %s1576 = sld [smem:[#allocation6 + $0x33]]
    %v1577 = vstv %s1576
    %v1578 = vmul.f32 %v1577, %v42
    %v1579 = vmul.f32 %v1577, %v43
    %v1580 = vmul.f32 %v1577, %v46
    %v1581 = vmul.f32 %v1577, %v47
    %v1586 = vrot.slane %v1578, 6
    %v1587 = vrot.slane %v1579, 6
    %v1588 = vsel %vm1497, %v1586, %v1587
    %v1589 = vrot.slane %v1580, 6
    %v1590 = vrot.slane %v1581, 6
    %v1591 = vsel %vm1497, %v1589, %v1590
    %1592 = vrot.lane.b32.xlu0 %v1588, 125
    %v1593 = vpop.permute.xlu0 %1592
    %1594 = vrot.lane.b32.xlu0 %v1587, 125
    %v1595 = vpop.permute.xlu0 %1594
    %1596 = vrot.lane.b32.xlu0 %v1591, 125
    %v1597 = vpop.permute.xlu0 %1596
    %1598 = vrot.lane.b32.xlu0 %v1590, 125
    %v1599 = vpop.permute.xlu0 %1598
    %v1604 = vadd.f32 %v1572, %v1593
    %v1605 = vadd.f32 %v1573, %v1595
    %v1606 = vadd.f32 %v1574, %v1597
    %v1607 = vadd.f32 %v1575, %v1599
    %s1608 = sld [smem:[#allocation6 + $0x34]]
    %v1609 = vstv %s1608
    %v1610 = vmul.f32 %v1609, %v42
    %v1611 = vmul.f32 %v1609, %v43
    %v1612 = vmul.f32 %v1609, %v46
    %v1613 = vmul.f32 %v1609, %v47
    %v1618 = vrot.slane %v1610, 6
    %v1619 = vrot.slane %v1611, 6
    %v1620 = vsel %vm1497, %v1618, %v1619
    %v1621 = vrot.slane %v1612, 6
    %v1622 = vrot.slane %v1613, 6
    %v1623 = vsel %vm1497, %v1621, %v1622
    %1624 = vrot.lane.b32.xlu0 %v1620, 124
    %v1625 = vpop.permute.xlu0 %1624
    %1626 = vrot.lane.b32.xlu0 %v1619, 124
    %v1627 = vpop.permute.xlu0 %1626
    %1628 = vrot.lane.b32.xlu0 %v1623, 124
    %v1629 = vpop.permute.xlu0 %1628
    %1630 = vrot.lane.b32.xlu0 %v1622, 124
    %v1631 = vpop.permute.xlu0 %1630
    %v1636 = vadd.f32 %v1604, %v1625
    %v1637 = vadd.f32 %v1605, %v1627
    %v1638 = vadd.f32 %v1606, %v1629
    %v1639 = vadd.f32 %v1607, %v1631
    %s1640 = sld [smem:[#allocation6 + $0x35]]
    %v1641 = vstv %s1640
    %v1642 = vmul.f32 %v1641, %v42
    %v1643 = vmul.f32 %v1641, %v43
    %v1644 = vmul.f32 %v1641, %v46
    %v1645 = vmul.f32 %v1641, %v47
    %v1650 = vrot.slane %v1642, 6
    %v1651 = vrot.slane %v1643, 6
    %v1652 = vsel %vm1497, %v1650, %v1651
    %v1653 = vrot.slane %v1644, 6
    %v1654 = vrot.slane %v1645, 6
    %v1655 = vsel %vm1497, %v1653, %v1654
    %1656 = vrot.lane.b32.xlu0 %v1652, 123
    %v1657 = vpop.permute.xlu0 %1656
    %1658 = vrot.lane.b32.xlu0 %v1651, 123
    %v1659 = vpop.permute.xlu0 %1658
    %1660 = vrot.lane.b32.xlu0 %v1655, 123
    %v1661 = vpop.permute.xlu0 %1660
    %1662 = vrot.lane.b32.xlu0 %v1654, 123
    %v1663 = vpop.permute.xlu0 %1662
    %v1668 = vadd.f32 %v1636, %v1657
    %v1669 = vadd.f32 %v1637, %v1659
    %v1670 = vadd.f32 %v1638, %v1661
    %v1671 = vadd.f32 %v1639, %v1663
    %s1672 = sld [smem:[#allocation6 + $0x36]]
    %v1673 = vstv %s1672
    %v1674 = vmul.f32 %v1673, %v42
    %v1675 = vmul.f32 %v1673, %v43
    %v1676 = vmul.f32 %v1673, %v46
    %v1677 = vmul.f32 %v1673, %v47
    %v1682 = vrot.slane %v1674, 6
    %v1683 = vrot.slane %v1675, 6
    %v1684 = vsel %vm1497, %v1682, %v1683
    %v1685 = vrot.slane %v1676, 6
    %v1686 = vrot.slane %v1677, 6
    %v1687 = vsel %vm1497, %v1685, %v1686
    %1688 = vrot.lane.b32.xlu0 %v1684, 122
    %v1689 = vpop.permute.xlu0 %1688
    %1690 = vrot.lane.b32.xlu0 %v1683, 122
    %v1691 = vpop.permute.xlu0 %1690
    %1692 = vrot.lane.b32.xlu0 %v1687, 122
    %v1693 = vpop.permute.xlu0 %1692
    %1694 = vrot.lane.b32.xlu0 %v1686, 122
    %v1695 = vpop.permute.xlu0 %1694
    %v1700 = vadd.f32 %v1668, %v1689
    %v1701 = vadd.f32 %v1669, %v1691
    %v1702 = vadd.f32 %v1670, %v1693
    %v1703 = vadd.f32 %v1671, %v1695
    %s1704 = sld [smem:[#allocation6 + $0x37]]
    %v1705 = vstv %s1704
    %v1706 = vmul.f32 %v1705, %v42
    %v1707 = vmul.f32 %v1705, %v43
    %v1708 = vmul.f32 %v1705, %v46
    %v1709 = vmul.f32 %v1705, %v47
    %v1714 = vrot.slane %v1706, 6
    %v1715 = vrot.slane %v1707, 6
    %v1716 = vsel %vm1497, %v1714, %v1715
    %v1717 = vrot.slane %v1708, 6
    %v1718 = vrot.slane %v1709, 6
    %v1719 = vsel %vm1497, %v1717, %v1718
    %1720 = vrot.lane.b32.xlu0 %v1716, 121
    %v1721 = vpop.permute.xlu0 %1720
    %1722 = vrot.lane.b32.xlu0 %v1715, 121
    %v1723 = vpop.permute.xlu0 %1722
    %1724 = vrot.lane.b32.xlu0 %v1719, 121
    %v1725 = vpop.permute.xlu0 %1724
    %1726 = vrot.lane.b32.xlu0 %v1718, 121
    %v1727 = vpop.permute.xlu0 %1726
    %v1732 = vadd.f32 %v1700, %v1721
    %v1733 = vadd.f32 %v1701, %v1723
    %v1734 = vadd.f32 %v1702, %v1725
    %v1735 = vadd.f32 %v1703, %v1727
    %s1736 = sld [smem:[#allocation6 + $0x38]]
    %v1737 = vstv %s1736
    %v1738 = vmul.f32 %v1737, %v42
    %v1739 = vmul.f32 %v1737, %v43
    %v1740 = vmul.f32 %v1737, %v46
    %v1741 = vmul.f32 %v1737, %v47
    %vm1746 = vcmask 1040384
    %v1747 = vrot.slane %v1738, 7
    %v1748 = vrot.slane %v1739, 7
    %v1749 = vsel %vm1746, %v1747, %v1748
    %v1750 = vrot.slane %v1740, 7
    %v1751 = vrot.slane %v1741, 7
    %v1752 = vsel %vm1746, %v1750, %v1751
    %v1757 = vadd.f32 %v1732, %v1749
    %v1758 = vadd.f32 %v1733, %v1748
    %v1759 = vadd.f32 %v1734, %v1752
    %v1760 = vadd.f32 %v1735, %v1751
    %s1761 = sld [smem:[#allocation6 + $0x39]]
    %v1762 = vstv %s1761
    %v1763 = vmul.f32 %v1762, %v42
    %v1764 = vmul.f32 %v1762, %v43
    %v1765 = vmul.f32 %v1762, %v46
    %v1766 = vmul.f32 %v1762, %v47
    %v1771 = vrot.slane %v1763, 7
    %v1772 = vrot.slane %v1764, 7
    %v1773 = vsel %vm1746, %v1771, %v1772
    %v1774 = vrot.slane %v1765, 7
    %v1775 = vrot.slane %v1766, 7
    %v1776 = vsel %vm1746, %v1774, %v1775
    %1777 = vrot.lane.b32.xlu0 %v1773, 127
    %v1778 = vpop.permute.xlu0 %1777
    %1779 = vrot.lane.b32.xlu0 %v1772, 127
    %v1780 = vpop.permute.xlu0 %1779
    %1781 = vrot.lane.b32.xlu0 %v1776, 127
    %v1782 = vpop.permute.xlu0 %1781
    %1783 = vrot.lane.b32.xlu0 %v1775, 127
    %v1784 = vpop.permute.xlu0 %1783
    %v1789 = vadd.f32 %v1757, %v1778
    %v1790 = vadd.f32 %v1758, %v1780
    %v1791 = vadd.f32 %v1759, %v1782
    %v1792 = vadd.f32 %v1760, %v1784
    %s1793 = sld [smem:[#allocation6 + $0x3a]]
    %v1794 = vstv %s1793
    %v1795 = vmul.f32 %v1794, %v42
    %v1796 = vmul.f32 %v1794, %v43
    %v1797 = vmul.f32 %v1794, %v46
    %v1798 = vmul.f32 %v1794, %v47
    %v1803 = vrot.slane %v1795, 7
    %v1804 = vrot.slane %v1796, 7
    %v1805 = vsel %vm1746, %v1803, %v1804
    %v1806 = vrot.slane %v1797, 7
    %v1807 = vrot.slane %v1798, 7
    %v1808 = vsel %vm1746, %v1806, %v1807
    %1809 = vrot.lane.b32.xlu0 %v1805, 126
    %v1810 = vpop.permute.xlu0 %1809
    %1811 = vrot.lane.b32.xlu0 %v1804, 126
    %v1812 = vpop.permute.xlu0 %1811
    %1813 = vrot.lane.b32.xlu0 %v1808, 126
    %v1814 = vpop.permute.xlu0 %1813
    %1815 = vrot.lane.b32.xlu0 %v1807, 126
    %v1816 = vpop.permute.xlu0 %1815
    %v1821 = vadd.f32 %v1789, %v1810
    %v1822 = vadd.f32 %v1790, %v1812
    %v1823 = vadd.f32 %v1791, %v1814
    %v1824 = vadd.f32 %v1792, %v1816
    %s1825 = sld [smem:[#allocation6 + $0x3b]]
    %v1826 = vstv %s1825
    %v1827 = vmul.f32 %v1826, %v42
    %v1828 = vmul.f32 %v1826, %v43
    %v1829 = vmul.f32 %v1826, %v46
    %v1830 = vmul.f32 %v1826, %v47
    %v1835 = vrot.slane %v1827, 7
    %v1836 = vrot.slane %v1828, 7
    %v1837 = vsel %vm1746, %v1835, %v1836
    %v1838 = vrot.slane %v1829, 7
    %v1839 = vrot.slane %v1830, 7
    %v1840 = vsel %vm1746, %v1838, %v1839
    %1841 = vrot.lane.b32.xlu0 %v1837, 125
    %v1842 = vpop.permute.xlu0 %1841
    %1843 = vrot.lane.b32.xlu0 %v1836, 125
    %v1844 = vpop.permute.xlu0 %1843
    %1845 = vrot.lane.b32.xlu0 %v1840, 125
    %v1846 = vpop.permute.xlu0 %1845
    %1847 = vrot.lane.b32.xlu0 %v1839, 125
    %v1848 = vpop.permute.xlu0 %1847
    %v1853 = vadd.f32 %v1821, %v1842
    %v1854 = vadd.f32 %v1822, %v1844
    %v1855 = vadd.f32 %v1823, %v1846
    %v1856 = vadd.f32 %v1824, %v1848
    %s1857 = sld [smem:[#allocation6 + $0x3c]]
    %v1858 = vstv %s1857
    %v1859 = vmul.f32 %v1858, %v42
    %v1860 = vmul.f32 %v1858, %v43
    %v1861 = vmul.f32 %v1858, %v46
    %v1862 = vmul.f32 %v1858, %v47
    %v1867 = vrot.slane %v1859, 7
    %v1868 = vrot.slane %v1860, 7
    %v1869 = vsel %vm1746, %v1867, %v1868
    %v1870 = vrot.slane %v1861, 7
    %v1871 = vrot.slane %v1862, 7
    %v1872 = vsel %vm1746, %v1870, %v1871
    %1873 = vrot.lane.b32.xlu0 %v1869, 124
    %v1874 = vpop.permute.xlu0 %1873
    %1875 = vrot.lane.b32.xlu0 %v1868, 124
    %v1876 = vpop.permute.xlu0 %1875
    %1877 = vrot.lane.b32.xlu0 %v1872, 124
    %v1878 = vpop.permute.xlu0 %1877
    %1879 = vrot.lane.b32.xlu0 %v1871, 124
    %v1880 = vpop.permute.xlu0 %1879
    %v1885 = vadd.f32 %v1853, %v1874
    %v1886 = vadd.f32 %v1854, %v1876
    %v1887 = vadd.f32 %v1855, %v1878
    %v1888 = vadd.f32 %v1856, %v1880
    %s1889 = sld [smem:[#allocation6 + $0x3d]]
    %v1890 = vstv %s1889
    %v1891 = vmul.f32 %v1890, %v42
    %v1892 = vmul.f32 %v1890, %v43
    %v1893 = vmul.f32 %v1890, %v46
    %v1894 = vmul.f32 %v1890, %v47
    %v1899 = vrot.slane %v1891, 7
    %v1900 = vrot.slane %v1892, 7
    %v1901 = vsel %vm1746, %v1899, %v1900
    %v1902 = vrot.slane %v1893, 7
    %v1903 = vrot.slane %v1894, 7
    %v1904 = vsel %vm1746, %v1902, %v1903
    %1905 = vrot.lane.b32.xlu0 %v1901, 123
    %v1906 = vpop.permute.xlu0 %1905
    %1907 = vrot.lane.b32.xlu0 %v1900, 123
    %v1908 = vpop.permute.xlu0 %1907
    %1909 = vrot.lane.b32.xlu0 %v1904, 123
    %v1910 = vpop.permute.xlu0 %1909
    %1911 = vrot.lane.b32.xlu0 %v1903, 123
    %v1912 = vpop.permute.xlu0 %1911
    %v1917 = vadd.f32 %v1885, %v1906
    %v1918 = vadd.f32 %v1886, %v1908
    %v1919 = vadd.f32 %v1887, %v1910
    %v1920 = vadd.f32 %v1888, %v1912
    %s1921 = sld [smem:[#allocation6 + $0x3e]]
    %v1922 = vstv %s1921
    %v1923 = vmul.f32 %v1922, %v42
    %v1924 = vmul.f32 %v1922, %v43
    %v1925 = vmul.f32 %v1922, %v46
    %v1926 = vmul.f32 %v1922, %v47
    %v1931 = vrot.slane %v1923, 7
    %v1932 = vrot.slane %v1924, 7
    %v1933 = vsel %vm1746, %v1931, %v1932
    %v1934 = vrot.slane %v1925, 7
    %v1935 = vrot.slane %v1926, 7
    %v1936 = vsel %vm1746, %v1934, %v1935
    %1937 = vrot.lane.b32.xlu0 %v1933, 122
    %v1938 = vpop.permute.xlu0 %1937
    %1939 = vrot.lane.b32.xlu0 %v1932, 122
    %v1940 = vpop.permute.xlu0 %1939
    %1941 = vrot.lane.b32.xlu0 %v1936, 122
    %v1942 = vpop.permute.xlu0 %1941
    %1943 = vrot.lane.b32.xlu0 %v1935, 122
    %v1944 = vpop.permute.xlu0 %1943
    %v1949 = vadd.f32 %v1917, %v1938
    %v1950 = vadd.f32 %v1918, %v1940
    %v1951 = vadd.f32 %v1919, %v1942
    %v1952 = vadd.f32 %v1920, %v1944
    %s1953 = sld [smem:[#allocation6 + $0x3f]]
    %v1954 = vstv %s1953
    %v1955 = vmul.f32 %v1954, %v42
    %v1956 = vmul.f32 %v1954, %v43
    %v1957 = vmul.f32 %v1954, %v46
    %v1958 = vmul.f32 %v1954, %v47
    %v1963 = vrot.slane %v1955, 7
    %v1964 = vrot.slane %v1956, 7
    %v1965 = vsel %vm1746, %v1963, %v1964
    %v1966 = vrot.slane %v1957, 7
    %v1967 = vrot.slane %v1958, 7
    %v1968 = vsel %vm1746, %v1966, %v1967
    %1969 = vrot.lane.b32.xlu0 %v1965, 121
    %v1970 = vpop.permute.xlu0 %1969
    %1971 = vrot.lane.b32.xlu0 %v1964, 121
    %v1972 = vpop.permute.xlu0 %1971
    %1973 = vrot.lane.b32.xlu0 %v1968, 121
    %v1974 = vpop.permute.xlu0 %1973
    %1975 = vrot.lane.b32.xlu0 %v1967, 121
    %v1976 = vpop.permute.xlu0 %1975
    %v1981 = vadd.f32 %v1949, %v1970
    %v1982 = vadd.f32 %v1950, %v1972
    %v1983 = vadd.f32 %v1951, %v1974
    %v1984 = vadd.f32 %v1952, %v1976
    %s1985 = sld [smem:[#allocation6 + $0x40]]
    %v1986 = vstv %s1985
    %v1987 = vmul.f32 %v1986, %v44
    %v1988 = vmul.f32 %v1986, %v45
    %v1989 = vmul.f32 %v1986, %v48
    %v1990 = vmul.f32 %v1986, %v49
    %v1991 = vadd.f32 %v1981, %v1987
    %v1992 = vadd.f32 %v1982, %v1988
    %v1993 = vadd.f32 %v1983, %v1989
    %v1994 = vadd.f32 %v1984, %v1990
    %s1995 = sld [smem:[#allocation6 + $0x41]]
    %v1996 = vstv %s1995
    %v1997 = vmul.f32 %v1996, %v44
    %v1998 = vmul.f32 %v1996, %v45
    %v1999 = vmul.f32 %v1996, %v48
    %v2000 = vmul.f32 %v1996, %v49
    %2005 = vrot.lane.b32.xlu0 %v1997, 127
    %v2006 = vpop.permute.xlu0 %2005
    %2007 = vrot.lane.b32.xlu0 %v1998, 127
    %v2008 = vpop.permute.xlu0 %2007
    %2009 = vrot.lane.b32.xlu0 %v1999, 127
    %v2010 = vpop.permute.xlu0 %2009
    %2011 = vrot.lane.b32.xlu0 %v2000, 127
    %v2012 = vpop.permute.xlu0 %2011
    %v2017 = vadd.f32 %v1991, %v2006
    %v2018 = vadd.f32 %v1992, %v2008
    %v2019 = vadd.f32 %v1993, %v2010
    %v2020 = vadd.f32 %v1994, %v2012
    %s2021 = sld [smem:[#allocation6 + $0x42]]
    %v2022 = vstv %s2021
    %v2023 = vmul.f32 %v2022, %v44
    %v2024 = vmul.f32 %v2022, %v45
    %v2025 = vmul.f32 %v2022, %v48
    %v2026 = vmul.f32 %v2022, %v49
    %2031 = vrot.lane.b32.xlu0 %v2023, 126
    %v2032 = vpop.permute.xlu0 %2031
    %2033 = vrot.lane.b32.xlu0 %v2024, 126
    %v2034 = vpop.permute.xlu0 %2033
    %2035 = vrot.lane.b32.xlu0 %v2025, 126
    %v2036 = vpop.permute.xlu0 %2035
    %2037 = vrot.lane.b32.xlu0 %v2026, 126
    %v2038 = vpop.permute.xlu0 %2037
    %v2043 = vadd.f32 %v2017, %v2032
    %v2044 = vadd.f32 %v2018, %v2034
    %v2045 = vadd.f32 %v2019, %v2036
    %v2046 = vadd.f32 %v2020, %v2038
    %s2047 = sld [smem:[#allocation6 + $0x43]]
    %v2048 = vstv %s2047
    %v2049 = vmul.f32 %v2048, %v44
    %v2050 = vmul.f32 %v2048, %v45
    %v2051 = vmul.f32 %v2048, %v48
    %v2052 = vmul.f32 %v2048, %v49
    %2057 = vrot.lane.b32.xlu0 %v2049, 125
    %v2058 = vpop.permute.xlu0 %2057
    %2059 = vrot.lane.b32.xlu0 %v2050, 125
    %v2060 = vpop.permute.xlu0 %2059
    %2061 = vrot.lane.b32.xlu0 %v2051, 125
    %v2062 = vpop.permute.xlu0 %2061
    %2063 = vrot.lane.b32.xlu0 %v2052, 125
    %v2064 = vpop.permute.xlu0 %2063
    %v2069 = vadd.f32 %v2043, %v2058
    %v2070 = vadd.f32 %v2044, %v2060
    %v2071 = vadd.f32 %v2045, %v2062
    %v2072 = vadd.f32 %v2046, %v2064
    %s2073 = sld [smem:[#allocation6 + $0x44]]
    %v2074 = vstv %s2073
    %v2075 = vmul.f32 %v2074, %v44
    %v2076 = vmul.f32 %v2074, %v45
    %v2077 = vmul.f32 %v2074, %v48
    %v2078 = vmul.f32 %v2074, %v49
    %2083 = vrot.lane.b32.xlu0 %v2075, 124
    %v2084 = vpop.permute.xlu0 %2083
    %2085 = vrot.lane.b32.xlu0 %v2076, 124
    %v2086 = vpop.permute.xlu0 %2085
    %2087 = vrot.lane.b32.xlu0 %v2077, 124
    %v2088 = vpop.permute.xlu0 %2087
    %2089 = vrot.lane.b32.xlu0 %v2078, 124
    %v2090 = vpop.permute.xlu0 %2089
    %v2095 = vadd.f32 %v2069, %v2084
    %v2096 = vadd.f32 %v2070, %v2086
    %v2097 = vadd.f32 %v2071, %v2088
    %v2098 = vadd.f32 %v2072, %v2090
    %s2099 = sld [smem:[#allocation6 + $0x45]]
    %v2100 = vstv %s2099
    %v2101 = vmul.f32 %v2100, %v44
    %v2102 = vmul.f32 %v2100, %v45
    %v2103 = vmul.f32 %v2100, %v48
    %v2104 = vmul.f32 %v2100, %v49
    %2109 = vrot.lane.b32.xlu0 %v2101, 123
    %v2110 = vpop.permute.xlu0 %2109
    %2111 = vrot.lane.b32.xlu0 %v2102, 123
    %v2112 = vpop.permute.xlu0 %2111
    %2113 = vrot.lane.b32.xlu0 %v2103, 123
    %v2114 = vpop.permute.xlu0 %2113
    %2115 = vrot.lane.b32.xlu0 %v2104, 123
    %v2116 = vpop.permute.xlu0 %2115
    %v2121 = vadd.f32 %v2095, %v2110
    %v2122 = vadd.f32 %v2096, %v2112
    %v2123 = vadd.f32 %v2097, %v2114
    %v2124 = vadd.f32 %v2098, %v2116
    %s2125 = sld [smem:[#allocation6 + $0x46]]
    %v2126 = vstv %s2125
    %v2127 = vmul.f32 %v2126, %v44
    %v2128 = vmul.f32 %v2126, %v45
    %v2129 = vmul.f32 %v2126, %v48
    %v2130 = vmul.f32 %v2126, %v49
    %2135 = vrot.lane.b32.xlu0 %v2127, 122
    %v2136 = vpop.permute.xlu0 %2135
    %2137 = vrot.lane.b32.xlu0 %v2128, 122
    %v2138 = vpop.permute.xlu0 %2137
    %2139 = vrot.lane.b32.xlu0 %v2129, 122
    %v2140 = vpop.permute.xlu0 %2139
    %2141 = vrot.lane.b32.xlu0 %v2130, 122
    %v2142 = vpop.permute.xlu0 %2141
    %v2147 = vadd.f32 %v2121, %v2136
    %v2148 = vadd.f32 %v2122, %v2138
    %v2149 = vadd.f32 %v2123, %v2140
    %v2150 = vadd.f32 %v2124, %v2142
    %s2151 = sld [smem:[#allocation6 + $0x47]]
    %v2152 = vstv %s2151
    %v2153 = vmul.f32 %v2152, %v44
    %v2154 = vmul.f32 %v2152, %v45
    %v2155 = vmul.f32 %v2152, %v48
    %v2156 = vmul.f32 %v2152, %v49
    %2161 = vrot.lane.b32.xlu0 %v2153, 121
    %v2162 = vpop.permute.xlu0 %2161
    %2163 = vrot.lane.b32.xlu0 %v2154, 121
    %v2164 = vpop.permute.xlu0 %2163
    %2165 = vrot.lane.b32.xlu0 %v2155, 121
    %v2166 = vpop.permute.xlu0 %2165
    %2167 = vrot.lane.b32.xlu0 %v2156, 121
    %v2168 = vpop.permute.xlu0 %2167
    %v2173 = vadd.f32 %v2147, %v2162
    %v2174 = vadd.f32 %v2148, %v2164
    %v2175 = vadd.f32 %v2149, %v2166
    %v2176 = vadd.f32 %v2150, %v2168
    %s2177 = sld [smem:[#allocation6 + $0x48]]
    %v2178 = vstv %s2177
    %v2179 = vmul.f32 %v2178, %v44
    %v2180 = vmul.f32 %v2178, %v45
    %v2181 = vmul.f32 %v2178, %v48
    %v2182 = vmul.f32 %v2178, %v49
    %v2187 = vrot.slane %v2179, 1
    %v2188 = vrot.slane %v2180, 1
    %v2189 = vsel %vm252, %v2187, %v2188
    %v2190 = vrot.slane %v2181, 1
    %v2191 = vrot.slane %v2182, 1
    %v2192 = vsel %vm252, %v2190, %v2191
    %v2197 = vadd.f32 %v2173, %v2189
    %v2198 = vadd.f32 %v2174, %v2188
    %v2199 = vadd.f32 %v2175, %v2192
    %v2200 = vadd.f32 %v2176, %v2191
    %s2201 = sld [smem:[#allocation6 + $0x49]]
    %v2202 = vstv %s2201
    %v2203 = vmul.f32 %v2202, %v44
    %v2204 = vmul.f32 %v2202, %v45
    %v2205 = vmul.f32 %v2202, %v48
    %v2206 = vmul.f32 %v2202, %v49
    %v2211 = vrot.slane %v2203, 1
    %v2212 = vrot.slane %v2204, 1
    %v2213 = vsel %vm252, %v2211, %v2212
    %v2214 = vrot.slane %v2205, 1
    %v2215 = vrot.slane %v2206, 1
    %v2216 = vsel %vm252, %v2214, %v2215
    %2217 = vrot.lane.b32.xlu0 %v2213, 127
    %v2218 = vpop.permute.xlu0 %2217
    %2219 = vrot.lane.b32.xlu0 %v2212, 127
    %v2220 = vpop.permute.xlu0 %2219
    %2221 = vrot.lane.b32.xlu0 %v2216, 127
    %v2222 = vpop.permute.xlu0 %2221
    %2223 = vrot.lane.b32.xlu0 %v2215, 127
    %v2224 = vpop.permute.xlu0 %2223
    %v2229 = vadd.f32 %v2197, %v2218
    %v2230 = vadd.f32 %v2198, %v2220
    %v2231 = vadd.f32 %v2199, %v2222
    %v2232 = vadd.f32 %v2200, %v2224
    %s2233 = sld [smem:[#allocation6 + $0x4a]]
    %v2234 = vstv %s2233
    %v2235 = vmul.f32 %v2234, %v44
    %v2236 = vmul.f32 %v2234, %v45
    %v2237 = vmul.f32 %v2234, %v48
    %v2238 = vmul.f32 %v2234, %v49
    %v2243 = vrot.slane %v2235, 1
    %v2244 = vrot.slane %v2236, 1
    %v2245 = vsel %vm252, %v2243, %v2244
    %v2246 = vrot.slane %v2237, 1
    %v2247 = vrot.slane %v2238, 1
    %v2248 = vsel %vm252, %v2246, %v2247
    %2249 = vrot.lane.b32.xlu0 %v2245, 126
    %v2250 = vpop.permute.xlu0 %2249
    %2251 = vrot.lane.b32.xlu0 %v2244, 126
    %v2252 = vpop.permute.xlu0 %2251
    %2253 = vrot.lane.b32.xlu0 %v2248, 126
    %v2254 = vpop.permute.xlu0 %2253
    %2255 = vrot.lane.b32.xlu0 %v2247, 126
    %v2256 = vpop.permute.xlu0 %2255
    %v2261 = vadd.f32 %v2229, %v2250
    %v2262 = vadd.f32 %v2230, %v2252
    %v2263 = vadd.f32 %v2231, %v2254
    %v2264 = vadd.f32 %v2232, %v2256
    %s2265 = sld [smem:[#allocation6 + $0x4b]]
    %v2266 = vstv %s2265
    %v2267 = vmul.f32 %v2266, %v44
    %v2268 = vmul.f32 %v2266, %v45
    %v2269 = vmul.f32 %v2266, %v48
    %v2270 = vmul.f32 %v2266, %v49
    %v2275 = vrot.slane %v2267, 1
    %v2276 = vrot.slane %v2268, 1
    %v2277 = vsel %vm252, %v2275, %v2276
    %v2278 = vrot.slane %v2269, 1
    %v2279 = vrot.slane %v2270, 1
    %v2280 = vsel %vm252, %v2278, %v2279
    %2281 = vrot.lane.b32.xlu0 %v2277, 125
    %v2282 = vpop.permute.xlu0 %2281
    %2283 = vrot.lane.b32.xlu0 %v2276, 125
    %v2284 = vpop.permute.xlu0 %2283
    %2285 = vrot.lane.b32.xlu0 %v2280, 125
    %v2286 = vpop.permute.xlu0 %2285
    %2287 = vrot.lane.b32.xlu0 %v2279, 125
    %v2288 = vpop.permute.xlu0 %2287
    %v2293 = vadd.f32 %v2261, %v2282
    %v2294 = vadd.f32 %v2262, %v2284
    %v2295 = vadd.f32 %v2263, %v2286
    %v2296 = vadd.f32 %v2264, %v2288
    %s2297 = sld [smem:[#allocation6 + $0x4c]]
    %v2298 = vstv %s2297
    %v2299 = vmul.f32 %v2298, %v44
    %v2300 = vmul.f32 %v2298, %v45
    %v2301 = vmul.f32 %v2298, %v48
    %v2302 = vmul.f32 %v2298, %v49
    %v2307 = vrot.slane %v2299, 1
    %v2308 = vrot.slane %v2300, 1
    %v2309 = vsel %vm252, %v2307, %v2308
    %v2310 = vrot.slane %v2301, 1
    %v2311 = vrot.slane %v2302, 1
    %v2312 = vsel %vm252, %v2310, %v2311
    %2313 = vrot.lane.b32.xlu0 %v2309, 124
    %v2314 = vpop.permute.xlu0 %2313
    %2315 = vrot.lane.b32.xlu0 %v2308, 124
    %v2316 = vpop.permute.xlu0 %2315
    %2317 = vrot.lane.b32.xlu0 %v2312, 124
    %v2318 = vpop.permute.xlu0 %2317
    %2319 = vrot.lane.b32.xlu0 %v2311, 124
    %v2320 = vpop.permute.xlu0 %2319
    %v2325 = vadd.f32 %v2293, %v2314
    %v2326 = vadd.f32 %v2294, %v2316
    %v2327 = vadd.f32 %v2295, %v2318
    %v2328 = vadd.f32 %v2296, %v2320
    %s2329 = sld [smem:[#allocation6 + $0x4d]]
    %v2330 = vstv %s2329
    %v2331 = vmul.f32 %v2330, %v44
    %v2332 = vmul.f32 %v2330, %v45
    %v2333 = vmul.f32 %v2330, %v48
    %v2334 = vmul.f32 %v2330, %v49
    %v2339 = vrot.slane %v2331, 1
    %v2340 = vrot.slane %v2332, 1
    %v2341 = vsel %vm252, %v2339, %v2340
    %v2342 = vrot.slane %v2333, 1
    %v2343 = vrot.slane %v2334, 1
    %v2344 = vsel %vm252, %v2342, %v2343
    %2345 = vrot.lane.b32.xlu0 %v2341, 123
    %v2346 = vpop.permute.xlu0 %2345
    %2347 = vrot.lane.b32.xlu0 %v2340, 123
    %v2348 = vpop.permute.xlu0 %2347
    %2349 = vrot.lane.b32.xlu0 %v2344, 123
    %v2350 = vpop.permute.xlu0 %2349
    %2351 = vrot.lane.b32.xlu0 %v2343, 123
    %v2352 = vpop.permute.xlu0 %2351
    %v2357 = vadd.f32 %v2325, %v2346
    %v2358 = vadd.f32 %v2326, %v2348
    %v2359 = vadd.f32 %v2327, %v2350
    %v2360 = vadd.f32 %v2328, %v2352
    %s2361 = sld [smem:[#allocation6 + $0x4e]]
    %v2362 = vstv %s2361
    %v2363 = vmul.f32 %v2362, %v44
    %v2364 = vmul.f32 %v2362, %v45
    %v2365 = vmul.f32 %v2362, %v48
    %v2366 = vmul.f32 %v2362, %v49
    %v2371 = vrot.slane %v2363, 1
    %v2372 = vrot.slane %v2364, 1
    %v2373 = vsel %vm252, %v2371, %v2372
    %v2374 = vrot.slane %v2365, 1
    %v2375 = vrot.slane %v2366, 1
    %v2376 = vsel %vm252, %v2374, %v2375
    %2377 = vrot.lane.b32.xlu0 %v2373, 122
    %v2378 = vpop.permute.xlu0 %2377
    %2379 = vrot.lane.b32.xlu0 %v2372, 122
    %v2380 = vpop.permute.xlu0 %2379
    %2381 = vrot.lane.b32.xlu0 %v2376, 122
    %v2382 = vpop.permute.xlu0 %2381
    %2383 = vrot.lane.b32.xlu0 %v2375, 122
    %v2384 = vpop.permute.xlu0 %2383
    %v2389 = vadd.f32 %v2357, %v2378
    %v2390 = vadd.f32 %v2358, %v2380
    %v2391 = vadd.f32 %v2359, %v2382
    %v2392 = vadd.f32 %v2360, %v2384
    %s2393 = sld [smem:[#allocation6 + $0x4f]]
    %v2394 = vstv %s2393
    %v2395 = vmul.f32 %v2394, %v44
    %v2396 = vmul.f32 %v2394, %v45
    %v2397 = vmul.f32 %v2394, %v48
    %v2398 = vmul.f32 %v2394, %v49
    %v2403 = vrot.slane %v2395, 1
    %v2404 = vrot.slane %v2396, 1
    %v2405 = vsel %vm252, %v2403, %v2404
    %v2406 = vrot.slane %v2397, 1
    %v2407 = vrot.slane %v2398, 1
    %v2408 = vsel %vm252, %v2406, %v2407
    %2409 = vrot.lane.b32.xlu0 %v2405, 121
    %v2410 = vpop.permute.xlu0 %2409
    %2411 = vrot.lane.b32.xlu0 %v2404, 121
    %v2412 = vpop.permute.xlu0 %2411
    %2413 = vrot.lane.b32.xlu0 %v2408, 121
    %v2414 = vpop.permute.xlu0 %2413
    %2415 = vrot.lane.b32.xlu0 %v2407, 121
    %v2416 = vpop.permute.xlu0 %2415
    %v2421 = vadd.f32 %v2389, %v2410
    %v2422 = vadd.f32 %v2390, %v2412
    %v2423 = vadd.f32 %v2391, %v2414
    %v2424 = vadd.f32 %v2392, %v2416
    %s2425 = sld [smem:[#allocation6 + $0x50]]
    %v2426 = vstv %s2425
    %v2427 = vmul.f32 %v2426, %v44
    %v2428 = vmul.f32 %v2426, %v45
    %v2429 = vmul.f32 %v2426, %v48
    %v2430 = vmul.f32 %v2426, %v49
    %v2435 = vrot.slane %v2427, 2
    %v2436 = vrot.slane %v2428, 2
    %v2437 = vsel %vm501, %v2435, %v2436
    %v2438 = vrot.slane %v2429, 2
    %v2439 = vrot.slane %v2430, 2
    %v2440 = vsel %vm501, %v2438, %v2439
    %v2445 = vadd.f32 %v2421, %v2437
    %v2446 = vadd.f32 %v2422, %v2436
    %v2447 = vadd.f32 %v2423, %v2440
    %v2448 = vadd.f32 %v2424, %v2439
    %s2449 = sld [smem:[#allocation6 + $0x51]]
    %v2450 = vstv %s2449
    %v2451 = vmul.f32 %v2450, %v44
    %v2452 = vmul.f32 %v2450, %v45
    %v2453 = vmul.f32 %v2450, %v48
    %v2454 = vmul.f32 %v2450, %v49
    %v2459 = vrot.slane %v2451, 2
    %v2460 = vrot.slane %v2452, 2
    %v2461 = vsel %vm501, %v2459, %v2460
    %v2462 = vrot.slane %v2453, 2
    %v2463 = vrot.slane %v2454, 2
    %v2464 = vsel %vm501, %v2462, %v2463
    %2465 = vrot.lane.b32.xlu0 %v2461, 127
    %v2466 = vpop.permute.xlu0 %2465
    %2467 = vrot.lane.b32.xlu0 %v2460, 127
    %v2468 = vpop.permute.xlu0 %2467
    %2469 = vrot.lane.b32.xlu0 %v2464, 127
    %v2470 = vpop.permute.xlu0 %2469
    %2471 = vrot.lane.b32.xlu0 %v2463, 127
    %v2472 = vpop.permute.xlu0 %2471
    %v2477 = vadd.f32 %v2445, %v2466
    %v2478 = vadd.f32 %v2446, %v2468
    %v2479 = vadd.f32 %v2447, %v2470
    %v2480 = vadd.f32 %v2448, %v2472
    %s2481 = sld [smem:[#allocation6 + $0x52]]
    %v2482 = vstv %s2481
    %v2483 = vmul.f32 %v2482, %v44
    %v2484 = vmul.f32 %v2482, %v45
    %v2485 = vmul.f32 %v2482, %v48
    %v2486 = vmul.f32 %v2482, %v49
    %v2491 = vrot.slane %v2483, 2
    %v2492 = vrot.slane %v2484, 2
    %v2493 = vsel %vm501, %v2491, %v2492
    %v2494 = vrot.slane %v2485, 2
    %v2495 = vrot.slane %v2486, 2
    %v2496 = vsel %vm501, %v2494, %v2495
    %2497 = vrot.lane.b32.xlu0 %v2493, 126
    %v2498 = vpop.permute.xlu0 %2497
    %2499 = vrot.lane.b32.xlu0 %v2492, 126
    %v2500 = vpop.permute.xlu0 %2499
    %2501 = vrot.lane.b32.xlu0 %v2496, 126
    %v2502 = vpop.permute.xlu0 %2501
    %2503 = vrot.lane.b32.xlu0 %v2495, 126
    %v2504 = vpop.permute.xlu0 %2503
    %v2509 = vadd.f32 %v2477, %v2498
    %v2510 = vadd.f32 %v2478, %v2500
    %v2511 = vadd.f32 %v2479, %v2502
    %v2512 = vadd.f32 %v2480, %v2504
    %s2513 = sld [smem:[#allocation6 + $0x53]]
    %v2514 = vstv %s2513
    %v2515 = vmul.f32 %v2514, %v44
    %v2516 = vmul.f32 %v2514, %v45
    %v2517 = vmul.f32 %v2514, %v48
    %v2518 = vmul.f32 %v2514, %v49
    %v2523 = vrot.slane %v2515, 2
    %v2524 = vrot.slane %v2516, 2
    %v2525 = vsel %vm501, %v2523, %v2524
    %v2526 = vrot.slane %v2517, 2
    %v2527 = vrot.slane %v2518, 2
    %v2528 = vsel %vm501, %v2526, %v2527
    %2529 = vrot.lane.b32.xlu0 %v2525, 125
    %v2530 = vpop.permute.xlu0 %2529
    %2531 = vrot.lane.b32.xlu0 %v2524, 125
    %v2532 = vpop.permute.xlu0 %2531
    %2533 = vrot.lane.b32.xlu0 %v2528, 125
    %v2534 = vpop.permute.xlu0 %2533
    %2535 = vrot.lane.b32.xlu0 %v2527, 125
    %v2536 = vpop.permute.xlu0 %2535
    %v2541 = vadd.f32 %v2509, %v2530
    %v2542 = vadd.f32 %v2510, %v2532
    %v2543 = vadd.f32 %v2511, %v2534
    %v2544 = vadd.f32 %v2512, %v2536
    %s2545 = sld [smem:[#allocation6 + $0x54]]
    %v2546 = vstv %s2545
    %v2547 = vmul.f32 %v2546, %v44
    %v2548 = vmul.f32 %v2546, %v45
    %v2549 = vmul.f32 %v2546, %v48
    %v2550 = vmul.f32 %v2546, %v49
    %v2555 = vrot.slane %v2547, 2
    %v2556 = vrot.slane %v2548, 2
    %v2557 = vsel %vm501, %v2555, %v2556
    %v2558 = vrot.slane %v2549, 2
    %v2559 = vrot.slane %v2550, 2
    %v2560 = vsel %vm501, %v2558, %v2559
    %2561 = vrot.lane.b32.xlu0 %v2557, 124
    %v2562 = vpop.permute.xlu0 %2561
    %2563 = vrot.lane.b32.xlu0 %v2556, 124
    %v2564 = vpop.permute.xlu0 %2563
    %2565 = vrot.lane.b32.xlu0 %v2560, 124
    %v2566 = vpop.permute.xlu0 %2565
    %2567 = vrot.lane.b32.xlu0 %v2559, 124
    %v2568 = vpop.permute.xlu0 %2567
    %v2573 = vadd.f32 %v2541, %v2562
    %v2574 = vadd.f32 %v2542, %v2564
    %v2575 = vadd.f32 %v2543, %v2566
    %v2576 = vadd.f32 %v2544, %v2568
    %s2577 = sld [smem:[#allocation6 + $0x55]]
    %v2578 = vstv %s2577
    %v2579 = vmul.f32 %v2578, %v44
    %v2580 = vmul.f32 %v2578, %v45
    %v2581 = vmul.f32 %v2578, %v48
    %v2582 = vmul.f32 %v2578, %v49
    %v2587 = vrot.slane %v2579, 2
    %v2588 = vrot.slane %v2580, 2
    %v2589 = vsel %vm501, %v2587, %v2588
    %v2590 = vrot.slane %v2581, 2
    %v2591 = vrot.slane %v2582, 2
    %v2592 = vsel %vm501, %v2590, %v2591
    %2593 = vrot.lane.b32.xlu0 %v2589, 123
    %v2594 = vpop.permute.xlu0 %2593
    %2595 = vrot.lane.b32.xlu0 %v2588, 123
    %v2596 = vpop.permute.xlu0 %2595
    %2597 = vrot.lane.b32.xlu0 %v2592, 123
    %v2598 = vpop.permute.xlu0 %2597
    %2599 = vrot.lane.b32.xlu0 %v2591, 123
    %v2600 = vpop.permute.xlu0 %2599
    %v2605 = vadd.f32 %v2573, %v2594
    %v2606 = vadd.f32 %v2574, %v2596
    %v2607 = vadd.f32 %v2575, %v2598
    %v2608 = vadd.f32 %v2576, %v2600
    %s2609 = sld [smem:[#allocation6 + $0x56]]
    %v2610 = vstv %s2609
    %v2611 = vmul.f32 %v2610, %v44
    %v2612 = vmul.f32 %v2610, %v45
    %v2613 = vmul.f32 %v2610, %v48
    %v2614 = vmul.f32 %v2610, %v49
    %v2619 = vrot.slane %v2611, 2
    %v2620 = vrot.slane %v2612, 2
    %v2621 = vsel %vm501, %v2619, %v2620
    %v2622 = vrot.slane %v2613, 2
    %v2623 = vrot.slane %v2614, 2
    %v2624 = vsel %vm501, %v2622, %v2623
    %2625 = vrot.lane.b32.xlu0 %v2621, 122
    %v2626 = vpop.permute.xlu0 %2625
    %2627 = vrot.lane.b32.xlu0 %v2620, 122
    %v2628 = vpop.permute.xlu0 %2627
    %2629 = vrot.lane.b32.xlu0 %v2624, 122
    %v2630 = vpop.permute.xlu0 %2629
    %2631 = vrot.lane.b32.xlu0 %v2623, 122
    %v2632 = vpop.permute.xlu0 %2631
    %v2637 = vadd.f32 %v2605, %v2626
    %v2638 = vadd.f32 %v2606, %v2628
    %v2639 = vadd.f32 %v2607, %v2630
    %v2640 = vadd.f32 %v2608, %v2632
    %s2641 = sld [smem:[#allocation6 + $0x57]]
    %v2642 = vstv %s2641
    %v2643 = vmul.f32 %v2642, %v44
    %v2644 = vmul.f32 %v2642, %v45
    %v2645 = vmul.f32 %v2642, %v48
    %v2646 = vmul.f32 %v2642, %v49
    %v2651 = vrot.slane %v2643, 2
    %v2652 = vrot.slane %v2644, 2
    %v2653 = vsel %vm501, %v2651, %v2652
    %v2654 = vrot.slane %v2645, 2
    %v2655 = vrot.slane %v2646, 2
    %v2656 = vsel %vm501, %v2654, %v2655
    %2657 = vrot.lane.b32.xlu0 %v2653, 121
    %v2658 = vpop.permute.xlu0 %2657
    %2659 = vrot.lane.b32.xlu0 %v2652, 121
    %v2660 = vpop.permute.xlu0 %2659
    %2661 = vrot.lane.b32.xlu0 %v2656, 121
    %v2662 = vpop.permute.xlu0 %2661
    %2663 = vrot.lane.b32.xlu0 %v2655, 121
    %v2664 = vpop.permute.xlu0 %2663
    %v2669 = vadd.f32 %v2637, %v2658
    %v2670 = vadd.f32 %v2638, %v2660
    %v2671 = vadd.f32 %v2639, %v2662
    %v2672 = vadd.f32 %v2640, %v2664
    %s2673 = sld [smem:[#allocation6 + $0x58]]
    %v2674 = vstv %s2673
    %v2675 = vmul.f32 %v2674, %v44
    %v2676 = vmul.f32 %v2674, %v45
    %v2677 = vmul.f32 %v2674, %v48
    %v2678 = vmul.f32 %v2674, %v49
    %v2683 = vrot.slane %v2675, 3
    %v2684 = vrot.slane %v2676, 3
    %v2685 = vsel %vm750, %v2683, %v2684
    %v2686 = vrot.slane %v2677, 3
    %v2687 = vrot.slane %v2678, 3
    %v2688 = vsel %vm750, %v2686, %v2687
    %v2693 = vadd.f32 %v2669, %v2685
    %v2694 = vadd.f32 %v2670, %v2684
    %v2695 = vadd.f32 %v2671, %v2688
    %v2696 = vadd.f32 %v2672, %v2687
    %s2697 = sld [smem:[#allocation6 + $0x59]]
    %v2698 = vstv %s2697
    %v2699 = vmul.f32 %v2698, %v44
    %v2700 = vmul.f32 %v2698, %v45
    %v2701 = vmul.f32 %v2698, %v48
    %v2702 = vmul.f32 %v2698, %v49
    %v2707 = vrot.slane %v2699, 3
    %v2708 = vrot.slane %v2700, 3
    %v2709 = vsel %vm750, %v2707, %v2708
    %v2710 = vrot.slane %v2701, 3
    %v2711 = vrot.slane %v2702, 3
    %v2712 = vsel %vm750, %v2710, %v2711
    %2713 = vrot.lane.b32.xlu0 %v2709, 127
    %v2714 = vpop.permute.xlu0 %2713
    %2715 = vrot.lane.b32.xlu0 %v2708, 127
    %v2716 = vpop.permute.xlu0 %2715
    %2717 = vrot.lane.b32.xlu0 %v2712, 127
    %v2718 = vpop.permute.xlu0 %2717
    %2719 = vrot.lane.b32.xlu0 %v2711, 127
    %v2720 = vpop.permute.xlu0 %2719
    %v2725 = vadd.f32 %v2693, %v2714
    %v2726 = vadd.f32 %v2694, %v2716
    %v2727 = vadd.f32 %v2695, %v2718
    %v2728 = vadd.f32 %v2696, %v2720
    %s2729 = sld [smem:[#allocation6 + $0x5a]]
    %v2730 = vstv %s2729
    %v2731 = vmul.f32 %v2730, %v44
    %v2732 = vmul.f32 %v2730, %v45
    %v2733 = vmul.f32 %v2730, %v48
    %v2734 = vmul.f32 %v2730, %v49
    %v2739 = vrot.slane %v2731, 3
    %v2740 = vrot.slane %v2732, 3
    %v2741 = vsel %vm750, %v2739, %v2740
    %v2742 = vrot.slane %v2733, 3
    %v2743 = vrot.slane %v2734, 3
    %v2744 = vsel %vm750, %v2742, %v2743
    %2745 = vrot.lane.b32.xlu0 %v2741, 126
    %v2746 = vpop.permute.xlu0 %2745
    %2747 = vrot.lane.b32.xlu0 %v2740, 126
    %v2748 = vpop.permute.xlu0 %2747
    %2749 = vrot.lane.b32.xlu0 %v2744, 126
    %v2750 = vpop.permute.xlu0 %2749
    %2751 = vrot.lane.b32.xlu0 %v2743, 126
    %v2752 = vpop.permute.xlu0 %2751
    %v2757 = vadd.f32 %v2725, %v2746
    %v2758 = vadd.f32 %v2726, %v2748
    %v2759 = vadd.f32 %v2727, %v2750
    %v2760 = vadd.f32 %v2728, %v2752
    %s2761 = sld [smem:[#allocation6 + $0x5b]]
    %v2762 = vstv %s2761
    %v2763 = vmul.f32 %v2762, %v44
    %v2764 = vmul.f32 %v2762, %v45
    %v2765 = vmul.f32 %v2762, %v48
    %v2766 = vmul.f32 %v2762, %v49
    %v2771 = vrot.slane %v2763, 3
    %v2772 = vrot.slane %v2764, 3
    %v2773 = vsel %vm750, %v2771, %v2772
    %v2774 = vrot.slane %v2765, 3
    %v2775 = vrot.slane %v2766, 3
    %v2776 = vsel %vm750, %v2774, %v2775
    %2777 = vrot.lane.b32.xlu0 %v2773, 125
    %v2778 = vpop.permute.xlu0 %2777
    %2779 = vrot.lane.b32.xlu0 %v2772, 125
    %v2780 = vpop.permute.xlu0 %2779
    %2781 = vrot.lane.b32.xlu0 %v2776, 125
    %v2782 = vpop.permute.xlu0 %2781
    %2783 = vrot.lane.b32.xlu0 %v2775, 125
    %v2784 = vpop.permute.xlu0 %2783
    %v2789 = vadd.f32 %v2757, %v2778
    %v2790 = vadd.f32 %v2758, %v2780
    %v2791 = vadd.f32 %v2759, %v2782
    %v2792 = vadd.f32 %v2760, %v2784
    %s2793 = sld [smem:[#allocation6 + $0x5c]]
    %v2794 = vstv %s2793
    %v2795 = vmul.f32 %v2794, %v44
    %v2796 = vmul.f32 %v2794, %v45
    %v2797 = vmul.f32 %v2794, %v48
    %v2798 = vmul.f32 %v2794, %v49
    %v2803 = vrot.slane %v2795, 3
    %v2804 = vrot.slane %v2796, 3
    %v2805 = vsel %vm750, %v2803, %v2804
    %v2806 = vrot.slane %v2797, 3
    %v2807 = vrot.slane %v2798, 3
    %v2808 = vsel %vm750, %v2806, %v2807
    %2809 = vrot.lane.b32.xlu0 %v2805, 124
    %v2810 = vpop.permute.xlu0 %2809
    %2811 = vrot.lane.b32.xlu0 %v2804, 124
    %v2812 = vpop.permute.xlu0 %2811
    %2813 = vrot.lane.b32.xlu0 %v2808, 124
    %v2814 = vpop.permute.xlu0 %2813
    %2815 = vrot.lane.b32.xlu0 %v2807, 124
    %v2816 = vpop.permute.xlu0 %2815
    %v2821 = vadd.f32 %v2789, %v2810
    %v2822 = vadd.f32 %v2790, %v2812
    %v2823 = vadd.f32 %v2791, %v2814
    %v2824 = vadd.f32 %v2792, %v2816
    %s2825 = sld [smem:[#allocation6 + $0x5d]]
    %v2826 = vstv %s2825
    %v2827 = vmul.f32 %v2826, %v44
    %v2828 = vmul.f32 %v2826, %v45
    %v2829 = vmul.f32 %v2826, %v48
    %v2830 = vmul.f32 %v2826, %v49
    %v2835 = vrot.slane %v2827, 3
    %v2836 = vrot.slane %v2828, 3
    %v2837 = vsel %vm750, %v2835, %v2836
    %v2838 = vrot.slane %v2829, 3
    %v2839 = vrot.slane %v2830, 3
    %v2840 = vsel %vm750, %v2838, %v2839
    %2841 = vrot.lane.b32.xlu0 %v2837, 123
    %v2842 = vpop.permute.xlu0 %2841
    %2843 = vrot.lane.b32.xlu0 %v2836, 123
    %v2844 = vpop.permute.xlu0 %2843
    %2845 = vrot.lane.b32.xlu0 %v2840, 123
    %v2846 = vpop.permute.xlu0 %2845
    %2847 = vrot.lane.b32.xlu0 %v2839, 123
    %v2848 = vpop.permute.xlu0 %2847
    %v2853 = vadd.f32 %v2821, %v2842
    %v2854 = vadd.f32 %v2822, %v2844
    %v2855 = vadd.f32 %v2823, %v2846
    %v2856 = vadd.f32 %v2824, %v2848
    %s2857 = sld [smem:[#allocation6 + $0x5e]]
    %v2858 = vstv %s2857
    %v2859 = vmul.f32 %v2858, %v44
    %v2860 = vmul.f32 %v2858, %v45
    %v2861 = vmul.f32 %v2858, %v48
    %v2862 = vmul.f32 %v2858, %v49
    %v2867 = vrot.slane %v2859, 3
    %v2868 = vrot.slane %v2860, 3
    %v2869 = vsel %vm750, %v2867, %v2868
    %v2870 = vrot.slane %v2861, 3
    %v2871 = vrot.slane %v2862, 3
    %v2872 = vsel %vm750, %v2870, %v2871
    %2873 = vrot.lane.b32.xlu0 %v2869, 122
    %v2874 = vpop.permute.xlu0 %2873
    %2875 = vrot.lane.b32.xlu0 %v2868, 122
    %v2876 = vpop.permute.xlu0 %2875
    %2877 = vrot.lane.b32.xlu0 %v2872, 122
    %v2878 = vpop.permute.xlu0 %2877
    %2879 = vrot.lane.b32.xlu0 %v2871, 122
    %v2880 = vpop.permute.xlu0 %2879
    %v2885 = vadd.f32 %v2853, %v2874
    %v2886 = vadd.f32 %v2854, %v2876
    %v2887 = vadd.f32 %v2855, %v2878
    %v2888 = vadd.f32 %v2856, %v2880
    %s2889 = sld [smem:[#allocation6 + $0x5f]]
    %v2890 = vstv %s2889
    %v2891 = vmul.f32 %v2890, %v44
    %v2892 = vmul.f32 %v2890, %v45
    %v2893 = vmul.f32 %v2890, %v48
    %v2894 = vmul.f32 %v2890, %v49
    %v2899 = vrot.slane %v2891, 3
    %v2900 = vrot.slane %v2892, 3
    %v2901 = vsel %vm750, %v2899, %v2900
    %v2902 = vrot.slane %v2893, 3
    %v2903 = vrot.slane %v2894, 3
    %v2904 = vsel %vm750, %v2902, %v2903
    %2905 = vrot.lane.b32.xlu0 %v2901, 121
    %v2906 = vpop.permute.xlu0 %2905
    %2907 = vrot.lane.b32.xlu0 %v2900, 121
    %v2908 = vpop.permute.xlu0 %2907
    %2909 = vrot.lane.b32.xlu0 %v2904, 121
    %v2910 = vpop.permute.xlu0 %2909
    %2911 = vrot.lane.b32.xlu0 %v2903, 121
    %v2912 = vpop.permute.xlu0 %2911
    %v2917 = vadd.f32 %v2885, %v2906
    %v2918 = vadd.f32 %v2886, %v2908
    %v2919 = vadd.f32 %v2887, %v2910
    %v2920 = vadd.f32 %v2888, %v2912
    %s2921 = sld [smem:[#allocation6 + $0x60]]
    %v2922 = vstv %s2921
    %v2923 = vmul.f32 %v2922, %v44
    %v2924 = vmul.f32 %v2922, %v45
    %v2925 = vmul.f32 %v2922, %v48
    %v2926 = vmul.f32 %v2922, %v49
    %v2931 = vrot.slane %v2923, 4
    %v2932 = vrot.slane %v2924, 4
    %v2933 = vsel %vm999, %v2931, %v2932
    %v2934 = vrot.slane %v2925, 4
    %v2935 = vrot.slane %v2926, 4
    %v2936 = vsel %vm999, %v2934, %v2935
    %v2941 = vadd.f32 %v2917, %v2933
    %v2942 = vadd.f32 %v2918, %v2932
    %v2943 = vadd.f32 %v2919, %v2936
    %v2944 = vadd.f32 %v2920, %v2935
    %s2945 = sld [smem:[#allocation6 + $0x61]]
    %v2946 = vstv %s2945
    %v2947 = vmul.f32 %v2946, %v44
    %v2948 = vmul.f32 %v2946, %v45
    %v2949 = vmul.f32 %v2946, %v48
    %v2950 = vmul.f32 %v2946, %v49
    %v2955 = vrot.slane %v2947, 4
    %v2956 = vrot.slane %v2948, 4
    %v2957 = vsel %vm999, %v2955, %v2956
    %v2958 = vrot.slane %v2949, 4
    %v2959 = vrot.slane %v2950, 4
    %v2960 = vsel %vm999, %v2958, %v2959
    %2961 = vrot.lane.b32.xlu0 %v2957, 127
    %v2962 = vpop.permute.xlu0 %2961
    %2963 = vrot.lane.b32.xlu0 %v2956, 127
    %v2964 = vpop.permute.xlu0 %2963
    %2965 = vrot.lane.b32.xlu0 %v2960, 127
    %v2966 = vpop.permute.xlu0 %2965
    %2967 = vrot.lane.b32.xlu0 %v2959, 127
    %v2968 = vpop.permute.xlu0 %2967
    %v2973 = vadd.f32 %v2941, %v2962
    %v2974 = vadd.f32 %v2942, %v2964
    %v2975 = vadd.f32 %v2943, %v2966
    %v2976 = vadd.f32 %v2944, %v2968
    %s2977 = sld [smem:[#allocation6 + $0x62]]
    %v2978 = vstv %s2977
    %v2979 = vmul.f32 %v2978, %v44
    %v2980 = vmul.f32 %v2978, %v45
    %v2981 = vmul.f32 %v2978, %v48
    %v2982 = vmul.f32 %v2978, %v49
    %v2987 = vrot.slane %v2979, 4
    %v2988 = vrot.slane %v2980, 4
    %v2989 = vsel %vm999, %v2987, %v2988
    %v2990 = vrot.slane %v2981, 4
    %v2991 = vrot.slane %v2982, 4
    %v2992 = vsel %vm999, %v2990, %v2991
    %2993 = vrot.lane.b32.xlu0 %v2989, 126
    %v2994 = vpop.permute.xlu0 %2993
    %2995 = vrot.lane.b32.xlu0 %v2988, 126
    %v2996 = vpop.permute.xlu0 %2995
    %2997 = vrot.lane.b32.xlu0 %v2992, 126
    %v2998 = vpop.permute.xlu0 %2997
    %2999 = vrot.lane.b32.xlu0 %v2991, 126
    %v3000 = vpop.permute.xlu0 %2999
    %v3005 = vadd.f32 %v2973, %v2994
    %v3006 = vadd.f32 %v2974, %v2996
    %v3007 = vadd.f32 %v2975, %v2998
    %v3008 = vadd.f32 %v2976, %v3000
    %s3009 = sld [smem:[#allocation6 + $0x63]]
    %v3010 = vstv %s3009
    %v3011 = vmul.f32 %v3010, %v44
    %v3012 = vmul.f32 %v3010, %v45
    %v3013 = vmul.f32 %v3010, %v48
    %v3014 = vmul.f32 %v3010, %v49
    %v3019 = vrot.slane %v3011, 4
    %v3020 = vrot.slane %v3012, 4
    %v3021 = vsel %vm999, %v3019, %v3020
    %v3022 = vrot.slane %v3013, 4
    %v3023 = vrot.slane %v3014, 4
    %v3024 = vsel %vm999, %v3022, %v3023
    %3025 = vrot.lane.b32.xlu0 %v3021, 125
    %v3026 = vpop.permute.xlu0 %3025
    %3027 = vrot.lane.b32.xlu0 %v3020, 125
    %v3028 = vpop.permute.xlu0 %3027
    %3029 = vrot.lane.b32.xlu0 %v3024, 125
    %v3030 = vpop.permute.xlu0 %3029
    %3031 = vrot.lane.b32.xlu0 %v3023, 125
    %v3032 = vpop.permute.xlu0 %3031
    %v3037 = vadd.f32 %v3005, %v3026
    %v3038 = vadd.f32 %v3006, %v3028
    %v3039 = vadd.f32 %v3007, %v3030
    %v3040 = vadd.f32 %v3008, %v3032
    %s3041 = sld [smem:[#allocation6 + $0x64]]
    %v3042 = vstv %s3041
    %v3043 = vmul.f32 %v3042, %v44
    %v3044 = vmul.f32 %v3042, %v45
    %v3045 = vmul.f32 %v3042, %v48
    %v3046 = vmul.f32 %v3042, %v49
    %v3051 = vrot.slane %v3043, 4
    %v3052 = vrot.slane %v3044, 4
    %v3053 = vsel %vm999, %v3051, %v3052
    %v3054 = vrot.slane %v3045, 4
    %v3055 = vrot.slane %v3046, 4
    %v3056 = vsel %vm999, %v3054, %v3055
    %3057 = vrot.lane.b32.xlu0 %v3053, 124
    %v3058 = vpop.permute.xlu0 %3057
    %3059 = vrot.lane.b32.xlu0 %v3052, 124
    %v3060 = vpop.permute.xlu0 %3059
    %3061 = vrot.lane.b32.xlu0 %v3056, 124
    %v3062 = vpop.permute.xlu0 %3061
    %3063 = vrot.lane.b32.xlu0 %v3055, 124
    %v3064 = vpop.permute.xlu0 %3063
    %v3069 = vadd.f32 %v3037, %v3058
    %v3070 = vadd.f32 %v3038, %v3060
    %v3071 = vadd.f32 %v3039, %v3062
    %v3072 = vadd.f32 %v3040, %v3064
    %s3073 = sld [smem:[#allocation6 + $0x65]]
    %v3074 = vstv %s3073
    %v3075 = vmul.f32 %v3074, %v44
    %v3076 = vmul.f32 %v3074, %v45
    %v3077 = vmul.f32 %v3074, %v48
    %v3078 = vmul.f32 %v3074, %v49
    %v3083 = vrot.slane %v3075, 4
    %v3084 = vrot.slane %v3076, 4
    %v3085 = vsel %vm999, %v3083, %v3084
    %v3086 = vrot.slane %v3077, 4
    %v3087 = vrot.slane %v3078, 4
    %v3088 = vsel %vm999, %v3086, %v3087
    %3089 = vrot.lane.b32.xlu0 %v3085, 123
    %v3090 = vpop.permute.xlu0 %3089
    %3091 = vrot.lane.b32.xlu0 %v3084, 123
    %v3092 = vpop.permute.xlu0 %3091
    %3093 = vrot.lane.b32.xlu0 %v3088, 123
    %v3094 = vpop.permute.xlu0 %3093
    %3095 = vrot.lane.b32.xlu0 %v3087, 123
    %v3096 = vpop.permute.xlu0 %3095
    %v3101 = vadd.f32 %v3069, %v3090
    %v3102 = vadd.f32 %v3070, %v3092
    %v3103 = vadd.f32 %v3071, %v3094
    %v3104 = vadd.f32 %v3072, %v3096
    %s3105 = sld [smem:[#allocation6 + $0x66]]
    %v3106 = vstv %s3105
    %v3107 = vmul.f32 %v3106, %v44
    %v3108 = vmul.f32 %v3106, %v45
    %v3109 = vmul.f32 %v3106, %v48
    %v3110 = vmul.f32 %v3106, %v49
    %v3115 = vrot.slane %v3107, 4
    %v3116 = vrot.slane %v3108, 4
    %v3117 = vsel %vm999, %v3115, %v3116
    %v3118 = vrot.slane %v3109, 4
    %v3119 = vrot.slane %v3110, 4
    %v3120 = vsel %vm999, %v3118, %v3119
    %3121 = vrot.lane.b32.xlu0 %v3117, 122
    %v3122 = vpop.permute.xlu0 %3121
    %3123 = vrot.lane.b32.xlu0 %v3116, 122
    %v3124 = vpop.permute.xlu0 %3123
    %3125 = vrot.lane.b32.xlu0 %v3120, 122
    %v3126 = vpop.permute.xlu0 %3125
    %3127 = vrot.lane.b32.xlu0 %v3119, 122
    %v3128 = vpop.permute.xlu0 %3127
    %v3133 = vadd.f32 %v3101, %v3122
    %v3134 = vadd.f32 %v3102, %v3124
    %v3135 = vadd.f32 %v3103, %v3126
    %v3136 = vadd.f32 %v3104, %v3128
    %s3137 = sld [smem:[#allocation6 + $0x67]]
    %v3138 = vstv %s3137
    %v3139 = vmul.f32 %v3138, %v44
    %v3140 = vmul.f32 %v3138, %v45
    %v3141 = vmul.f32 %v3138, %v48
    %v3142 = vmul.f32 %v3138, %v49
    %v3147 = vrot.slane %v3139, 4
    %v3148 = vrot.slane %v3140, 4
    %v3149 = vsel %vm999, %v3147, %v3148
    %v3150 = vrot.slane %v3141, 4
    %v3151 = vrot.slane %v3142, 4
    %v3152 = vsel %vm999, %v3150, %v3151
    %3153 = vrot.lane.b32.xlu0 %v3149, 121
    %v3154 = vpop.permute.xlu0 %3153
    %3155 = vrot.lane.b32.xlu0 %v3148, 121
    %v3156 = vpop.permute.xlu0 %3155
    %3157 = vrot.lane.b32.xlu0 %v3152, 121
    %v3158 = vpop.permute.xlu0 %3157
    %3159 = vrot.lane.b32.xlu0 %v3151, 121
    %v3160 = vpop.permute.xlu0 %3159
    %v3165 = vadd.f32 %v3133, %v3154
    %v3166 = vadd.f32 %v3134, %v3156
    %v3167 = vadd.f32 %v3135, %v3158
    %v3168 = vadd.f32 %v3136, %v3160
    %s3169 = sld [smem:[#allocation6 + $0x68]]
    %v3170 = vstv %s3169
    %v3171 = vmul.f32 %v3170, %v44
    %v3172 = vmul.f32 %v3170, %v45
    %v3173 = vmul.f32 %v3170, %v48
    %v3174 = vmul.f32 %v3170, %v49
    %v3179 = vrot.slane %v3171, 5
    %v3180 = vrot.slane %v3172, 5
    %v3181 = vsel %vm1248, %v3179, %v3180
    %v3182 = vrot.slane %v3173, 5
    %v3183 = vrot.slane %v3174, 5
    %v3184 = vsel %vm1248, %v3182, %v3183
    %v3189 = vadd.f32 %v3165, %v3181
    %v3190 = vadd.f32 %v3166, %v3180
    %v3191 = vadd.f32 %v3167, %v3184
    %v3192 = vadd.f32 %v3168, %v3183
    %s3193 = sld [smem:[#allocation6 + $0x69]]
    %v3194 = vstv %s3193
    %v3195 = vmul.f32 %v3194, %v44
    %v3196 = vmul.f32 %v3194, %v45
    %v3197 = vmul.f32 %v3194, %v48
    %v3198 = vmul.f32 %v3194, %v49
    %v3203 = vrot.slane %v3195, 5
    %v3204 = vrot.slane %v3196, 5
    %v3205 = vsel %vm1248, %v3203, %v3204
    %v3206 = vrot.slane %v3197, 5
    %v3207 = vrot.slane %v3198, 5
    %v3208 = vsel %vm1248, %v3206, %v3207
    %3209 = vrot.lane.b32.xlu0 %v3205, 127
    %v3210 = vpop.permute.xlu0 %3209
    %3211 = vrot.lane.b32.xlu0 %v3204, 127
    %v3212 = vpop.permute.xlu0 %3211
    %3213 = vrot.lane.b32.xlu0 %v3208, 127
    %v3214 = vpop.permute.xlu0 %3213
    %3215 = vrot.lane.b32.xlu0 %v3207, 127
    %v3216 = vpop.permute.xlu0 %3215
    %v3221 = vadd.f32 %v3189, %v3210
    %v3222 = vadd.f32 %v3190, %v3212
    %v3223 = vadd.f32 %v3191, %v3214
    %v3224 = vadd.f32 %v3192, %v3216
    %s3225 = sld [smem:[#allocation6 + $0x6a]]
    %v3226 = vstv %s3225
    %v3227 = vmul.f32 %v3226, %v44
    %v3228 = vmul.f32 %v3226, %v45
    %v3229 = vmul.f32 %v3226, %v48
    %v3230 = vmul.f32 %v3226, %v49
    %v3235 = vrot.slane %v3227, 5
    %v3236 = vrot.slane %v3228, 5
    %v3237 = vsel %vm1248, %v3235, %v3236
    %v3238 = vrot.slane %v3229, 5
    %v3239 = vrot.slane %v3230, 5
    %v3240 = vsel %vm1248, %v3238, %v3239
    %3241 = vrot.lane.b32.xlu0 %v3237, 126
    %v3242 = vpop.permute.xlu0 %3241
    %3243 = vrot.lane.b32.xlu0 %v3236, 126
    %v3244 = vpop.permute.xlu0 %3243
    %3245 = vrot.lane.b32.xlu0 %v3240, 126
    %v3246 = vpop.permute.xlu0 %3245
    %3247 = vrot.lane.b32.xlu0 %v3239, 126
    %v3248 = vpop.permute.xlu0 %3247
    %v3253 = vadd.f32 %v3221, %v3242
    %v3254 = vadd.f32 %v3222, %v3244
    %v3255 = vadd.f32 %v3223, %v3246
    %v3256 = vadd.f32 %v3224, %v3248
    %s3257 = sld [smem:[#allocation6 + $0x6b]]
    %v3258 = vstv %s3257
    %v3259 = vmul.f32 %v3258, %v44
    %v3260 = vmul.f32 %v3258, %v45
    %v3261 = vmul.f32 %v3258, %v48
    %v3262 = vmul.f32 %v3258, %v49
    %v3267 = vrot.slane %v3259, 5
    %v3268 = vrot.slane %v3260, 5
    %v3269 = vsel %vm1248, %v3267, %v3268
    %v3270 = vrot.slane %v3261, 5
    %v3271 = vrot.slane %v3262, 5
    %v3272 = vsel %vm1248, %v3270, %v3271
    %3273 = vrot.lane.b32.xlu0 %v3269, 125
    %v3274 = vpop.permute.xlu0 %3273
    %3275 = vrot.lane.b32.xlu0 %v3268, 125
    %v3276 = vpop.permute.xlu0 %3275
    %3277 = vrot.lane.b32.xlu0 %v3272, 125
    %v3278 = vpop.permute.xlu0 %3277
    %3279 = vrot.lane.b32.xlu0 %v3271, 125
    %v3280 = vpop.permute.xlu0 %3279
    %v3285 = vadd.f32 %v3253, %v3274
    %v3286 = vadd.f32 %v3254, %v3276
    %v3287 = vadd.f32 %v3255, %v3278
    %v3288 = vadd.f32 %v3256, %v3280
    %s3289 = sld [smem:[#allocation6 + $0x6c]]
    %v3290 = vstv %s3289
    %v3291 = vmul.f32 %v3290, %v44
    %v3292 = vmul.f32 %v3290, %v45
    %v3293 = vmul.f32 %v3290, %v48
    %v3294 = vmul.f32 %v3290, %v49
    %v3299 = vrot.slane %v3291, 5
    %v3300 = vrot.slane %v3292, 5
    %v3301 = vsel %vm1248, %v3299, %v3300
    %v3302 = vrot.slane %v3293, 5
    %v3303 = vrot.slane %v3294, 5
    %v3304 = vsel %vm1248, %v3302, %v3303
    %3305 = vrot.lane.b32.xlu0 %v3301, 124
    %v3306 = vpop.permute.xlu0 %3305
    %3307 = vrot.lane.b32.xlu0 %v3300, 124
    %v3308 = vpop.permute.xlu0 %3307
    %3309 = vrot.lane.b32.xlu0 %v3304, 124
    %v3310 = vpop.permute.xlu0 %3309
    %3311 = vrot.lane.b32.xlu0 %v3303, 124
    %v3312 = vpop.permute.xlu0 %3311
    %v3317 = vadd.f32 %v3285, %v3306
    %v3318 = vadd.f32 %v3286, %v3308
    %v3319 = vadd.f32 %v3287, %v3310
    %v3320 = vadd.f32 %v3288, %v3312
    %s3321 = sld [smem:[#allocation6 + $0x6d]]
    %v3322 = vstv %s3321
    %v3323 = vmul.f32 %v3322, %v44
    %v3324 = vmul.f32 %v3322, %v45
    %v3325 = vmul.f32 %v3322, %v48
    %v3326 = vmul.f32 %v3322, %v49
    %v3331 = vrot.slane %v3323, 5
    %v3332 = vrot.slane %v3324, 5
    %v3333 = vsel %vm1248, %v3331, %v3332
    %v3334 = vrot.slane %v3325, 5
    %v3335 = vrot.slane %v3326, 5
    %v3336 = vsel %vm1248, %v3334, %v3335
    %3337 = vrot.lane.b32.xlu0 %v3333, 123
    %v3338 = vpop.permute.xlu0 %3337
    %3339 = vrot.lane.b32.xlu0 %v3332, 123
    %v3340 = vpop.permute.xlu0 %3339
    %3341 = vrot.lane.b32.xlu0 %v3336, 123
    %v3342 = vpop.permute.xlu0 %3341
    %3343 = vrot.lane.b32.xlu0 %v3335, 123
    %v3344 = vpop.permute.xlu0 %3343
    %v3349 = vadd.f32 %v3317, %v3338
    %v3350 = vadd.f32 %v3318, %v3340
    %v3351 = vadd.f32 %v3319, %v3342
    %v3352 = vadd.f32 %v3320, %v3344
    %s3353 = sld [smem:[#allocation6 + $0x6e]]
    %v3354 = vstv %s3353
    %v3355 = vmul.f32 %v3354, %v44
    %v3356 = vmul.f32 %v3354, %v45
    %v3357 = vmul.f32 %v3354, %v48
    %v3358 = vmul.f32 %v3354, %v49
    %v3363 = vrot.slane %v3355, 5
    %v3364 = vrot.slane %v3356, 5
    %v3365 = vsel %vm1248, %v3363, %v3364
    %v3366 = vrot.slane %v3357, 5
    %v3367 = vrot.slane %v3358, 5
    %v3368 = vsel %vm1248, %v3366, %v3367
    %3369 = vrot.lane.b32.xlu0 %v3365, 122
    %v3370 = vpop.permute.xlu0 %3369
    %3371 = vrot.lane.b32.xlu0 %v3364, 122
    %v3372 = vpop.permute.xlu0 %3371
    %3373 = vrot.lane.b32.xlu0 %v3368, 122
    %v3374 = vpop.permute.xlu0 %3373
    %3375 = vrot.lane.b32.xlu0 %v3367, 122
    %v3376 = vpop.permute.xlu0 %3375
    %v3381 = vadd.f32 %v3349, %v3370
    %v3382 = vadd.f32 %v3350, %v3372
    %v3383 = vadd.f32 %v3351, %v3374
    %v3384 = vadd.f32 %v3352, %v3376
    %s3385 = sld [smem:[#allocation6 + $0x6f]]
    %v3386 = vstv %s3385
    %v3387 = vmul.f32 %v3386, %v44
    %v3388 = vmul.f32 %v3386, %v45
    %v3389 = vmul.f32 %v3386, %v48
    %v3390 = vmul.f32 %v3386, %v49
    %v3395 = vrot.slane %v3387, 5
    %v3396 = vrot.slane %v3388, 5
    %v3397 = vsel %vm1248, %v3395, %v3396
    %v3398 = vrot.slane %v3389, 5
    %v3399 = vrot.slane %v3390, 5
    %v3400 = vsel %vm1248, %v3398, %v3399
    %3401 = vrot.lane.b32.xlu0 %v3397, 121
    %v3402 = vpop.permute.xlu0 %3401
    %3403 = vrot.lane.b32.xlu0 %v3396, 121
    %v3404 = vpop.permute.xlu0 %3403
    %3405 = vrot.lane.b32.xlu0 %v3400, 121
    %v3406 = vpop.permute.xlu0 %3405
    %3407 = vrot.lane.b32.xlu0 %v3399, 121
    %v3408 = vpop.permute.xlu0 %3407
    %v3413 = vadd.f32 %v3381, %v3402
    %v3414 = vadd.f32 %v3382, %v3404
    %v3415 = vadd.f32 %v3383, %v3406
    %v3416 = vadd.f32 %v3384, %v3408
    %s3417 = sld [smem:[#allocation6 + $0x70]]
    %v3418 = vstv %s3417
    %v3419 = vmul.f32 %v3418, %v44
    %v3420 = vmul.f32 %v3418, %v45
    %v3421 = vmul.f32 %v3418, %v48
    %v3422 = vmul.f32 %v3418, %v49
    %v3427 = vrot.slane %v3419, 6
    %v3428 = vrot.slane %v3420, 6
    %v3429 = vsel %vm1497, %v3427, %v3428
    %v3430 = vrot.slane %v3421, 6
    %v3431 = vrot.slane %v3422, 6
    %v3432 = vsel %vm1497, %v3430, %v3431
    %v3437 = vadd.f32 %v3413, %v3429
    %v3438 = vadd.f32 %v3414, %v3428
    %v3439 = vadd.f32 %v3415, %v3432
    %v3440 = vadd.f32 %v3416, %v3431
    %s3441 = sld [smem:[#allocation6 + $0x71]]
    %v3442 = vstv %s3441
    %v3443 = vmul.f32 %v3442, %v44
    %v3444 = vmul.f32 %v3442, %v45
    %v3445 = vmul.f32 %v3442, %v48
    %v3446 = vmul.f32 %v3442, %v49
    %v3451 = vrot.slane %v3443, 6
    %v3452 = vrot.slane %v3444, 6
    %v3453 = vsel %vm1497, %v3451, %v3452
    %v3454 = vrot.slane %v3445, 6
    %v3455 = vrot.slane %v3446, 6
    %v3456 = vsel %vm1497, %v3454, %v3455
    %3457 = vrot.lane.b32.xlu0 %v3453, 127
    %v3458 = vpop.permute.xlu0 %3457
    %3459 = vrot.lane.b32.xlu0 %v3452, 127
    %v3460 = vpop.permute.xlu0 %3459
    %3461 = vrot.lane.b32.xlu0 %v3456, 127
    %v3462 = vpop.permute.xlu0 %3461
    %3463 = vrot.lane.b32.xlu0 %v3455, 127
    %v3464 = vpop.permute.xlu0 %3463
    %v3469 = vadd.f32 %v3437, %v3458
    %v3470 = vadd.f32 %v3438, %v3460
    %v3471 = vadd.f32 %v3439, %v3462
    %v3472 = vadd.f32 %v3440, %v3464
    %s3473 = sld [smem:[#allocation6 + $0x72]]
    %v3474 = vstv %s3473
    %v3475 = vmul.f32 %v3474, %v44
    %v3476 = vmul.f32 %v3474, %v45
    %v3477 = vmul.f32 %v3474, %v48
    %v3478 = vmul.f32 %v3474, %v49
    %v3483 = vrot.slane %v3475, 6
    %v3484 = vrot.slane %v3476, 6
    %v3485 = vsel %vm1497, %v3483, %v3484
    %v3486 = vrot.slane %v3477, 6
    %v3487 = vrot.slane %v3478, 6
    %v3488 = vsel %vm1497, %v3486, %v3487
    %3489 = vrot.lane.b32.xlu0 %v3485, 126
    %v3490 = vpop.permute.xlu0 %3489
    %3491 = vrot.lane.b32.xlu0 %v3484, 126
    %v3492 = vpop.permute.xlu0 %3491
    %3493 = vrot.lane.b32.xlu0 %v3488, 126
    %v3494 = vpop.permute.xlu0 %3493
    %3495 = vrot.lane.b32.xlu0 %v3487, 126
    %v3496 = vpop.permute.xlu0 %3495
    %v3501 = vadd.f32 %v3469, %v3490
    %v3502 = vadd.f32 %v3470, %v3492
    %v3503 = vadd.f32 %v3471, %v3494
    %v3504 = vadd.f32 %v3472, %v3496
    %s3505 = sld [smem:[#allocation6 + $0x73]]
    %v3506 = vstv %s3505
    %v3507 = vmul.f32 %v3506, %v44
    %v3508 = vmul.f32 %v3506, %v45
    %v3509 = vmul.f32 %v3506, %v48
    %v3510 = vmul.f32 %v3506, %v49
    %v3515 = vrot.slane %v3507, 6
    %v3516 = vrot.slane %v3508, 6
    %v3517 = vsel %vm1497, %v3515, %v3516
    %v3518 = vrot.slane %v3509, 6
    %v3519 = vrot.slane %v3510, 6
    %v3520 = vsel %vm1497, %v3518, %v3519
    %3521 = vrot.lane.b32.xlu0 %v3517, 125
    %v3522 = vpop.permute.xlu0 %3521
    %3523 = vrot.lane.b32.xlu0 %v3516, 125
    %v3524 = vpop.permute.xlu0 %3523
    %3525 = vrot.lane.b32.xlu0 %v3520, 125
    %v3526 = vpop.permute.xlu0 %3525
    %3527 = vrot.lane.b32.xlu0 %v3519, 125
    %v3528 = vpop.permute.xlu0 %3527
    %v3533 = vadd.f32 %v3501, %v3522
    %v3534 = vadd.f32 %v3502, %v3524
    %v3535 = vadd.f32 %v3503, %v3526
    %v3536 = vadd.f32 %v3504, %v3528
    %s3537 = sld [smem:[#allocation6 + $0x74]]
    %v3538 = vstv %s3537
    %v3539 = vmul.f32 %v3538, %v44
    %v3540 = vmul.f32 %v3538, %v45
    %v3541 = vmul.f32 %v3538, %v48
    %v3542 = vmul.f32 %v3538, %v49
    %v3547 = vrot.slane %v3539, 6
    %v3548 = vrot.slane %v3540, 6
    %v3549 = vsel %vm1497, %v3547, %v3548
    %v3550 = vrot.slane %v3541, 6
    %v3551 = vrot.slane %v3542, 6
    %v3552 = vsel %vm1497, %v3550, %v3551
    %3553 = vrot.lane.b32.xlu0 %v3549, 124
    %v3554 = vpop.permute.xlu0 %3553
    %3555 = vrot.lane.b32.xlu0 %v3548, 124
    %v3556 = vpop.permute.xlu0 %3555
    %3557 = vrot.lane.b32.xlu0 %v3552, 124
    %v3558 = vpop.permute.xlu0 %3557
    %3559 = vrot.lane.b32.xlu0 %v3551, 124
    %v3560 = vpop.permute.xlu0 %3559
    %v3565 = vadd.f32 %v3533, %v3554
    %v3566 = vadd.f32 %v3534, %v3556
    %v3567 = vadd.f32 %v3535, %v3558
    %v3568 = vadd.f32 %v3536, %v3560
    %s3569 = sld [smem:[#allocation6 + $0x75]]
    %v3570 = vstv %s3569
    %v3571 = vmul.f32 %v3570, %v44
    %v3572 = vmul.f32 %v3570, %v45
    %v3573 = vmul.f32 %v3570, %v48
    %v3574 = vmul.f32 %v3570, %v49
    %v3579 = vrot.slane %v3571, 6
    %v3580 = vrot.slane %v3572, 6
    %v3581 = vsel %vm1497, %v3579, %v3580
    %v3582 = vrot.slane %v3573, 6
    %v3583 = vrot.slane %v3574, 6
    %v3584 = vsel %vm1497, %v3582, %v3583
    %3585 = vrot.lane.b32.xlu0 %v3581, 123
    %v3586 = vpop.permute.xlu0 %3585
    %3587 = vrot.lane.b32.xlu0 %v3580, 123
    %v3588 = vpop.permute.xlu0 %3587
    %3589 = vrot.lane.b32.xlu0 %v3584, 123
    %v3590 = vpop.permute.xlu0 %3589
    %3591 = vrot.lane.b32.xlu0 %v3583, 123
    %v3592 = vpop.permute.xlu0 %3591
    %v3597 = vadd.f32 %v3565, %v3586
    %v3598 = vadd.f32 %v3566, %v3588
    %v3599 = vadd.f32 %v3567, %v3590
    %v3600 = vadd.f32 %v3568, %v3592
    %s3601 = sld [smem:[#allocation6 + $0x76]]
    %v3602 = vstv %s3601
    %v3603 = vmul.f32 %v3602, %v44
    %v3604 = vmul.f32 %v3602, %v45
    %v3605 = vmul.f32 %v3602, %v48
    %v3606 = vmul.f32 %v3602, %v49
    %v3611 = vrot.slane %v3603, 6
    %v3612 = vrot.slane %v3604, 6
    %v3613 = vsel %vm1497, %v3611, %v3612
    %v3614 = vrot.slane %v3605, 6
    %v3615 = vrot.slane %v3606, 6
    %v3616 = vsel %vm1497, %v3614, %v3615
    %3617 = vrot.lane.b32.xlu0 %v3613, 122
    %v3618 = vpop.permute.xlu0 %3617
    %3619 = vrot.lane.b32.xlu0 %v3612, 122
    %v3620 = vpop.permute.xlu0 %3619
    %3621 = vrot.lane.b32.xlu0 %v3616, 122
    %v3622 = vpop.permute.xlu0 %3621
    %3623 = vrot.lane.b32.xlu0 %v3615, 122
    %v3624 = vpop.permute.xlu0 %3623
    %v3629 = vadd.f32 %v3597, %v3618
    %v3630 = vadd.f32 %v3598, %v3620
    %v3631 = vadd.f32 %v3599, %v3622
    %v3632 = vadd.f32 %v3600, %v3624
    %s3633 = sld [smem:[#allocation6 + $0x77]]
    %v3634 = vstv %s3633
    %v3635 = vmul.f32 %v3634, %v44
    %v3636 = vmul.f32 %v3634, %v45
    %v3637 = vmul.f32 %v3634, %v48
    %v3638 = vmul.f32 %v3634, %v49
    %v3643 = vrot.slane %v3635, 6
    %v3644 = vrot.slane %v3636, 6
    %v3645 = vsel %vm1497, %v3643, %v3644
    %v3646 = vrot.slane %v3637, 6
    %v3647 = vrot.slane %v3638, 6
    %v3648 = vsel %vm1497, %v3646, %v3647
    %3649 = vrot.lane.b32.xlu0 %v3645, 121
    %v3650 = vpop.permute.xlu0 %3649
    %3651 = vrot.lane.b32.xlu0 %v3644, 121
    %v3652 = vpop.permute.xlu0 %3651
    %3653 = vrot.lane.b32.xlu0 %v3648, 121
    %v3654 = vpop.permute.xlu0 %3653
    %3655 = vrot.lane.b32.xlu0 %v3647, 121
    %v3656 = vpop.permute.xlu0 %3655
    %v3661 = vadd.f32 %v3629, %v3650
    %v3662 = vadd.f32 %v3630, %v3652
    %v3663 = vadd.f32 %v3631, %v3654
    %v3664 = vadd.f32 %v3632, %v3656
    %s3665 = sld [smem:[#allocation6 + $0x78]]
    %v3666 = vstv %s3665
    %v3667 = vmul.f32 %v3666, %v44
    %v3668 = vmul.f32 %v3666, %v45
    %v3669 = vmul.f32 %v3666, %v48
    %v3670 = vmul.f32 %v3666, %v49
    %v3675 = vrot.slane %v3667, 7
    %v3676 = vrot.slane %v3668, 7
    %v3677 = vsel %vm1746, %v3675, %v3676
    %v3678 = vrot.slane %v3669, 7
    %v3679 = vrot.slane %v3670, 7
    %v3680 = vsel %vm1746, %v3678, %v3679
    %v3685 = vadd.f32 %v3661, %v3677
    %v3686 = vadd.f32 %v3662, %v3676
    %v3687 = vadd.f32 %v3663, %v3680
    %v3688 = vadd.f32 %v3664, %v3679
    %s3689 = sld [smem:[#allocation6 + $0x79]]
    %v3690 = vstv %s3689
    %v3691 = vmul.f32 %v3690, %v44
    %v3692 = vmul.f32 %v3690, %v45
    %v3693 = vmul.f32 %v3690, %v48
    %v3694 = vmul.f32 %v3690, %v49
    %v3699 = vrot.slane %v3691, 7
    %v3700 = vrot.slane %v3692, 7
    %v3701 = vsel %vm1746, %v3699, %v3700
    %v3702 = vrot.slane %v3693, 7
    %v3703 = vrot.slane %v3694, 7
    %v3704 = vsel %vm1746, %v3702, %v3703
    %3705 = vrot.lane.b32.xlu0 %v3701, 127
    %v3706 = vpop.permute.xlu0 %3705
    %3707 = vrot.lane.b32.xlu0 %v3700, 127
    %v3708 = vpop.permute.xlu0 %3707
    %3709 = vrot.lane.b32.xlu0 %v3704, 127
    %v3710 = vpop.permute.xlu0 %3709
    %3711 = vrot.lane.b32.xlu0 %v3703, 127
    %v3712 = vpop.permute.xlu0 %3711
    %v3717 = vadd.f32 %v3685, %v3706
    %v3718 = vadd.f32 %v3686, %v3708
    %v3719 = vadd.f32 %v3687, %v3710
    %v3720 = vadd.f32 %v3688, %v3712
    %s3721 = sld [smem:[#allocation6 + $0x7a]]
    %v3722 = vstv %s3721
    %v3723 = vmul.f32 %v3722, %v44
    %v3724 = vmul.f32 %v3722, %v45
    %v3725 = vmul.f32 %v3722, %v48
    %v3726 = vmul.f32 %v3722, %v49
    %v3731 = vrot.slane %v3723, 7
    %v3732 = vrot.slane %v3724, 7
    %v3733 = vsel %vm1746, %v3731, %v3732
    %v3734 = vrot.slane %v3725, 7
    %v3735 = vrot.slane %v3726, 7
    %v3736 = vsel %vm1746, %v3734, %v3735
    %3737 = vrot.lane.b32.xlu0 %v3733, 126
    %v3738 = vpop.permute.xlu0 %3737
    %3739 = vrot.lane.b32.xlu0 %v3732, 126
    %v3740 = vpop.permute.xlu0 %3739
    %3741 = vrot.lane.b32.xlu0 %v3736, 126
    %v3742 = vpop.permute.xlu0 %3741
    %3743 = vrot.lane.b32.xlu0 %v3735, 126
    %v3744 = vpop.permute.xlu0 %3743
    %v3749 = vadd.f32 %v3717, %v3738
    %v3750 = vadd.f32 %v3718, %v3740
    %v3751 = vadd.f32 %v3719, %v3742
    %v3752 = vadd.f32 %v3720, %v3744
    %s3753 = sld [smem:[#allocation6 + $0x7b]]
    %v3754 = vstv %s3753
    %v3755 = vmul.f32 %v3754, %v44
    %v3756 = vmul.f32 %v3754, %v45
    %v3757 = vmul.f32 %v3754, %v48
    %v3758 = vmul.f32 %v3754, %v49
    %v3763 = vrot.slane %v3755, 7
    %v3764 = vrot.slane %v3756, 7
    %v3765 = vsel %vm1746, %v3763, %v3764
    %v3766 = vrot.slane %v3757, 7
    %v3767 = vrot.slane %v3758, 7
    %v3768 = vsel %vm1746, %v3766, %v3767
    %3769 = vrot.lane.b32.xlu0 %v3765, 125
    %v3770 = vpop.permute.xlu0 %3769
    %3771 = vrot.lane.b32.xlu0 %v3764, 125
    %v3772 = vpop.permute.xlu0 %3771
    %3773 = vrot.lane.b32.xlu0 %v3768, 125
    %v3774 = vpop.permute.xlu0 %3773
    %3775 = vrot.lane.b32.xlu0 %v3767, 125
    %v3776 = vpop.permute.xlu0 %3775
    %v3781 = vadd.f32 %v3749, %v3770
    %v3782 = vadd.f32 %v3750, %v3772
    %v3783 = vadd.f32 %v3751, %v3774
    %v3784 = vadd.f32 %v3752, %v3776
    %s3785 = sld [smem:[#allocation6 + $0x7c]]
    %v3786 = vstv %s3785
    %v3787 = vmul.f32 %v3786, %v44
    %v3788 = vmul.f32 %v3786, %v45
    %v3789 = vmul.f32 %v3786, %v48
    %v3790 = vmul.f32 %v3786, %v49
    %v3795 = vrot.slane %v3787, 7
    %v3796 = vrot.slane %v3788, 7
    %v3797 = vsel %vm1746, %v3795, %v3796
    %v3798 = vrot.slane %v3789, 7
    %v3799 = vrot.slane %v3790, 7
    %v3800 = vsel %vm1746, %v3798, %v3799
    %3801 = vrot.lane.b32.xlu0 %v3797, 124
    %v3802 = vpop.permute.xlu0 %3801
    %3803 = vrot.lane.b32.xlu0 %v3796, 124
    %v3804 = vpop.permute.xlu0 %3803
    %3805 = vrot.lane.b32.xlu0 %v3800, 124
    %v3806 = vpop.permute.xlu0 %3805
    %3807 = vrot.lane.b32.xlu0 %v3799, 124
    %v3808 = vpop.permute.xlu0 %3807
    %v3813 = vadd.f32 %v3781, %v3802
    %v3814 = vadd.f32 %v3782, %v3804
    %v3815 = vadd.f32 %v3783, %v3806
    %v3816 = vadd.f32 %v3784, %v3808
    %s3817 = sld [smem:[#allocation6 + $0x7d]]
    %v3818 = vstv %s3817
    %v3819 = vmul.f32 %v3818, %v44
    %v3820 = vmul.f32 %v3818, %v45
    %v3821 = vmul.f32 %v3818, %v48
    %v3822 = vmul.f32 %v3818, %v49
    %v3827 = vrot.slane %v3819, 7
    %v3828 = vrot.slane %v3820, 7
    %v3829 = vsel %vm1746, %v3827, %v3828
    %v3830 = vrot.slane %v3821, 7
    %v3831 = vrot.slane %v3822, 7
    %v3832 = vsel %vm1746, %v3830, %v3831
    %3833 = vrot.lane.b32.xlu0 %v3829, 123
    %v3834 = vpop.permute.xlu0 %3833
    %3835 = vrot.lane.b32.xlu0 %v3828, 123
    %v3836 = vpop.permute.xlu0 %3835
    %3837 = vrot.lane.b32.xlu0 %v3832, 123
    %v3838 = vpop.permute.xlu0 %3837
    %3839 = vrot.lane.b32.xlu0 %v3831, 123
    %v3840 = vpop.permute.xlu0 %3839
    %v3845 = vadd.f32 %v3813, %v3834
    %v3846 = vadd.f32 %v3814, %v3836
    %v3847 = vadd.f32 %v3815, %v3838
    %v3848 = vadd.f32 %v3816, %v3840
    %s3849 = sld [smem:[#allocation6 + $0x7e]]
    %v3850 = vstv %s3849
    %v3851 = vmul.f32 %v3850, %v44
    %v3852 = vmul.f32 %v3850, %v45
    %v3853 = vmul.f32 %v3850, %v48
    %v3854 = vmul.f32 %v3850, %v49
    %v3859 = vrot.slane %v3851, 7
    %v3860 = vrot.slane %v3852, 7
    %v3861 = vsel %vm1746, %v3859, %v3860
    %v3862 = vrot.slane %v3853, 7
    %v3863 = vrot.slane %v3854, 7
    %v3864 = vsel %vm1746, %v3862, %v3863
    %3865 = vrot.lane.b32.xlu0 %v3861, 122
    %v3866 = vpop.permute.xlu0 %3865
    %3867 = vrot.lane.b32.xlu0 %v3860, 122
    %v3868 = vpop.permute.xlu0 %3867
    %3869 = vrot.lane.b32.xlu0 %v3864, 122
    %v3870 = vpop.permute.xlu0 %3869
    %3871 = vrot.lane.b32.xlu0 %v3863, 122
    %v3872 = vpop.permute.xlu0 %3871
    %v3877 = vadd.f32 %v3845, %v3866
    %v3878 = vadd.f32 %v3846, %v3868
    %v3879 = vadd.f32 %v3847, %v3870
    %v3880 = vadd.f32 %v3848, %v3872
    %s3881 = sld [smem:[#allocation6 + $0x7f]]
    %v3882 = vstv %s3881
    %v3883 = vmul.f32 %v3882, %v44
    %v3884 = vmul.f32 %v3882, %v45
    %v3885 = vmul.f32 %v3882, %v48
    %v3886 = vmul.f32 %v3882, %v49
    %v3891 = vrot.slane %v3883, 7
    %v3892 = vrot.slane %v3884, 7
    %v3893 = vsel %vm1746, %v3891, %v3892
    %v3894 = vrot.slane %v3885, 7
    %v3895 = vrot.slane %v3886, 7
    %v3896 = vsel %vm1746, %v3894, %v3895
    %3897 = vrot.lane.b32.xlu0 %v3893, 121
    %v3898 = vpop.permute.xlu0 %3897
    %3899 = vrot.lane.b32.xlu0 %v3892, 121
    %v3900 = vpop.permute.xlu0 %3899
    %3901 = vrot.lane.b32.xlu0 %v3896, 121
    %v3902 = vpop.permute.xlu0 %3901
    %3903 = vrot.lane.b32.xlu0 %v3895, 121
    %v3904 = vpop.permute.xlu0 %3903
    %v3909 = vadd.f32 %v3877, %v3898
    %v3910 = vadd.f32 %v3878, %v3900
    %v3911 = vadd.f32 %v3879, %v3902
    %v3912 = vadd.f32 %v3880, %v3904
    %s3913 = sld [smem:[#allocation2]]
    %v3914 = vstv %s3913
    %v3915 = vadd.f32 %v3909, %v3914
    %v3916 = vadd.f32 %v3910, %v3914
    %v3917 = vadd.f32 %v3911, %v3914
    %v3918 = vadd.f32 %v3912, %v3914
    %vm3919 = vcmp.gt.f32.partialorder %v3915, 0.0
    %vm3920 = vcmp.gt.f32.partialorder %v3916, 0.0
    %vm3921 = vcmp.gt.f32.partialorder %v3917, 0.0
    %vm3922 = vcmp.gt.f32.partialorder %v3918, 0.0
    %v3923 = vmul.f32 %v3915, 0.3315146
    %v3924 = vmul.f32 %v3916, 0.3315146
    %v3925 = vmul.f32 %v3917, 0.3315146
    %v3926 = vmul.f32 %v3918, 0.3315146
    %v3927 = vsel %vm3919, %v3915, %v3923
    %v3928 = vsel %vm3920, %v3916, %v3924
    %v3929 = vsel %vm3921, %v3917, %v3925
    %v3930 = vsel %vm3922, %v3918, %v3926
    %vm3931 = vcmask 72704
    %3932 = vst.msk [vmem:[%s3] sm:$0xff] %vm3931, %v3927
    %vm3933 = vcmask 65536
    %3934 = vst.msk [vmem:[%s3 + $0x8] sm:$0x1] %vm3933, %v3928
    %3935 = vst.msk [vmem:[%s3 + $0x10] sm:$0xff] %vm3931, %v3929
    %3936 = vst.msk [vmem:[%s3 + $0x18] sm:$0x1] %vm3933, %v3930
    // Predicated region
    $region22: #{conv2d_leaky_relu.1} parent=1 // pred_check
      _
    $region23: #{conv2d_leaky_relu.1} parent=1 // pred_check_branch
      %3938 = sbr.rel (0) target = $region25
    $region24: #{conv2d_leaky_relu.1} parent=1 // pred_region
      _
    $region25: #{conv2d_leaky_relu.1} parent=1 // pred_fallthru
      _
    // Predicated region
    $region26: #{conv2d_leaky_relu.1} parent=1 // pred_check
      _
    $region27: #{conv2d_leaky_relu.1} parent=1 // pred_check_branch
      %3940 = sbr.rel (0) target = $region29
    $region28: #{conv2d_leaky_relu.1} parent=1 // pred_region
      _
    $region29: #{conv2d_leaky_relu.1} parent=1 // pred_fallthru
      _
    %3941 = vsyncpa [#allocation4], 1
    %3942 = vsyncpa [#allocation5], 1

</llo_original>
